<compile_context>
chip_gen: v5e
topology: v5e:2x2
jax: 0.10.0
libtpu: 0.0.40
codegen_flags: <defaults>
</compile_context>

<pallas_src>
import functools

import jax
import jax.numpy as jnp
import numpy as np
from jax.experimental import pallas as pl
from jax.experimental.pallas import tpu as pltpu

_VMEM = pl.BlockSpec(memory_space=pltpu.MemorySpace.VMEM)


# ---------------------------------------------------------------------------
# Kernel 1/2: fused conv3x3(same) + bias + ReLU + 2x2 max-pool, one image/step
# ---------------------------------------------------------------------------
def _conv_relu_pool_kernel(x_ref, w_ref, b_ref, o_ref, *, H, W, Cin, Cout):
    # x_ref: (1, H+2, W+2, Cin) zero-padded NHWC tile (VMEM resident)
    # w_ref: (9, Cin, Cout)   b_ref: (1, Cout)   o_ref: (1, H//2, W//2, Cout)
    x = x_ref[0]                                   # (H+2, W+2, Cin)
    acc = jnp.zeros((H * W, Cout), jnp.float32)
    # 3x3 conv as 9 shifted (H*W, Cin) x (Cin, Cout) MXU accumulations.
    for dy in range(3):
        for dx in range(3):
            win = x[dy:dy + H, dx:dx + W, :]       # (H, W, Cin) static slice
            acc = acc + jnp.dot(win.reshape(H * W, Cin), w_ref[dy * 3 + dx],
                                preferred_element_type=jnp.float32)
    y = jnp.maximum(acc + b_ref[...], 0.0)         # (H*W, Cout)
    # fused 2x2 max-pool: pair rows along H (layout-free split of the row axis),
    # then pair along W.
    y = jnp.max(y.reshape(H // 2, 2, W, Cout), axis=1)        # (H/2, W, Cout)
    y = jnp.max(y.reshape(H // 2, W // 2, 2, Cout), axis=2)   # (H/2, W/2, Cout)
    o_ref[0] = y


def conv_relu_pool(x_nhwc, w9, b):
    """Conv2d(Cin,Cout,3,padding=1) + ReLU + MaxPool2d(2) in one Pallas kernel."""
    B, H, W, Cin = x_nhwc.shape
    Cout = w9.shape[2]
    Ho, Wo = H // 2, W // 2
    xp = jnp.pad(x_nhwc, ((0, 0), (1, 1), (1, 1), (0, 0)))    # thin XLA glue
    kernel = functools.partial(_conv_relu_pool_kernel, H=H, W=W, Cin=Cin, Cout=Cout)
    return pl.pallas_call(
        kernel,
        out_shape=jax.ShapeDtypeStruct((B, Ho, Wo, Cout), jnp.float32),
        grid=(B,),
        in_specs=[
            pl.BlockSpec((1, H + 2, W + 2, Cin), lambda b: (b, 0, 0, 0)),
            pl.BlockSpec((9, Cin, Cout), lambda b: (0, 0, 0)),
            pl.BlockSpec((1, Cout), lambda b: (0, 0)),
        ],
        out_specs=pl.BlockSpec((1, Ho, Wo, Cout), lambda b: (b, 0, 0, 0)),
        compiler_params=pltpu.CompilerParams(dimension_semantics=("parallel",)),
    )(xp, w9, b)


# ---------------------------------------------------------------------------
# Kernel 3: fused tail — mri fc1/fc2, DNA MLP, attention, gating, both heads
# ---------------------------------------------------------------------------
def _tail_kernel(conv_ref, dna_ref, wp_ref, bp_ref, out_ref, *, layout):
    w_off = layout["w_off"]
    b_off = layout["b_off"]

    def dense(xv, name, relu=False):
        off, K, N = w_off[name]
        row, _ = b_off[name]
        y = jnp.dot(xv, wp_ref[off:off + K, :N], preferred_element_type=jnp.float32)
        y = y + bp_ref[row:row + 1, :N]
        return jnp.maximum(y, 0.0) if relu else y

    # ----- MRI expert head (post-conv) -----
    h = dense(conv_ref[...], "fc1", relu=True)                 # (B, 128)
    mri_feat = dense(h, "fc2")                                 # (B, 6)

    # ----- DNA expert (whole MLP in-kernel) -----
    d = dna_ref[...]
    n_dna = layout["dna_layers"]
    for i in range(n_dna - 1):
        d = dense(d, f"dna{i}", relu=True)
    dna_feat = dense(d, f"dna{n_dna - 1}")                     # (B, 6)

    # ----- Attention over a length-1 sequence: softmax over a single key is 1,
    # so attn_output == out_proj(V).  Split the V projection rows so no in-kernel
    # concat of [mri_feat, dna_feat] is needed.
    offv, Kv, Nv = w_off["wv"]
    rowv, _ = b_off["wv"]
    half = Kv // 2
    v = (jnp.dot(mri_feat, wp_ref[offv:offv + half, :Nv],
                 preferred_element_type=jnp.float32)
         + jnp.dot(dna_feat, wp_ref[offv + half:offv + Kv, :Nv],
                   preferred_element_type=jnp.float32)
         + bp_ref[rowv:rowv + 1, :Nv])                         # (B, 12)
    attn = dense(v, "wo")                                      # (B, 12)

    # ----- Gating softmax over the 2 experts -----
    g = dense(attn, "wg")                                      # (B, 2)
    g = g - jnp.max(g, axis=1, keepdims=True)
    e = jnp.exp(g)
    gates = e / jnp.sum(e, axis=1, keepdims=True)
    combined = gates[:, 0:1] * mri_feat + gates[:, 1:2] * dna_feat   # (B, 6)

    # ----- Both heads fused into one matmul / one lane-contiguous store -----
    out_ref[...] = dense(combined, "whead")                    # (B, ncm+ncd)


# ---------------------------------------------------------------------------
# One-time parameter preparation (pre-transpose, permute, pack) + static layout
# ---------------------------------------------------------------------------
def tail_layout(H, W, dna_input_size, num_classes_mri, num_classes_dna):
    flat = (H // 4) * (W // 4) * 32
    dna_dims = [dna_input_size, 64, 32, 16, 8, 6]
    w_shapes = [("fc1", flat, 128), ("fc2", 128, 6)]
    w_shapes += [(f"dna{i}", dna_dims[i], dna_dims[i + 1]) for i in range(5)]
    w_shapes += [("wv", 12, 12), ("wo", 12, 12), ("wg", 12, 2),
                 ("whead", 6, num_classes_mri + num_classes_dna)]
    b_shapes = [("fc1", 128), ("fc2", 6)]
    b_shapes += [(f"dna{i}", dna_dims[i + 1]) for i in range(5)]
    b_shapes += [("wv", 12), ("wo", 12), ("wg", 2),
                 ("whead", num_classes_mri + num_classes_dna)]

    w_off, off = {}, 0
    for name, K, N in w_shapes:
        w_off[name] = (off, K, N)
        off += -(-K // 8) * 8                      # keep every segment 8-row aligned
    b_off = {name: (i, N) for i, (name, N) in enumerate(b_shapes)}
    return dict(w_off=w_off, w_rows=off, b_off=b_off, b_rows=len(b_shapes),
                dna_layers=5, flat=flat,
                ncm=num_classes_mri, ncd=num_classes_dna)


def _conv_w9(w_oihw):
    cout, cin = w_oihw.shape[0], w_oihw.shape[1]
    return jnp.transpose(w_oihw, (2, 3, 1, 0)).reshape(9, cin, cout)


def prepare_params(params, layout, H, W):
    """Done once, outside the per-call forward: all transposes / permutations /
    packing of tail weights into a single (rows,128) slab + (n_bias,128) slab."""
    D = 12
    Hp, Wp, C2 = H // 4, W // 4, 32
    # fold the torch (C,H,W) flatten order into fc1's columns -> NHWC flatten order
    w1 = params["mri_fc1_w"].reshape(128, C2, Hp, Wp).transpose(0, 2, 3, 1)
    w1 = w1.reshape(128, Hp * Wp * C2)

    tail_w = {
        "fc1": w1.T,
        "fc2": params["mri_fc2_w"].T,
        **{f"dna{i}": params["dna_fc_ws"][i].T for i in range(5)},
        "wv": params["attn_in_proj_w"][2 * D:3 * D].T,
        "wo": params["attn_out_proj_w"].T,
        "wg": params["fc_gate_w"].T,
        "whead": jnp.concatenate([params["fc2_mri_w"].T, params["fc2_dna_w"].T], axis=1),
    }
    tail_b = {
        "fc1": params["mri_fc1_b"],
        "fc2": params["mri_fc2_b"],
        **{f"dna{i}": params["dna_fc_bs"][i] for i in range(5)},
        "wv": params["attn_in_proj_b"][2 * D:3 * D],
        "wo": params["attn_out_proj_b"],
        "wg": params["fc_gate_b"],
        "whead": jnp.concatenate([params["fc2_mri_b"], params["fc2_dna_b"]]),
    }

    wp = jnp.zeros((layout["w_rows"], 128), jnp.float32)
    for name, (off, K, N) in layout["w_off"].items():
        wp = wp.at[off:off + K, :N].set(tail_w[name].astype(jnp.float32))
    bp = jnp.zeros((layout["b_rows"], 128), jnp.float32)
    for name, (row, N) in layout["b_off"].items():
        bp = bp.at[row, :N].set(tail_b[name].astype(jnp.float32))

    return {
        "conv1_w": _conv_w9(params["conv1_w"]),
        "conv1_b": params["conv1_b"].reshape(1, -1),
        "conv2_w": _conv_w9(params["conv2_w"]),
        "conv2_b": params["conv2_b"].reshape(1, -1),
        "tail_w": wp,
        "tail_b": bp,
    }


# ---------------------------------------------------------------------------
# Forward pass: 3 pallas_calls
# ---------------------------------------------------------------------------
def multimodal_forward(prepared, mri_nchw, dna, *, layout):
    B = mri_nchw.shape[0]
    x = jnp.transpose(mri_nchw, (0, 2, 3, 1))      # NCHW -> NHWC (one-time glue)
    x = conv_relu_pool(x, prepared["conv1_w"], prepared["conv1_b"])
    x = conv_relu_pool(x, prepared["conv2_w"], prepared["conv2_b"])
    conv_flat = x.reshape(B, -1)                   # NHWC flatten (perm folded into fc1)

    ncm, ncd = layout["ncm"], layout["ncd"]
    out = pl.pallas_call(
        functools.partial(_tail_kernel, layout=layout),
        out_shape=jax.ShapeDtypeStruct((B, ncm + ncd), jnp.float32),
        in_specs=[_VMEM, _VMEM, _VMEM, _VMEM],
        out_specs=_VMEM,
    )(conv_flat, dna, prepared["tail_w"], prepared["tail_b"])
    return out[:, :ncm], out[:, ncm:]


# ---------------------------------------------------------------------------
# Torch-layout parameter init + pure-JAX reference for validation
# ---------------------------------------------------------------------------
def init_params(key, H, W, dna_input_size, num_classes_mri, num_classes_dna):
    keys = iter(jax.random.split(key, 64))

    def p(shape, scale=0.1):
        return scale * jax.random.normal(next(keys), shape, jnp.float32)

    flat = 32 * (H // 4) * (W // 4)
    return {
        # mri expert (cnn: conv_channels=[16,32], hidden_dims=[128], out=6)
        "conv1_w": p((16, 3, 3, 3)), "conv1_b": p((16,)),
        "conv2_w": p((32, 16, 3, 3)), "conv2_b": p((32,)),
        "mri_fc1_w": p((128, flat)), "mri_fc1_b": p((128,)),
        "mri_fc2_w": p((6, 128)), "mri_fc2_b": p((6,)),
        # dna expert (mlp: hidden_dims=[64,32,16,8], out=6)
        "dna_fc_ws": [p((64, dna_input_size)), p((32, 64)), p((16, 32)),
                      p((8, 16)), p((6, 8))],
        "dna_fc_bs": [p((64,)), p((32,)), p((16,)), p((8,)), p((6,))],
        # fusion: MultiheadAttention(embed_dim=12, num_heads=6), fc_gate, heads
        "attn_in_proj_w": p((36, 12)), "attn_in_proj_b": p((36,)),
        "attn_out_proj_w": p((12, 12)), "attn_out_proj_b": p((12,)),
        "fc_gate_w": p((2, 12)), "fc_gate_b": p((2,)),
        "fc2_mri_w": p((num_classes_mri, 6)), "fc2_mri_b": p((num_classes_mri,)),
        "fc2_dna_w": p((num_classes_dna, 6)), "fc2_dna_b": p((num_classes_dna,)),
    }


def reference_forward(params, mri_nchw, dna):
    hi = jax.lax.Precision.HIGHEST

    def lin(x, w, b):
        return jnp.dot(x, w.T, precision=hi) + b

    def conv(x, w, b):
        y = jax.lax.conv_general_dilated(
            x, w, (1, 1), "SAME",
            dimension_numbers=("NCHW", "OIHW", "NCHW"), precision=hi)
        return jax.nn.relu(y + b[None, :, None, None])

    def pool(x):
        return jax.lax.reduce_window(x, -jnp.inf, jax.lax.max,
                                     (1, 1, 2, 2), (1, 1, 2, 2), "VALID")

    x = pool(conv(mri_nchw, params["conv1_w"], params["conv1_b"]))
    x = pool(conv(x, params["conv2_w"], params["conv2_b"]))
    x = x.reshape(x.shape[0], -1)
    x = jax.nn.relu(lin(x, params["mri_fc1_w"], params["mri_fc1_b"]))
    mri_feat = lin(x, params["mri_fc2_w"], params["mri_fc2_b"])

    h = dna
    for i in range(len(params["dna_fc_ws"]) - 1):
        h = jax.nn.relu(lin(h, params["dna_fc_ws"][i], params["dna_fc_bs"][i]))
    dna_feat = lin(h, params["dna_fc_ws"][-1], params["dna_fc_bs"][-1])

    xcat = jnp.concatenate([mri_feat, dna_feat], axis=1)
    D = 12
    v = lin(xcat, params["attn_in_proj_w"][2 * D:3 * D], params["attn_in_proj_b"][2 * D:3 * D])
    attn = lin(v, params["attn_out_proj_w"], params["attn_out_proj_b"])
    gates = jax.nn.softmax(lin(attn, params["fc_gate_w"], params["fc_gate_b"]), axis=1)
    combined = gates[:, 0:1] * mri_feat + gates[:, 1:2] * dna_feat
    return (lin(combined, params["fc2_mri_w"], params["fc2_mri_b"]),
            lin(combined, params["fc2_dna_w"], params["fc2_dna_b"]))


# ---------------------------------------------------------------------------
if __name__ == "__main__":
    key = jax.random.PRNGKey(0)
    k_mri, k_dna, k_params = jax.random.split(key, 3)

    B, H, W = 2, 16, 16
    dna_input_size = 16
    num_classes_mri, num_classes_dna = 3, 2

    mri_input = jax.random.normal(k_mri, (B, 3, H, W), jnp.float32)
    dna_input = jax.random.normal(k_dna, (B, dna_input_size), jnp.float32)

    params = init_params(k_params, H, W, dna_input_size, num_classes_mri, num_classes_dna)
    layout = tail_layout(H, W, dna_input_size, num_classes_mri, num_classes_dna)
    prepared = prepare_params(params, layout, H, W)     # one-time packing/transposes

    fwd = jax.jit(functools.partial(multimodal_forward, layout=layout))
    mri_out, dna_out = fwd(prepared, mri_input, dna_input)
    jax.block_until_ready((mri_out, dna_out))

    assert mri_out.shape == (B, num_classes_mri)
    assert dna_out.shape == (B, num_classes_dna)

    ref_mri, ref_dna = reference_forward(params, mri_input, dna_input)
    np.testing.assert_allclose(np.asarray(mri_out), np.asarray(ref_mri), atol=5e-3, rtol=5e-3)
    np.testing.assert_allclose(np.asarray(dna_out), np.asarray(ref_dna), atol=5e-3, rtol=5e-3)

    print("KERNEL_OK")
</pallas_src>

<mosaic_0001>
module attributes {stable_mosaic.version = 11 : i64} {
  func.func @_conv_relu_pool_kernel(%arg0: i32, %arg1: memref<1x18x18x3xf32, #tpu.memory_space<vmem>>, %arg2: memref<9x3x16xf32, #tpu.memory_space<vmem>>, %arg3: memref<1x16xf32, #tpu.memory_space<vmem>>, %arg4: memref<1x8x8x16xf32, #tpu.memory_space<vmem>>) attributes {dimension_semantics = [#tpu.dimension_semantics<parallel>], iteration_bounds = array<i64: 2>, scalar_prefetch = 0 : i64, scratch_operands = 0 : i64, tpu.core_type = #tpu.core_type<tc>, window_params = [{transform_indices = @transform_0, window_bounds = array<i64: 1, 18, 18, 3>}, {pipeline_mode = #tpu.pipeline_mode<synchronous>, transform_indices = @transform_1, window_bounds = array<i64: 9, 3, 16>}, {pipeline_mode = #tpu.pipeline_mode<synchronous>, transform_indices = @transform_2, window_bounds = array<i64: 1, 16>}, {transform_indices = @transform_3, window_bounds = array<i64: 1, 8, 8, 16>}]} {
    %c0 = arith.constant 0 : index
    %c0_0 = arith.constant 0 : index
    %c0_1 = arith.constant 0 : index
    %c0_2 = arith.constant 0 : index
    %0 = vector.load %arg1[%c0, %c0_0, %c0_1, %c0_2] : memref<1x18x18x3xf32, #tpu.memory_space<vmem>>, vector<1x18x18x3xf32>
    %1 = vector.shape_cast %0 : vector<1x18x18x3xf32> to vector<18x18x3xf32>
    %cst = arith.constant 0.000000e+00 : f32
    %2 = vector.broadcast %cst : f32 to vector<256x16xf32>
    %3 = vector.extract_strided_slice %1 {offsets = [0, 0, 0], sizes = [16, 16, 3], strides = [1, 1, 1]} : vector<18x18x3xf32> to vector<16x16x3xf32>
    %4 = vector.shape_cast %3 : vector<16x16x3xf32> to vector<256x3xf32>
    %c0_3 = arith.constant 0 : index
    %c0_4 = arith.constant 0 : index
    %c0_5 = arith.constant 0 : index
    %5 = vector.load %arg2[%c0_3, %c0_4, %c0_5] : memref<9x3x16xf32, #tpu.memory_space<vmem>>, vector<1x3x16xf32>
    %6 = vector.shape_cast %5 : vector<1x3x16xf32> to vector<3x16xf32>
    %cst_6 = arith.constant dense<0.000000e+00> : vector<256x16xf32>
    %7 = tpu.matmul %4, %6, %cst_6 {dimension_numbers = #tpu.dot_dimension_numbers<[1], [0], [0], [1], [0, 0, 1, 1], [], []>} : vector<256x3xf32>, vector<3x16xf32>, vector<256x16xf32> -> vector<256x16xf32>
    %8 = arith.addf %2, %7 : vector<256x16xf32>
    %9 = vector.extract_strided_slice %1 {offsets = [0, 1, 0], sizes = [16, 16, 3], strides = [1, 1, 1]} : vector<18x18x3xf32> to vector<16x16x3xf32>
    %10 = vector.shape_cast %9 : vector<16x16x3xf32> to vector<256x3xf32>
    %c1 = arith.constant 1 : index
    %c0_7 = arith.constant 0 : index
    %c0_8 = arith.constant 0 : index
    %11 = vector.load %arg2[%c1, %c0_7, %c0_8] : memref<9x3x16xf32, #tpu.memory_space<vmem>>, vector<1x3x16xf32>
    %12 = vector.shape_cast %11 : vector<1x3x16xf32> to vector<3x16xf32>
    %cst_9 = arith.constant dense<0.000000e+00> : vector<256x16xf32>
    %13 = tpu.matmul %10, %12, %cst_9 {dimension_numbers = #tpu.dot_dimension_numbers<[1], [0], [0], [1], [0, 0, 1, 1], [], []>} : vector<256x3xf32>, vector<3x16xf32>, vector<256x16xf32> -> vector<256x16xf32>
    %14 = arith.addf %8, %13 : vector<256x16xf32>
    %15 = vector.extract_strided_slice %1 {offsets = [0, 2, 0], sizes = [16, 16, 3], strides = [1, 1, 1]} : vector<18x18x3xf32> to vector<16x16x3xf32>
    %16 = vector.shape_cast %15 : vector<16x16x3xf32> to vector<256x3xf32>
    %c2 = arith.constant 2 : index
    %c0_10 = arith.constant 0 : index
    %c0_11 = arith.constant 0 : index
    %17 = vector.load %arg2[%c2, %c0_10, %c0_11] : memref<9x3x16xf32, #tpu.memory_space<vmem>>, vector<1x3x16xf32>
    %18 = vector.shape_cast %17 : vector<1x3x16xf32> to vector<3x16xf32>
    %cst_12 = arith.constant dense<0.000000e+00> : vector<256x16xf32>
    %19 = tpu.matmul %16, %18, %cst_12 {dimension_numbers = #tpu.dot_dimension_numbers<[1], [0], [0], [1], [0, 0, 1, 1], [], []>} : vector<256x3xf32>, vector<3x16xf32>, vector<256x16xf32> -> vector<256x16xf32>
    %20 = arith.addf %14, %19 : vector<256x16xf32>
    %21 = vector.extract_strided_slice %1 {offsets = [1, 0, 0], sizes = [16, 16, 3], strides = [1, 1, 1]} : vector<18x18x3xf32> to vector<16x16x3xf32>
    %22 = vector.shape_cast %21 : vector<16x16x3xf32> to vector<256x3xf32>
    %c3 = arith.constant 3 : index
    %c0_13 = arith.constant 0 : index
    %c0_14 = arith.constant 0 : index
    %23 = vector.load %arg2[%c3, %c0_13, %c0_14] : memref<9x3x16xf32, #tpu.memory_space<vmem>>, vector<1x3x16xf32>
    %24 = vector.shape_cast %23 : vector<1x3x16xf32> to vector<3x16xf32>
    %cst_15 = arith.constant dense<0.000000e+00> : vector<256x16xf32>
    %25 = tpu.matmul %22, %24, %cst_15 {dimension_numbers = #tpu.dot_dimension_numbers<[1], [0], [0], [1], [0, 0, 1, 1], [], []>} : vector<256x3xf32>, vector<3x16xf32>, vector<256x16xf32> -> vector<256x16xf32>
    %26 = arith.addf %20, %25 : vector<256x16xf32>
    %27 = vector.extract_strided_slice %1 {offsets = [1, 1, 0], sizes = [16, 16, 3], strides = [1, 1, 1]} : vector<18x18x3xf32> to vector<16x16x3xf32>
    %28 = vector.shape_cast %27 : vector<16x16x3xf32> to vector<256x3xf32>
    %c4 = arith.constant 4 : index
    %c0_16 = arith.constant 0 : index
    %c0_17 = arith.constant 0 : index
    %29 = vector.load %arg2[%c4, %c0_16, %c0_17] : memref<9x3x16xf32, #tpu.memory_space<vmem>>, vector<1x3x16xf32>
    %30 = vector.shape_cast %29 : vector<1x3x16xf32> to vector<3x16xf32>
    %cst_18 = arith.constant dense<0.000000e+00> : vector<256x16xf32>
    %31 = tpu.matmul %28, %30, %cst_18 {dimension_numbers = #tpu.dot_dimension_numbers<[1], [0], [0], [1], [0, 0, 1, 1], [], []>} : vector<256x3xf32>, vector<3x16xf32>, vector<256x16xf32> -> vector<256x16xf32>
    %32 = arith.addf %26, %31 : vector<256x16xf32>
    %33 = vector.extract_strided_slice %1 {offsets = [1, 2, 0], sizes = [16, 16, 3], strides = [1, 1, 1]} : vector<18x18x3xf32> to vector<16x16x3xf32>
    %34 = vector.shape_cast %33 : vector<16x16x3xf32> to vector<256x3xf32>
    %c5 = arith.constant 5 : index
    %c0_19 = arith.constant 0 : index
    %c0_20 = arith.constant 0 : index
    %35 = vector.load %arg2[%c5, %c0_19, %c0_20] : memref<9x3x16xf32, #tpu.memory_space<vmem>>, vector<1x3x16xf32>
    %36 = vector.shape_cast %35 : vector<1x3x16xf32> to vector<3x16xf32>
    %cst_21 = arith.constant dense<0.000000e+00> : vector<256x16xf32>
    %37 = tpu.matmul %34, %36, %cst_21 {dimension_numbers = #tpu.dot_dimension_numbers<[1], [0], [0], [1], [0, 0, 1, 1], [], []>} : vector<256x3xf32>, vector<3x16xf32>, vector<256x16xf32> -> vector<256x16xf32>
    %38 = arith.addf %32, %37 : vector<256x16xf32>
    %39 = vector.extract_strided_slice %1 {offsets = [2, 0, 0], sizes = [16, 16, 3], strides = [1, 1, 1]} : vector<18x18x3xf32> to vector<16x16x3xf32>
    %40 = vector.shape_cast %39 : vector<16x16x3xf32> to vector<256x3xf32>
    %c6 = arith.constant 6 : index
    %c0_22 = arith.constant 0 : index
    %c0_23 = arith.constant 0 : index
    %41 = vector.load %arg2[%c6, %c0_22, %c0_23] : memref<9x3x16xf32, #tpu.memory_space<vmem>>, vector<1x3x16xf32>
    %42 = vector.shape_cast %41 : vector<1x3x16xf32> to vector<3x16xf32>
    %cst_24 = arith.constant dense<0.000000e+00> : vector<256x16xf32>
    %43 = tpu.matmul %40, %42, %cst_24 {dimension_numbers = #tpu.dot_dimension_numbers<[1], [0], [0], [1], [0, 0, 1, 1], [], []>} : vector<256x3xf32>, vector<3x16xf32>, vector<256x16xf32> -> vector<256x16xf32>
    %44 = arith.addf %38, %43 : vector<256x16xf32>
    %45 = vector.extract_strided_slice %1 {offsets = [2, 1, 0], sizes = [16, 16, 3], strides = [1, 1, 1]} : vector<18x18x3xf32> to vector<16x16x3xf32>
    %46 = vector.shape_cast %45 : vector<16x16x3xf32> to vector<256x3xf32>
    %c7 = arith.constant 7 : index
    %c0_25 = arith.constant 0 : index
    %c0_26 = arith.constant 0 : index
    %47 = vector.load %arg2[%c7, %c0_25, %c0_26] : memref<9x3x16xf32, #tpu.memory_space<vmem>>, vector<1x3x16xf32>
    %48 = vector.shape_cast %47 : vector<1x3x16xf32> to vector<3x16xf32>
    %cst_27 = arith.constant dense<0.000000e+00> : vector<256x16xf32>
    %49 = tpu.matmul %46, %48, %cst_27 {dimension_numbers = #tpu.dot_dimension_numbers<[1], [0], [0], [1], [0, 0, 1, 1], [], []>} : vector<256x3xf32>, vector<3x16xf32>, vector<256x16xf32> -> vector<256x16xf32>
    %50 = arith.addf %44, %49 : vector<256x16xf32>
    %51 = vector.extract_strided_slice %1 {offsets = [2, 2, 0], sizes = [16, 16, 3], strides = [1, 1, 1]} : vector<18x18x3xf32> to vector<16x16x3xf32>
    %52 = vector.shape_cast %51 : vector<16x16x3xf32> to vector<256x3xf32>
    %c8 = arith.constant 8 : index
    %c0_28 = arith.constant 0 : index
    %c0_29 = arith.constant 0 : index
    %53 = vector.load %arg2[%c8, %c0_28, %c0_29] : memref<9x3x16xf32, #tpu.memory_space<vmem>>, vector<1x3x16xf32>
    %54 = vector.shape_cast %53 : vector<1x3x16xf32> to vector<3x16xf32>
    %cst_30 = arith.constant dense<0.000000e+00> : vector<256x16xf32>
    %55 = tpu.matmul %52, %54, %cst_30 {dimension_numbers = #tpu.dot_dimension_numbers<[1], [0], [0], [1], [0, 0, 1, 1], [], []>} : vector<256x3xf32>, vector<3x16xf32>, vector<256x16xf32> -> vector<256x16xf32>
    %56 = arith.addf %50, %55 : vector<256x16xf32>
    %c0_31 = arith.constant 0 : index
    %c0_32 = arith.constant 0 : index
    %57 = vector.load %arg3[%c0_31, %c0_32] : memref<1x16xf32, #tpu.memory_space<vmem>>, vector<1x16xf32>
    %58 = vector.broadcast %57 : vector<1x16xf32> to vector<256x16xf32>
    %59 = arith.addf %56, %58 : vector<256x16xf32>
    %cst_33 = arith.constant 0.000000e+00 : f32
    %60 = vector.broadcast %cst_33 : f32 to vector<256x16xf32>
    %61 = arith.maximumf %59, %60 : vector<256x16xf32>
    %62 = vector.shape_cast %61 : vector<256x16xf32> to vector<8x2x16x16xf32>
    %cst_34 = arith.constant dense<0xFF800000> : vector<8x16x16xf32>
    %63 = vector.multi_reduction <maximumf>, %62, %cst_34 [1] : vector<8x2x16x16xf32> to vector<8x16x16xf32>
    %64 = vector.shape_cast %63 : vector<8x16x16xf32> to vector<8x8x2x16xf32>
    %cst_35 = arith.constant dense<0xFF800000> : vector<8x8x16xf32>
    %65 = vector.multi_reduction <maximumf>, %64, %cst_35 [2] : vector<8x8x2x16xf32> to vector<8x8x16xf32>
    %c0_36 = arith.constant 0 : index
    %c0_37 = arith.constant 0 : index
    %c0_38 = arith.constant 0 : index
    %c0_39 = arith.constant 0 : index
    %66 = vector.load %arg4[%c0_36, %c0_37, %c0_38, %c0_39] : memref<1x8x8x16xf32, #tpu.memory_space<vmem>>, vector<1x8x8x16xf32>
    %67 = vector.shape_cast %66 : vector<1x8x8x16xf32> to vector<8x8x16xf32>
    %68 = vector.shape_cast %65 : vector<8x8x16xf32> to vector<1x8x8x16xf32>
    tpu.vector_store %arg4[%c0_36, %c0_37, %c0_38, %c0_39], %68 {strides = array<i32>} : memref<1x8x8x16xf32, #tpu.memory_space<vmem>>, vector<1x8x8x16xf32>,
    return
  }
  func.func @transform_0(%arg0: i32) -> (i32, i32, i32, i32) {
    %c0_i32 = arith.constant 0 : i32
    %c0_i32_0 = arith.constant 0 : i32
    %c0_i32_1 = arith.constant 0 : i32
    %c0_i32_2 = arith.constant 0 : i32
    return %arg0, %c0_i32, %c0_i32_0, %c0_i32_1 : i32, i32, i32, i32
  }
  func.func @transform_1(%arg0: i32) -> (i32, i32, i32) {
    %c0_i32 = arith.constant 0 : i32
    %c0_i32_0 = arith.constant 0 : i32
    %c0_i32_1 = arith.constant 0 : i32
    %c0_i32_2 = arith.constant 0 : i32
    return %c0_i32, %c0_i32_0, %c0_i32_1 : i32, i32, i32
  }
  func.func @transform_2(%arg0: i32) -> (i32, i32) {
    %c0_i32 = arith.constant 0 : i32
    %c0_i32_0 = arith.constant 0 : i32
    %c0_i32_1 = arith.constant 0 : i32
    return %c0_i32, %c0_i32_0 : i32, i32
  }
  func.func @transform_3(%arg0: i32) -> (i32, i32, i32, i32) {
    %c0_i32 = arith.constant 0 : i32
    %c0_i32_0 = arith.constant 0 : i32
    %c0_i32_1 = arith.constant 0 : i32
    %c0_i32_2 = arith.constant 0 : i32
    return %arg0, %c0_i32, %c0_i32_0, %c0_i32_1 : i32, i32, i32, i32
  }
}

module attributes {stable_mosaic.version = 11 : i64} {
  func.func @_conv_relu_pool_kernel(%arg0: i32, %arg1: memref<1x10x10x16xf32, #tpu.memory_space<vmem>>, %arg2: memref<9x16x32xf32, #tpu.memory_space<vmem>>, %arg3: memref<1x32xf32, #tpu.memory_space<vmem>>, %arg4: memref<1x4x4x32xf32, #tpu.memory_space<vmem>>) attributes {dimension_semantics = [#tpu.dimension_semantics<parallel>], iteration_bounds = array<i64: 2>, scalar_prefetch = 0 : i64, scratch_operands = 0 : i64, tpu.core_type = #tpu.core_type<tc>, window_params = [{transform_indices = @transform_0, window_bounds = array<i64: 1, 10, 10, 16>}, {pipeline_mode = #tpu.pipeline_mode<synchronous>, transform_indices = @transform_1, window_bounds = array<i64: 9, 16, 32>}, {pipeline_mode = #tpu.pipeline_mode<synchronous>, transform_indices = @transform_2, window_bounds = array<i64: 1, 32>}, {transform_indices = @transform_3, window_bounds = array<i64: 1, 4, 4, 32>}]} {
    %c0 = arith.constant 0 : index
    %c0_0 = arith.constant 0 : index
    %c0_1 = arith.constant 0 : index
    %c0_2 = arith.constant 0 : index
    %0 = vector.load %arg1[%c0, %c0_0, %c0_1, %c0_2] : memref<1x10x10x16xf32, #tpu.memory_space<vmem>>, vector<1x10x10x16xf32>
    %1 = vector.shape_cast %0 : vector<1x10x10x16xf32> to vector<10x10x16xf32>
    %cst = arith.constant 0.000000e+00 : f32
    %2 = vector.broadcast %cst : f32 to vector<64x32xf32>
    %3 = vector.extract_strided_slice %1 {offsets = [0, 0, 0], sizes = [8, 8, 16], strides = [1, 1, 1]} : vector<10x10x16xf32> to vector<8x8x16xf32>
    %4 = vector.shape_cast %3 : vector<8x8x16xf32> to vector<64x16xf32>
    %c0_3 = arith.constant 0 : index
    %c0_4 = arith.constant 0 : index
    %c0_5 = arith.constant 0 : index
    %5 = vector.load %arg2[%c0_3, %c0_4, %c0_5] : memref<9x16x32xf32, #tpu.memory_space<vmem>>, vector<1x16x32xf32>
    %6 = vector.shape_cast %5 : vector<1x16x32xf32> to vector<16x32xf32>
    %cst_6 = arith.constant dense<0.000000e+00> : vector<64x32xf32>
    %7 = tpu.matmul %4, %6, %cst_6 {dimension_numbers = #tpu.dot_dimension_numbers<[1], [0], [0], [1], [0, 0, 1, 1], [], []>} : vector<64x16xf32>, vector<16x32xf32>, vector<64x32xf32> -> vector<64x32xf32>
    %8 = arith.addf %2, %7 : vector<64x32xf32>
    %9 = vector.extract_strided_slice %1 {offsets = [0, 1, 0], sizes = [8, 8, 16], strides = [1, 1, 1]} : vector<10x10x16xf32> to vector<8x8x16xf32>
    %10 = vector.shape_cast %9 : vector<8x8x16xf32> to vector<64x16xf32>
    %c1 = arith.constant 1 : index
    %c0_7 = arith.constant 0 : index
    %c0_8 = arith.constant 0 : index
    %11 = vector.load %arg2[%c1, %c0_7, %c0_8] : memref<9x16x32xf32, #tpu.memory_space<vmem>>, vector<1x16x32xf32>
    %12 = vector.shape_cast %11 : vector<1x16x32xf32> to vector<16x32xf32>
    %cst_9 = arith.constant dense<0.000000e+00> : vector<64x32xf32>
    %13 = tpu.matmul %10, %12, %cst_9 {dimension_numbers = #tpu.dot_dimension_numbers<[1], [0], [0], [1], [0, 0, 1, 1], [], []>} : vector<64x16xf32>, vector<16x32xf32>, vector<64x32xf32> -> vector<64x32xf32>
    %14 = arith.addf %8, %13 : vector<64x32xf32>
    %15 = vector.extract_strided_slice %1 {offsets = [0, 2, 0], sizes = [8, 8, 16], strides = [1, 1, 1]} : vector<10x10x16xf32> to vector<8x8x16xf32>
    %16 = vector.shape_cast %15 : vector<8x8x16xf32> to vector<64x16xf32>
    %c2 = arith.constant 2 : index
    %c0_10 = arith.constant 0 : index
    %c0_11 = arith.constant 0 : index
    %17 = vector.load %arg2[%c2, %c0_10, %c0_11] : memref<9x16x32xf32, #tpu.memory_space<vmem>>, vector<1x16x32xf32>
    %18 = vector.shape_cast %17 : vector<1x16x32xf32> to vector<16x32xf32>
    %cst_12 = arith.constant dense<0.000000e+00> : vector<64x32xf32>
    %19 = tpu.matmul %16, %18, %cst_12 {dimension_numbers = #tpu.dot_dimension_numbers<[1], [0], [0], [1], [0, 0, 1, 1], [], []>} : vector<64x16xf32>, vector<16x32xf32>, vector<64x32xf32> -> vector<64x32xf32>
    %20 = arith.addf %14, %19 : vector<64x32xf32>
    %21 = vector.extract_strided_slice %1 {offsets = [1, 0, 0], sizes = [8, 8, 16], strides = [1, 1, 1]} : vector<10x10x16xf32> to vector<8x8x16xf32>
    %22 = vector.shape_cast %21 : vector<8x8x16xf32> to vector<64x16xf32>
    %c3 = arith.constant 3 : index
    %c0_13 = arith.constant 0 : index
    %c0_14 = arith.constant 0 : index
    %23 = vector.load %arg2[%c3, %c0_13, %c0_14] : memref<9x16x32xf32, #tpu.memory_space<vmem>>, vector<1x16x32xf32>
    %24 = vector.shape_cast %23 : vector<1x16x32xf32> to vector<16x32xf32>
    %cst_15 = arith.constant dense<0.000000e+00> : vector<64x32xf32>
    %25 = tpu.matmul %22, %24, %cst_15 {dimension_numbers = #tpu.dot_dimension_numbers<[1], [0], [0], [1], [0, 0, 1, 1], [], []>} : vector<64x16xf32>, vector<16x32xf32>, vector<64x32xf32> -> vector<64x32xf32>
    %26 = arith.addf %20, %25 : vector<64x32xf32>
    %27 = vector.extract_strided_slice %1 {offsets = [1, 1, 0], sizes = [8, 8, 16], strides = [1, 1, 1]} : vector<10x10x16xf32> to vector<8x8x16xf32>
    %28 = vector.shape_cast %27 : vector<8x8x16xf32> to vector<64x16xf32>
    %c4 = arith.constant 4 : index
    %c0_16 = arith.constant 0 : index
    %c0_17 = arith.constant 0 : index
    %29 = vector.load %arg2[%c4, %c0_16, %c0_17] : memref<9x16x32xf32, #tpu.memory_space<vmem>>, vector<1x16x32xf32>
    %30 = vector.shape_cast %29 : vector<1x16x32xf32> to vector<16x32xf32>
    %cst_18 = arith.constant dense<0.000000e+00> : vector<64x32xf32>
    %31 = tpu.matmul %28, %30, %cst_18 {dimension_numbers = #tpu.dot_dimension_numbers<[1], [0], [0], [1], [0, 0, 1, 1], [], []>} : vector<64x16xf32>, vector<16x32xf32>, vector<64x32xf32> -> vector<64x32xf32>
    %32 = arith.addf %26, %31 : vector<64x32xf32>
    %33 = vector.extract_strided_slice %1 {offsets = [1, 2, 0], sizes = [8, 8, 16], strides = [1, 1, 1]} : vector<10x10x16xf32> to vector<8x8x16xf32>
    %34 = vector.shape_cast %33 : vector<8x8x16xf32> to vector<64x16xf32>
    %c5 = arith.constant 5 : index
    %c0_19 = arith.constant 0 : index
    %c0_20 = arith.constant 0 : index
    %35 = vector.load %arg2[%c5, %c0_19, %c0_20] : memref<9x16x32xf32, #tpu.memory_space<vmem>>, vector<1x16x32xf32>
    %36 = vector.shape_cast %35 : vector<1x16x32xf32> to vector<16x32xf32>
    %cst_21 = arith.constant dense<0.000000e+00> : vector<64x32xf32>
    %37 = tpu.matmul %34, %36, %cst_21 {dimension_numbers = #tpu.dot_dimension_numbers<[1], [0], [0], [1], [0, 0, 1, 1], [], []>} : vector<64x16xf32>, vector<16x32xf32>, vector<64x32xf32> -> vector<64x32xf32>
    %38 = arith.addf %32, %37 : vector<64x32xf32>
    %39 = vector.extract_strided_slice %1 {offsets = [2, 0, 0], sizes = [8, 8, 16], strides = [1, 1, 1]} : vector<10x10x16xf32> to vector<8x8x16xf32>
    %40 = vector.shape_cast %39 : vector<8x8x16xf32> to vector<64x16xf32>
    %c6 = arith.constant 6 : index
    %c0_22 = arith.constant 0 : index
    %c0_23 = arith.constant 0 : index
    %41 = vector.load %arg2[%c6, %c0_22, %c0_23] : memref<9x16x32xf32, #tpu.memory_space<vmem>>, vector<1x16x32xf32>
    %42 = vector.shape_cast %41 : vector<1x16x32xf32> to vector<16x32xf32>
    %cst_24 = arith.constant dense<0.000000e+00> : vector<64x32xf32>
    %43 = tpu.matmul %40, %42, %cst_24 {dimension_numbers = #tpu.dot_dimension_numbers<[1], [0], [0], [1], [0, 0, 1, 1], [], []>} : vector<64x16xf32>, vector<16x32xf32>, vector<64x32xf32> -> vector<64x32xf32>
    %44 = arith.addf %38, %43 : vector<64x32xf32>
    %45 = vector.extract_strided_slice %1 {offsets = [2, 1, 0], sizes = [8, 8, 16], strides = [1, 1, 1]} : vector<10x10x16xf32> to vector<8x8x16xf32>
    %46 = vector.shape_cast %45 : vector<8x8x16xf32> to vector<64x16xf32>
    %c7 = arith.constant 7 : index
    %c0_25 = arith.constant 0 : index
    %c0_26 = arith.constant 0 : index
    %47 = vector.load %arg2[%c7, %c0_25, %c0_26] : memref<9x16x32xf32, #tpu.memory_space<vmem>>, vector<1x16x32xf32>
    %48 = vector.shape_cast %47 : vector<1x16x32xf32> to vector<16x32xf32>
    %cst_27 = arith.constant dense<0.000000e+00> : vector<64x32xf32>
    %49 = tpu.matmul %46, %48, %cst_27 {dimension_numbers = #tpu.dot_dimension_numbers<[1], [0], [0], [1], [0, 0, 1, 1], [], []>} : vector<64x16xf32>, vector<16x32xf32>, vector<64x32xf32> -> vector<64x32xf32>
    %50 = arith.addf %44, %49 : vector<64x32xf32>
    %51 = vector.extract_strided_slice %1 {offsets = [2, 2, 0], sizes = [8, 8, 16], strides = [1, 1, 1]} : vector<10x10x16xf32> to vector<8x8x16xf32>
    %52 = vector.shape_cast %51 : vector<8x8x16xf32> to vector<64x16xf32>
    %c8 = arith.constant 8 : index
    %c0_28 = arith.constant 0 : index
    %c0_29 = arith.constant 0 : index
    %53 = vector.load %arg2[%c8, %c0_28, %c0_29] : memref<9x16x32xf32, #tpu.memory_space<vmem>>, vector<1x16x32xf32>
    %54 = vector.shape_cast %53 : vector<1x16x32xf32> to vector<16x32xf32>
    %cst_30 = arith.constant dense<0.000000e+00> : vector<64x32xf32>
    %55 = tpu.matmul %52, %54, %cst_30 {dimension_numbers = #tpu.dot_dimension_numbers<[1], [0], [0], [1], [0, 0, 1, 1], [], []>} : vector<64x16xf32>, vector<16x32xf32>, vector<64x32xf32> -> vector<64x32xf32>
    %56 = arith.addf %50, %55 : vector<64x32xf32>
    %c0_31 = arith.constant 0 : index
    %c0_32 = arith.constant 0 : index
    %57 = vector.load %arg3[%c0_31, %c0_32] : memref<1x32xf32, #tpu.memory_space<vmem>>, vector<1x32xf32>
    %58 = vector.broadcast %57 : vector<1x32xf32> to vector<64x32xf32>
    %59 = arith.addf %56, %58 : vector<64x32xf32>
    %cst_33 = arith.constant 0.000000e+00 : f32
    %60 = vector.broadcast %cst_33 : f32 to vector<64x32xf32>
    %61 = arith.maximumf %59, %60 : vector<64x32xf32>
    %62 = vector.shape_cast %61 : vector<64x32xf32> to vector<4x2x8x32xf32>
    %cst_34 = arith.constant dense<0xFF800000> : vector<4x8x32xf32>
    %63 = vector.multi_reduction <maximumf>, %62, %cst_34 [1] : vector<4x2x8x32xf32> to vector<4x8x32xf32>
    %64 = vector.shape_cast %63 : vector<4x8x32xf32> to vector<4x4x2x32xf32>
    %cst_35 = arith.constant dense<0xFF800000> : vector<4x4x32xf32>
    %65 = vector.multi_reduction <maximumf>, %64, %cst_35 [2] : vector<4x4x2x32xf32> to vector<4x4x32xf32>
    %c0_36 = arith.constant 0 : index
    %c0_37 = arith.constant 0 : index
    %c0_38 = arith.constant 0 : index
    %c0_39 = arith.constant 0 : index
    %66 = vector.load %arg4[%c0_36, %c0_37, %c0_38, %c0_39] : memref<1x4x4x32xf32, #tpu.memory_space<vmem>>, vector<1x4x4x32xf32>
    %67 = vector.shape_cast %66 : vector<1x4x4x32xf32> to vector<4x4x32xf32>
    %68 = vector.shape_cast %65 : vector<4x4x32xf32> to vector<1x4x4x32xf32>
    tpu.vector_store %arg4[%c0_36, %c0_37, %c0_38, %c0_39], %68 {strides = array<i32>} : memref<1x4x4x32xf32, #tpu.memory_space<vmem>>, vector<1x4x4x32xf32>,
    return
  }
  func.func @transform_0(%arg0: i32) -> (i32, i32, i32, i32) {
    %c0_i32 = arith.constant 0 : i32
    %c0_i32_0 = arith.constant 0 : i32
    %c0_i32_1 = arith.constant 0 : i32
    %c0_i32_2 = arith.constant 0 : i32
    return %arg0, %c0_i32, %c0_i32_0, %c0_i32_1 : i32, i32, i32, i32
  }
  func.func @transform_1(%arg0: i32) -> (i32, i32, i32) {
    %c0_i32 = arith.constant 0 : i32
    %c0_i32_0 = arith.constant 0 : i32
    %c0_i32_1 = arith.constant 0 : i32
    %c0_i32_2 = arith.constant 0 : i32
    return %c0_i32, %c0_i32_0, %c0_i32_1 : i32, i32, i32
  }
  func.func @transform_2(%arg0: i32) -> (i32, i32) {
    %c0_i32 = arith.constant 0 : i32
    %c0_i32_0 = arith.constant 0 : i32
    %c0_i32_1 = arith.constant 0 : i32
    return %c0_i32, %c0_i32_0 : i32, i32
  }
  func.func @transform_3(%arg0: i32) -> (i32, i32, i32, i32) {
    %c0_i32 = arith.constant 0 : i32
    %c0_i32_0 = arith.constant 0 : i32
    %c0_i32_1 = arith.constant 0 : i32
    %c0_i32_2 = arith.constant 0 : i32
    return %arg0, %c0_i32, %c0_i32_0, %c0_i32_1 : i32, i32, i32, i32
  }
}

module attributes {stable_mosaic.version = 11 : i64} {
  func.func @_tail_kernel(%arg0: memref<2x512xf32, #tpu.memory_space<vmem>>, %arg1: memref<2x16xf32, #tpu.memory_space<vmem>>, %arg2: memref<832x128xf32, #tpu.memory_space<vmem>>, %arg3: memref<11x128xf32, #tpu.memory_space<vmem>>, %arg4: memref<2x5xf32, #tpu.memory_space<vmem>>) attributes {dimension_semantics = [], scalar_prefetch = 0 : i64, scratch_operands = 0 : i64, tpu.core_type = #tpu.core_type<tc>} {
    %c0 = arith.constant 0 : index
    %c0_0 = arith.constant 0 : index
    %0 = vector.load %arg0[%c0, %c0_0] : memref<2x512xf32, #tpu.memory_space<vmem>>, vector<2x512xf32>
    %c0_1 = arith.constant 0 : index
    %c0_2 = arith.constant 0 : index
    %1 = vector.load %arg2[%c0_1, %c0_2] : memref<832x128xf32, #tpu.memory_space<vmem>>, vector<512x128xf32>
    %cst = arith.constant dense<0.000000e+00> : vector<2x128xf32>
    %2 = tpu.matmul %0, %1, %cst {dimension_numbers = #tpu.dot_dimension_numbers<[1], [0], [0], [1], [0, 0, 1, 1], [], []>} : vector<2x512xf32>, vector<512x128xf32>, vector<2x128xf32> -> vector<2x128xf32>
    %c0_3 = arith.constant 0 : index
    %c0_4 = arith.constant 0 : index
    %3 = vector.load %arg3[%c0_3, %c0_4] : memref<11x128xf32, #tpu.memory_space<vmem>>, vector<1x128xf32>
    %4 = vector.broadcast %3 : vector<1x128xf32> to vector<2x128xf32>
    %5 = arith.addf %2, %4 : vector<2x128xf32>
    %cst_5 = arith.constant 0.000000e+00 : f32
    %6 = vector.broadcast %cst_5 : f32 to vector<2x128xf32>
    %7 = arith.maximumf %5, %6 : vector<2x128xf32>
    %c512 = arith.constant 512 : index
    %c0_6 = arith.constant 0 : index
    %8 = vector.load %arg2[%c512, %c0_6] : memref<832x128xf32, #tpu.memory_space<vmem>>, vector<128x6xf32>
    %cst_7 = arith.constant dense<0.000000e+00> : vector<2x6xf32>
    %9 = tpu.matmul %7, %8, %cst_7 {dimension_numbers = #tpu.dot_dimension_numbers<[1], [0], [0], [1], [0, 0, 1, 1], [], []>} : vector<2x128xf32>, vector<128x6xf32>, vector<2x6xf32> -> vector<2x6xf32>
    %c1 = arith.constant 1 : index
    %c0_8 = arith.constant 0 : index
    %10 = vector.load %arg3[%c1, %c0_8] : memref<11x128xf32, #tpu.memory_space<vmem>>, vector<1x6xf32>
    %11 = vector.broadcast %10 : vector<1x6xf32> to vector<2x6xf32>
    %12 = arith.addf %9, %11 : vector<2x6xf32>
    %c0_9 = arith.constant 0 : index
    %c0_10 = arith.constant 0 : index
    %13 = vector.load %arg1[%c0_9, %c0_10] : memref<2x16xf32, #tpu.memory_space<vmem>>, vector<2x16xf32>
    %c640 = arith.constant 640 : index
    %c0_11 = arith.constant 0 : index
    %14 = vector.load %arg2[%c640, %c0_11] : memref<832x128xf32, #tpu.memory_space<vmem>>, vector<16x64xf32>
    %cst_12 = arith.constant dense<0.000000e+00> : vector<2x64xf32>
    %15 = tpu.matmul %13, %14, %cst_12 {dimension_numbers = #tpu.dot_dimension_numbers<[1], [0], [0], [1], [0, 0, 1, 1], [], []>} : vector<2x16xf32>, vector<16x64xf32>, vector<2x64xf32> -> vector<2x64xf32>
    %c2 = arith.constant 2 : index
    %c0_13 = arith.constant 0 : index
    %16 = vector.load %arg3[%c2, %c0_13] : memref<11x128xf32, #tpu.memory_space<vmem>>, vector<1x64xf32>
    %17 = vector.broadcast %16 : vector<1x64xf32> to vector<2x64xf32>
    %18 = arith.addf %15, %17 : vector<2x64xf32>
    %cst_14 = arith.constant 0.000000e+00 : f32
    %19 = vector.broadcast %cst_14 : f32 to vector<2x64xf32>
    %20 = arith.maximumf %18, %19 : vector<2x64xf32>
    %c656 = arith.constant 656 : index
    %c0_15 = arith.constant 0 : index
    %21 = vector.load %arg2[%c656, %c0_15] : memref<832x128xf32, #tpu.memory_space<vmem>>, vector<64x32xf32>
    %cst_16 = arith.constant dense<0.000000e+00> : vector<2x32xf32>
    %22 = tpu.matmul %20, %21, %cst_16 {dimension_numbers = #tpu.dot_dimension_numbers<[1], [0], [0], [1], [0, 0, 1, 1], [], []>} : vector<2x64xf32>, vector<64x32xf32>, vector<2x32xf32> -> vector<2x32xf32>
    %c3 = arith.constant 3 : index
    %c0_17 = arith.constant 0 : index
    %23 = vector.load %arg3[%c3, %c0_17] : memref<11x128xf32, #tpu.memory_space<vmem>>, vector<1x32xf32>
    %24 = vector.broadcast %23 : vector<1x32xf32> to vector<2x32xf32>
    %25 = arith.addf %22, %24 : vector<2x32xf32>
    %cst_18 = arith.constant 0.000000e+00 : f32
    %26 = vector.broadcast %cst_18 : f32 to vector<2x32xf32>
    %27 = arith.maximumf %25, %26 : vector<2x32xf32>
    %c720 = arith.constant 720 : index
    %c0_19 = arith.constant 0 : index
    %28 = vector.load %arg2[%c720, %c0_19] : memref<832x128xf32, #tpu.memory_space<vmem>>, vector<32x16xf32>
    %cst_20 = arith.constant dense<0.000000e+00> : vector<2x16xf32>
    %29 = tpu.matmul %27, %28, %cst_20 {dimension_numbers = #tpu.dot_dimension_numbers<[1], [0], [0], [1], [0, 0, 1, 1], [], []>} : vector<2x32xf32>, vector<32x16xf32>, vector<2x16xf32> -> vector<2x16xf32>
    %c4 = arith.constant 4 : index
    %c0_21 = arith.constant 0 : index
    %30 = vector.load %arg3[%c4, %c0_21] : memref<11x128xf32, #tpu.memory_space<vmem>>, vector<1x16xf32>
    %31 = vector.broadcast %30 : vector<1x16xf32> to vector<2x16xf32>
    %32 = arith.addf %29, %31 : vector<2x16xf32>
    %cst_22 = arith.constant 0.000000e+00 : f32
    %33 = vector.broadcast %cst_22 : f32 to vector<2x16xf32>
    %34 = arith.maximumf %32, %33 : vector<2x16xf32>
    %c752 = arith.constant 752 : index
    %c0_23 = arith.constant 0 : index
    %35 = vector.load %arg2[%c752, %c0_23] : memref<832x128xf32, #tpu.memory_space<vmem>>, vector<16x8xf32>
    %cst_24 = arith.constant dense<0.000000e+00> : vector<2x8xf32>
    %36 = tpu.matmul %34, %35, %cst_24 {dimension_numbers = #tpu.dot_dimension_numbers<[1], [0], [0], [1], [0, 0, 1, 1], [], []>} : vector<2x16xf32>, vector<16x8xf32>, vector<2x8xf32> -> vector<2x8xf32>
    %c5 = arith.constant 5 : index
    %c0_25 = arith.constant 0 : index
    %37 = vector.load %arg3[%c5, %c0_25] : memref<11x128xf32, #tpu.memory_space<vmem>>, vector<1x8xf32>
    %38 = vector.broadcast %37 : vector<1x8xf32> to vector<2x8xf32>
    %39 = arith.addf %36, %38 : vector<2x8xf32>
    %cst_26 = arith.constant 0.000000e+00 : f32
    %40 = vector.broadcast %cst_26 : f32 to vector<2x8xf32>
    %41 = arith.maximumf %39, %40 : vector<2x8xf32>
    %c768 = arith.constant 768 : index
    %c0_27 = arith.constant 0 : index
    %42 = vector.load %arg2[%c768, %c0_27] : memref<832x128xf32, #tpu.memory_space<vmem>>, vector<8x6xf32>
    %cst_28 = arith.constant dense<0.000000e+00> : vector<2x6xf32>
    %43 = tpu.matmul %41, %42, %cst_28 {dimension_numbers = #tpu.dot_dimension_numbers<[1], [0], [0], [1], [0, 0, 1, 1], [], []>} : vector<2x8xf32>, vector<8x6xf32>, vector<2x6xf32> -> vector<2x6xf32>
    %c6 = arith.constant 6 : index
    %c0_29 = arith.constant 0 : index
    %44 = vector.load %arg3[%c6, %c0_29] : memref<11x128xf32, #tpu.memory_space<vmem>>, vector<1x6xf32>
    %45 = vector.broadcast %44 : vector<1x6xf32> to vector<2x6xf32>
    %46 = arith.addf %43, %45 : vector<2x6xf32>
    %c776 = arith.constant 776 : index
    %c0_30 = arith.constant 0 : index
    %47 = vector.load %arg2[%c776, %c0_30] : memref<832x128xf32, #tpu.memory_space<vmem>>, vector<6x12xf32>
    %cst_31 = arith.constant dense<0.000000e+00> : vector<2x12xf32>
    %48 = tpu.matmul %12, %47, %cst_31 {dimension_numbers = #tpu.dot_dimension_numbers<[1], [0], [0], [1], [0, 0, 1, 1], [], []>} : vector<2x6xf32>, vector<6x12xf32>, vector<2x12xf32> -> vector<2x12xf32>
    %c782 = arith.constant 782 : index
    %c0_32 = arith.constant 0 : index
    %49 = vector.load %arg2[%c782, %c0_32] : memref<832x128xf32, #tpu.memory_space<vmem>>, vector<6x12xf32>
    %cst_33 = arith.constant dense<0.000000e+00> : vector<2x12xf32>
    %50 = tpu.matmul %46, %49, %cst_33 {dimension_numbers = #tpu.dot_dimension_numbers<[1], [0], [0], [1], [0, 0, 1, 1], [], []>} : vector<2x6xf32>, vector<6x12xf32>, vector<2x12xf32> -> vector<2x12xf32>
    %51 = arith.addf %48, %50 : vector<2x12xf32>
    %c7 = arith.constant 7 : index
    %c0_34 = arith.constant 0 : index
    %52 = vector.load %arg3[%c7, %c0_34] : memref<11x128xf32, #tpu.memory_space<vmem>>, vector<1x12xf32>
    %53 = vector.broadcast %52 : vector<1x12xf32> to vector<2x12xf32>
    %54 = arith.addf %51, %53 : vector<2x12xf32>
    %c792 = arith.constant 792 : index
    %c0_35 = arith.constant 0 : index
    %55 = vector.load %arg2[%c792, %c0_35] : memref<832x128xf32, #tpu.memory_space<vmem>>, vector<12x12xf32>
    %cst_36 = arith.constant dense<0.000000e+00> : vector<2x12xf32>
    %56 = tpu.matmul %54, %55, %cst_36 {dimension_numbers = #tpu.dot_dimension_numbers<[1], [0], [0], [1], [0, 0, 1, 1], [], []>} : vector<2x12xf32>, vector<12x12xf32>, vector<2x12xf32> -> vector<2x12xf32>
    %c8 = arith.constant 8 : index
    %c0_37 = arith.constant 0 : index
    %57 = vector.load %arg3[%c8, %c0_37] : memref<11x128xf32, #tpu.memory_space<vmem>>, vector<1x12xf32>
    %58 = vector.broadcast %57 : vector<1x12xf32> to vector<2x12xf32>
    %59 = arith.addf %56, %58 : vector<2x12xf32>
    %c808 = arith.constant 808 : index
    %c0_38 = arith.constant 0 : index
    %60 = vector.load %arg2[%c808, %c0_38] : memref<832x128xf32, #tpu.memory_space<vmem>>, vector<12x2xf32>
    %cst_39 = arith.constant dense<0.000000e+00> : vector<2x2xf32>
    %61 = tpu.matmul %59, %60, %cst_39 {dimension_numbers = #tpu.dot_dimension_numbers<[1], [0], [0], [1], [0, 0, 1, 1], [], []>} : vector<2x12xf32>, vector<12x2xf32>, vector<2x2xf32> -> vector<2x2xf32>
    %c9 = arith.constant 9 : index
    %c0_40 = arith.constant 0 : index
    %62 = vector.load %arg3[%c9, %c0_40] : memref<11x128xf32, #tpu.memory_space<vmem>>, vector<1x2xf32>
    %63 = vector.broadcast %62 : vector<1x2xf32> to vector<2x2xf32>
    %64 = arith.addf %61, %63 : vector<2x2xf32>
    %cst_41 = arith.constant dense<0xFF800000> : vector<2xf32>
    %65 = vector.multi_reduction <maximumf>, %64, %cst_41 [1] : vector<2x2xf32> to vector<2xf32>
    %66 = vector.shape_cast %65 : vector<2xf32> to vector<2x1xf32>
    %67 = vector.broadcast %66 : vector<2x1xf32> to vector<2x2xf32>
    %68 = arith.subf %64, %67 : vector<2x2xf32>
    %69 = math.exp %68 : vector<2x2xf32>
    %cst_42 = arith.constant dense<0.000000e+00> : vector<2xf32>
    %70 = vector.multi_reduction <add>, %69, %cst_42 [1] : vector<2x2xf32> to vector<2xf32>
    %71 = vector.shape_cast %70 : vector<2xf32> to vector<2x1xf32>
    %72 = vector.broadcast %71 : vector<2x1xf32> to vector<2x2xf32>
    %73 = arith.divf %69, %72 : vector<2x2xf32>
    %74 = vector.extract_strided_slice %73 {offsets = [0, 0], sizes = [2, 1], strides = [1, 1]} : vector<2x2xf32> to vector<2x1xf32>
    %75 = vector.broadcast %74 : vector<2x1xf32> to vector<2x6xf32>
    %76 = arith.mulf %75, %12 : vector<2x6xf32>
    %77 = vector.extract_strided_slice %73 {offsets = [0, 1], sizes = [2, 1], strides = [1, 1]} : vector<2x2xf32> to vector<2x1xf32>
    %78 = vector.broadcast %77 : vector<2x1xf32> to vector<2x6xf32>
    %79 = arith.mulf %78, %46 : vector<2x6xf32>
    %80 = arith.addf %76, %79 : vector<2x6xf32>
    %c824 = arith.constant 824 : index
    %c0_43 = arith.constant 0 : index
    %81 = vector.load %arg2[%c824, %c0_43] : memref<832x128xf32, #tpu.memory_space<vmem>>, vector<6x5xf32>
    %cst_44 = arith.constant dense<0.000000e+00> : vector<2x5xf32>
    %82 = tpu.matmul %80, %81, %cst_44 {dimension_numbers = #tpu.dot_dimension_numbers<[1], [0], [0], [1], [0, 0, 1, 1], [], []>} : vector<2x6xf32>, vector<6x5xf32>, vector<2x5xf32> -> vector<2x5xf32>
    %c10 = arith.constant 10 : index
    %c0_45 = arith.constant 0 : index
    %83 = vector.load %arg3[%c10, %c0_45] : memref<11x128xf32, #tpu.memory_space<vmem>>, vector<1x5xf32>
    %84 = vector.broadcast %83 : vector<1x5xf32> to vector<2x5xf32>
    %85 = arith.addf %82, %84 : vector<2x5xf32>
    %c0_46 = arith.constant 0 : index
    %c0_47 = arith.constant 0 : index
    %86 = vector.load %arg4[%c0_46, %c0_47] : memref<2x5xf32, #tpu.memory_space<vmem>>, vector<2x5xf32>
    tpu.vector_store %arg4[%c0_46, %c0_47], %85 {strides = array<i32>} : memref<2x5xf32, #tpu.memory_space<vmem>>, vector<2x5xf32>,
    return
  }
}

</mosaic_0001>

<llo_original>
// kernel: multimodal_forward.4
$region0: #{multimodal_forward.4}
  #allocation0 [shape = 'u32[]', space=smem, size = 0x4, offset = 0x4, fixed_abs, tag = 'smem constant byte address 0x4 - core index']
  #allocation1 [shape = 'u32[72,128]{1,0:T(1,128)}', space=vmem, size = 0x9000, scoped, tag = 'internal scratch']
  %s0 = inlined_call_operand.vmem [shape: f32[2,10,10,16], index: 0, kind: input, shape index: {}]
  %s1 = inlined_call_operand.vmem [shape: f32[9,16,32], index: 1, kind: input, shape index: {}]
  %s2 = inlined_call_operand.vmem [shape: f32[1,32], index: 2, kind: input, shape index: {}]
  %s3 = inlined_call_operand.vmem [shape: f32[2,4,4,32], index: 3, kind: output, shape index: {}]
  %s4 = sld [smem:[#allocation0]]
  $region45: #{multimodal_forward.4} parent=0
    _
  %s6 = ssub.s32 1, %s4
  %s7 = scalar_select 0, %s6, %s4
  loop: start=0, step=1, limit=4
  $region2: #{multimodal_forward.4} parent=0 // loop_pre_header
    _
  $region3: #{multimodal_forward.4} parent=0 // loop_header
    %s9 = sphi 0, %s13
    %p10 = scmp.ge.s32.totalorder %s9, 4
    %s19 = sphi 0, %s21
    %s22 = sphi 0, %s19
    %s23 = sphi 0, %s22
    %s39 = sphi 0, %s23
    %s43 = sphi 0, %s43
    %s45 = sphi 0, %s43
    %s46 = sphi 0, %s45
    %s60 = sphi 0, %s46
    %s64 = sphi 0, %s64
    %s66 = sphi 0, %s64
    %s67 = sphi 0, %s66
    %s81 = sphi 0, %s67
    %s87 = sphi 0, %s89
    %s90 = sphi 0, %s87
    %s91 = sphi 0, %s90
    %s107 = sphi 0, %s91
  $region4: #{multimodal_forward.4} parent=0 // loop_header_branch
    %12 = sbr.rel (%p10) target = $region8
  $region5: #{multimodal_forward.4} parent=0 // loop_body
    %s14 = ssub.s32 %s9, 1
    %s15 = ssub.s32 %s9, 2
    %s16 = sadd.s32 %s9, 1
    %s17 = ssub.s32 %s9, %s16
    %p18 = scmp.eq.s32.totalorder %s17, 0
    %s20 = sadd.s32 %s19, 1
    %s21 = scalar_select %p18, %s19, %s20
    %p24 = pneg %p18
    %p25 = scmp.eq.s32.totalorder %s9, 1
    %p26 = por %p24, %p25
    %p27 = scmp.ne.s32.totalorder %s19, %s22
    %p28 = scmp.eq.s32.totalorder %s9, 0
    %p29 = por %p27, %p28
    %p30 = scmp.ne.s32.totalorder %s19, %s22
    %p31 = scmp.eq.s32.totalorder %s14, 1
    %p32 = por %p30, %p31
    %p33 = scmp.ne.s32.totalorder %s22, %s23
    %p34 = scmp.eq.s32.totalorder %s14, 0
    %p35 = por %p33, %p34
    %p36 = scmp.ne.s32.totalorder %s22, %s23
    %p37 = scmp.eq.s32.totalorder %s15, 1
    %p38 = por %p36, %p37
    %p40 = scmp.ne.s32.totalorder %s23, %s39
    %p41 = scmp.eq.s32.totalorder %s15, 0
    %p42 = por %p40, %p41
    %s44 = sadd.s32 %s43, 1
    %p47 = scmp.eq.s32.totalorder %s9, 1
    %p48 = scmp.ne.s32.totalorder %s43, %s45
    %p49 = scmp.eq.s32.totalorder %s9, 0
    %p50 = por %p48, %p49
    %p51 = scmp.ne.s32.totalorder %s43, %s45
    %p52 = scmp.eq.s32.totalorder %s14, 1
    %p53 = por %p51, %p52
    %p54 = scmp.ne.s32.totalorder %s45, %s46
    %p55 = scmp.eq.s32.totalorder %s14, 0
    %p56 = por %p54, %p55
    %p57 = scmp.ne.s32.totalorder %s45, %s46
    %p58 = scmp.eq.s32.totalorder %s15, 1
    %p59 = por %p57, %p58
    %p61 = scmp.ne.s32.totalorder %s46, %s60
    %p62 = scmp.eq.s32.totalorder %s15, 0
    %p63 = por %p61, %p62
    %s65 = sadd.s32 %s64, 1
    %p68 = scmp.eq.s32.totalorder %s9, 1
    %p69 = scmp.ne.s32.totalorder %s64, %s66
    %p70 = scmp.eq.s32.totalorder %s9, 0
    %p71 = por %p69, %p70
    %p72 = scmp.ne.s32.totalorder %s64, %s66
    %p73 = scmp.eq.s32.totalorder %s14, 1
    %p74 = por %p72, %p73
    %p75 = scmp.ne.s32.totalorder %s66, %s67
    %p76 = scmp.eq.s32.totalorder %s14, 0
    %p77 = por %p75, %p76
    %p78 = scmp.ne.s32.totalorder %s66, %s67
    %p79 = scmp.eq.s32.totalorder %s15, 1
    %p80 = por %p78, %p79
    %p82 = scmp.ne.s32.totalorder %s67, %s81
    %p83 = scmp.eq.s32.totalorder %s15, 0
    %p84 = por %p82, %p83
    %s85 = ssub.s32 %s9, %s16
    %p86 = scmp.eq.s32.totalorder %s85, 0
    %s88 = sadd.s32 %s87, 1
    %s89 = scalar_select %p86, %s87, %s88
    %p92 = pneg %p86
    %p93 = scmp.eq.s32.totalorder %s9, 1
    %p94 = por %p92, %p93
    %p95 = scmp.ne.s32.totalorder %s87, %s90
    %p96 = scmp.eq.s32.totalorder %s9, 0
    %p97 = por %p95, %p96
    %p98 = scmp.ne.s32.totalorder %s87, %s90
    %p99 = scmp.eq.s32.totalorder %s14, 1
    %p100 = por %p98, %p99
    %p101 = scmp.ne.s32.totalorder %s90, %s91
    %p102 = scmp.eq.s32.totalorder %s14, 0
    %p103 = por %p101, %p102
    %p104 = scmp.ne.s32.totalorder %s90, %s91
    %p105 = scmp.eq.s32.totalorder %s15, 1
    %p106 = por %p104, %p105
    %p108 = scmp.ne.s32.totalorder %s91, %s107
    %p109 = scmp.eq.s32.totalorder %s15, 0
    %p110 = por %p108, %p109
    %p111 = scmp.le.s32.totalorder 1, %s9
    %p112 = scmp.lt.s32.totalorder %s9, 3
    %p113 = pnand %p111, %p112
    %p114 = pneg %p113
    // Predicated region
    $region9: #{multimodal_forward.4} parent=5 // pred_check
      _
    $region10: #{multimodal_forward.4} parent=5 // pred_check_branch
      %116 = sbr.rel (%p113) target = $region12
    $region11: #{multimodal_forward.4} parent=5 // pred_region
      %s117 = ssub.s32 %s9, 1
      // Predicated region
      $region13: #{multimodal_forward.4} parent=11 // pred_check
        %p118 = pneg %p56
      $region14: #{multimodal_forward.4} parent=11 // pred_check_branch
        %120 = sbr.rel (%p118) target = $region16
      $region15: #{multimodal_forward.4} parent=11 // pred_region
        _
      $region16: #{multimodal_forward.4} parent=11 // pred_fallthru
        _
      // Predicated region
      $region17: #{multimodal_forward.4} parent=11 // pred_check
        %p121 = pneg %p77
      $region18: #{multimodal_forward.4} parent=11 // pred_check_branch
        %123 = sbr.rel (%p121) target = $region20
      $region19: #{multimodal_forward.4} parent=11 // pred_region
        _
      $region20: #{multimodal_forward.4} parent=11 // pred_fallthru
        _
    $region12: #{multimodal_forward.4} parent=5 // pred_fallthru
      _
    %p124 = scmp.lt.s32.totalorder %s9, 2
    // Predicated region
    $region21: #{multimodal_forward.4} parent=5 // pred_check
      %p125 = pneg %p124
    $region22: #{multimodal_forward.4} parent=5 // pred_check_branch
      %127 = sbr.rel (%p125) target = $region24
    $region23: #{multimodal_forward.4} parent=5 // pred_region
      // Predicated region
      $region25: #{multimodal_forward.4} parent=23 // pred_check
        %p128 = pneg %p29
      $region26: #{multimodal_forward.4} parent=23 // pred_check_branch
        %130 = sbr.rel (%p128) target = $region28
      $region27: #{multimodal_forward.4} parent=23 // pred_region
        %p131 = scmp.lt.s32.totalorder %s9, 1
        %s132 = scalar_select %p131, %s9, 1
        %s133 = smul.addr %s132, 20
        %s134 = smul.addr %s133, 8
        %s135 = scalar_lea.vmem %s0, %s134
      $region28: #{multimodal_forward.4} parent=23 // pred_fallthru
        _
    $region24: #{multimodal_forward.4} parent=5 // pred_fallthru
      _
    %p136 = scmp.le.s32.totalorder 1, %s9
    %p137 = scmp.lt.s32.totalorder %s9, 3
    %p138 = pnand %p136, %p137
    %p139 = pneg %p138
    // Predicated region
    $region29: #{multimodal_forward.4} parent=5 // pred_check
      _
    $region30: #{multimodal_forward.4} parent=5 // pred_check_branch
      %141 = sbr.rel (%p138) target = $region32
    $region31: #{multimodal_forward.4} parent=5 // pred_region
      %s142 = ssub.s32 %s9, 1
      %p143 = scmp.lt.s32.totalorder %s14, 1
      %s144 = scalar_select %p143, %s14, 1
      %s145 = smul.addr %s144, 20
      %s146 = smul.addr %s145, 8
      %s147 = scalar_lea.vmem %s0, %s146
      %p148 = pneg %p35
      %p149 = pneg %p32
      %p150 = pneg %p56
      %p151 = pneg %p53
      %p152 = pneg %p77
      %p153 = pneg %p74
      %p154 = pneg %p103
      %p155 = pneg %p100
      %p156 = scmp.lt.s32.totalorder %s14, 1
      %s157 = scalar_select %p156, %s14, 1
      %s158 = smul.addr %s157, 4
      %s159 = smul.addr %s158, 4
      %s160 = scalar_lea.vmem %s3, %s159
      %p161 = scmp.lt.s32.totalorder %s14, 1
      %s162 = scalar_select %p161, %s14, 1
      %s163 = smul.addr %s162, 20
      %s164 = smul.addr %s163, 8
      %s165 = scalar_lea.vmem %s0, %s164
      %p166 = scmp.lt.s32.totalorder %s14, 1
      %s167 = scalar_select %p166, %s14, 1
      %s168 = smul.addr %s167, 4
      %s169 = smul.addr %s168, 4
      %s170 = scalar_lea.vmem %s3, %s169
      %v171 = vld [vmem:[%s165] sm:$0xff]
      %v172 = vld [vmem:[%s165 + $0x8] sm:$0x3]
      %v173 = vld [vmem:[%s165 + $0x10] sm:$0xff]
      %v174 = vld [vmem:[%s165 + $0x18] sm:$0x3]
      %v175 = vld [vmem:[%s165 + $0x20] sm:$0xff]
      %v176 = vld [vmem:[%s165 + $0x28] sm:$0x3]
      %v177 = vld [vmem:[%s165 + $0x30] sm:$0xff]
      %v178 = vld [vmem:[%s165 + $0x38] sm:$0x3]
      %v179 = vld [vmem:[%s165 + $0x40] sm:$0xff]
      %v180 = vld [vmem:[%s165 + $0x48] sm:$0x3]
      %v181 = vld [vmem:[%s165 + $0x50] sm:$0xff]
      %v182 = vld [vmem:[%s165 + $0x58] sm:$0x3]
      %v183 = vld [vmem:[%s165 + $0x60] sm:$0xff]
      %v184 = vld [vmem:[%s165 + $0x68] sm:$0x3]
      %v185 = vld [vmem:[%s165 + $0x70] sm:$0xff]
      %v186 = vld [vmem:[%s165 + $0x78] sm:$0x3]
      %v187 = vld [vmem:[%s165 + $0x80] sm:$0xff]
      %v188 = vld [vmem:[%s165 + $0x88] sm:$0x3]
      %v189 = vld [vmem:[%s165 + $0x90] sm:$0xff]
      %v190 = vld [vmem:[%s165 + $0x98] sm:$0x3]
      %v191 = vld [vmem:[%s1] sm:$0xff]
      %v192 = vld [vmem:[%s1 + $0x8] sm:$0xff]
      %vm209 = vcmask 1046528
      %v210 = vrot.slane %v171, 1
      %v211 = vrot.slane %v172, 1
      %v212 = vsel %vm209, %v210, %v211
      %v213 = vrot.slane %v173, 1
      %v214 = vrot.slane %v174, 1
      %v215 = vsel %vm209, %v213, %v214
      %v216 = vrot.slane %v175, 1
      %v217 = vrot.slane %v176, 1
      %v218 = vsel %vm209, %v216, %v217
      %v219 = vrot.slane %v177, 1
      %v220 = vrot.slane %v178, 1
      %v221 = vsel %vm209, %v219, %v220
      %v222 = vrot.slane %v179, 1
      %v223 = vrot.slane %v180, 1
      %v224 = vsel %vm209, %v222, %v223
      %v225 = vrot.slane %v181, 1
      %v226 = vrot.slane %v182, 1
      %v227 = vsel %vm209, %v225, %v226
      %v228 = vrot.slane %v183, 1
      %v229 = vrot.slane %v184, 1
      %v230 = vsel %vm209, %v228, %v229
      %v231 = vrot.slane %v185, 1
      %v232 = vrot.slane %v186, 1
      %v233 = vsel %vm209, %v231, %v232
      %s234 = scalar_lea.vmem %s1, 16
      %v235 = vld [vmem:[%s234] sm:$0xff]
      %v236 = vld [vmem:[%s234 + $0x8] sm:$0xff]
      %vm237 = vcmask 130048
      %v238 = vsel %vm237, %v212, 0
      %v240 = vsel %vm237, %v215, 0
      %v242 = vsel %vm237, %v218, 0
      %v244 = vsel %vm237, %v221, 0
      %v246 = vsel %vm237, %v224, 0
      %v248 = vsel %vm237, %v227, 0
      %v250 = vsel %vm237, %v230, 0
      %v252 = vsel %vm237, %v233, 0
      %254 = vmatpush.msra.mxu0 0.0
      %255 = vmatpush.msra.mxu0 0.0
      %256 = vmatpush.msra.mxu0 0.0
      %257 = vmatpush.msra.mxu0 0.0
      %258 = vmatpush.msra.mxu0 0.0
      %259 = vmatpush.msra.mxu0 0.0
      %260 = vmatpush.msra.mxu0 0.0
      %261 = vmatpush.msra.mxu0 0.0
      %262 = vmatpush.msra.mxu0 0.0
      %263 = vmatpush.msra.mxu0 0.0
      %264 = vmatpush.msra.mxu0 0.0
      %265 = vmatpush.msra.mxu0 0.0
      %266 = vmatpush.msra.mxu0 0.0
      %267 = vmatpush.msra.mxu0 0.0
      %268 = vmatpush.msra.mxu0 %v236
      %269 = vmatpush.msra.mxu0 %v235
      %270 = vmatmul.f32.gmra.mxu0 %v238
      %v271 = vpop.f32.mrf.mxu0
      %v272 = vadd.f32 0.0, %v271
      %273 = vmatmul.f32.gmra.mxu0 %v240
      %v274 = vpop.f32.mrf.mxu0
      %v275 = vadd.f32 0.0, %v274
      %276 = vmatmul.f32.gmra.mxu0 %v242
      %v277 = vpop.f32.mrf.mxu0
      %v278 = vadd.f32 0.0, %v277
      %279 = vmatmul.f32.gmra.mxu0 %v244
      %v280 = vpop.f32.mrf.mxu0
      %v281 = vadd.f32 0.0, %v280
      %282 = vmatmul.f32.gmra.mxu0 %v246
      %v283 = vpop.f32.mrf.mxu0
      %v284 = vadd.f32 0.0, %v283
      %285 = vmatmul.f32.gmra.mxu0 %v248
      %v286 = vpop.f32.mrf.mxu0
      %v287 = vadd.f32 0.0, %v286
      %288 = vmatmul.f32.gmra.mxu0 %v250
      %v289 = vpop.f32.mrf.mxu0
      %v290 = vadd.f32 0.0, %v289
      %291 = vmatmul.f32.gmra.mxu0 %v252
      %v292 = vpop.f32.mrf.mxu0
      %v293 = vadd.f32 0.0, %v292
      %294 = vdwg.mxu0
      %v295 = vsel %vm237, %v171, 0
      %v297 = vsel %vm237, %v173, 0
      %v299 = vsel %vm237, %v175, 0
      %v301 = vsel %vm237, %v177, 0
      %v303 = vsel %vm237, %v179, 0
      %v305 = vsel %vm237, %v181, 0
      %v307 = vsel %vm237, %v183, 0
      %v309 = vsel %vm237, %v185, 0
      %311 = vmatpush.msra.mxu0 0.0
      %312 = vmatpush.msra.mxu0 0.0
      %313 = vmatpush.msra.mxu0 0.0
      %314 = vmatpush.msra.mxu0 0.0
      %315 = vmatpush.msra.mxu0 0.0
      %316 = vmatpush.msra.mxu0 0.0
      %317 = vmatpush.msra.mxu0 0.0
      %318 = vmatpush.msra.mxu0 0.0
      %319 = vmatpush.msra.mxu0 0.0
      %320 = vmatpush.msra.mxu0 0.0
      %321 = vmatpush.msra.mxu0 0.0
      %322 = vmatpush.msra.mxu0 0.0
      %323 = vmatpush.msra.mxu0 0.0
      %324 = vmatpush.msra.mxu0 0.0
      %325 = vmatpush.msra.mxu0 %v192
      %326 = vmatpush.msra.mxu0 %v191
      %327 = vmatmul.f32.gmra.mxu0 %v295
      %v328 = vpop.f32.mrf.mxu0
      %v329 = vadd.f32 %v272, %v328
      %330 = vmatmul.f32.gmra.mxu0 %v297
      %v331 = vpop.f32.mrf.mxu0
      %v332 = vadd.f32 %v275, %v331
      %333 = vmatmul.f32.gmra.mxu0 %v299
      %v334 = vpop.f32.mrf.mxu0
      %v335 = vadd.f32 %v278, %v334
      %336 = vmatmul.f32.gmra.mxu0 %v301
      %v337 = vpop.f32.mrf.mxu0
      %v338 = vadd.f32 %v281, %v337
      %339 = vmatmul.f32.gmra.mxu0 %v303
      %v340 = vpop.f32.mrf.mxu0
      %v341 = vadd.f32 %v284, %v340
      %342 = vmatmul.f32.gmra.mxu0 %v305
      %v343 = vpop.f32.mrf.mxu0
      %v344 = vadd.f32 %v287, %v343
      %345 = vmatmul.f32.gmra.mxu0 %v307
      %v346 = vpop.f32.mrf.mxu0
      %v347 = vadd.f32 %v290, %v346
      %348 = vmatmul.f32.gmra.mxu0 %v309
      %v349 = vpop.f32.mrf.mxu0
      %v350 = vadd.f32 %v293, %v349
      %351 = vdwg.mxu0
      %vm352 = vcmask 1045504
      %v353 = vrot.slane %v171, 2
      %v354 = vrot.slane %v172, 2
      %v355 = vsel %vm352, %v353, %v354
      %v356 = vrot.slane %v173, 2
      %v357 = vrot.slane %v174, 2
      %v358 = vsel %vm352, %v356, %v357
      %v359 = vrot.slane %v175, 2
      %v360 = vrot.slane %v176, 2
      %v361 = vsel %vm352, %v359, %v360
      %v362 = vrot.slane %v177, 2
      %v363 = vrot.slane %v178, 2
      %v364 = vsel %vm352, %v362, %v363
      %v365 = vrot.slane %v179, 2
      %v366 = vrot.slane %v180, 2
      %v367 = vsel %vm352, %v365, %v366
      %v368 = vrot.slane %v181, 2
      %v369 = vrot.slane %v182, 2
      %v370 = vsel %vm352, %v368, %v369
      %v371 = vrot.slane %v183, 2
      %v372 = vrot.slane %v184, 2
      %v373 = vsel %vm352, %v371, %v372
      %v374 = vrot.slane %v185, 2
      %v375 = vrot.slane %v186, 2
      %v376 = vsel %vm352, %v374, %v375
      %s377 = scalar_lea.vmem %s1, 32
      %v378 = vld [vmem:[%s377] sm:$0xff]
      %v379 = vld [vmem:[%s377 + $0x8] sm:$0xff]
      %v380 = vsel %vm237, %v355, 0
      %v382 = vsel %vm237, %v358, 0
      %v384 = vsel %vm237, %v361, 0
      %v386 = vsel %vm237, %v364, 0
      %v388 = vsel %vm237, %v367, 0
      %v390 = vsel %vm237, %v370, 0
      %v392 = vsel %vm237, %v373, 0
      %v394 = vsel %vm237, %v376, 0
      %396 = vmatpush.msra.mxu0 0.0
      %397 = vmatpush.msra.mxu0 0.0
      %398 = vmatpush.msra.mxu0 0.0
      %399 = vmatpush.msra.mxu0 0.0
      %400 = vmatpush.msra.mxu0 0.0
      %401 = vmatpush.msra.mxu0 0.0
      %402 = vmatpush.msra.mxu0 0.0
      %403 = vmatpush.msra.mxu0 0.0
      %404 = vmatpush.msra.mxu0 0.0
      %405 = vmatpush.msra.mxu0 0.0
      %406 = vmatpush.msra.mxu0 0.0
      %407 = vmatpush.msra.mxu0 0.0
      %408 = vmatpush.msra.mxu0 0.0
      %409 = vmatpush.msra.mxu0 0.0
      %410 = vmatpush.msra.mxu0 %v379
      %411 = vmatpush.msra.mxu0 %v378
      %412 = vmatmul.f32.gmra.mxu0 %v380
      %v413 = vpop.f32.mrf.mxu0
      %v414 = vadd.f32 0.0, %v413
      %415 = vmatmul.f32.gmra.mxu0 %v382
      %v416 = vpop.f32.mrf.mxu0
      %v417 = vadd.f32 0.0, %v416
      %418 = vmatmul.f32.gmra.mxu0 %v384
      %v419 = vpop.f32.mrf.mxu0
      %v420 = vadd.f32 0.0, %v419
      %421 = vmatmul.f32.gmra.mxu0 %v386
      %v422 = vpop.f32.mrf.mxu0
      %v423 = vadd.f32 0.0, %v422
      %424 = vmatmul.f32.gmra.mxu0 %v388
      %v425 = vpop.f32.mrf.mxu0
      %v426 = vadd.f32 0.0, %v425
      %427 = vmatmul.f32.gmra.mxu0 %v390
      %v428 = vpop.f32.mrf.mxu0
      %v429 = vadd.f32 0.0, %v428
      %430 = vmatmul.f32.gmra.mxu0 %v392
      %v431 = vpop.f32.mrf.mxu0
      %v432 = vadd.f32 0.0, %v431
      %433 = vmatmul.f32.gmra.mxu0 %v394
      %v434 = vpop.f32.mrf.mxu0
      %v435 = vadd.f32 0.0, %v434
      %436 = vdwg.mxu0
      %v437 = vadd.f32 %v329, %v414
      %v438 = vadd.f32 %v332, %v417
      %v439 = vadd.f32 %v335, %v420
      %v440 = vadd.f32 %v338, %v423
      %v441 = vadd.f32 %v341, %v426
      %v442 = vadd.f32 %v344, %v429
      %v443 = vadd.f32 %v347, %v432
      %v444 = vadd.f32 %v350, %v435
      %s445 = scalar_lea.vmem %s1, 48
      %v446 = vld [vmem:[%s445] sm:$0xff]
      %v447 = vld [vmem:[%s445 + $0x8] sm:$0xff]
      %v449 = vsel %vm237, %v187, 0
      %451 = vmatpush.msra.mxu0 0.0
      %452 = vmatpush.msra.mxu0 0.0
      %453 = vmatpush.msra.mxu0 0.0
      %454 = vmatpush.msra.mxu0 0.0
      %455 = vmatpush.msra.mxu0 0.0
      %456 = vmatpush.msra.mxu0 0.0
      %457 = vmatpush.msra.mxu0 0.0
      %458 = vmatpush.msra.mxu0 0.0
      %459 = vmatpush.msra.mxu0 0.0
      %460 = vmatpush.msra.mxu0 0.0
      %461 = vmatpush.msra.mxu0 0.0
      %462 = vmatpush.msra.mxu0 0.0
      %463 = vmatpush.msra.mxu0 0.0
      %464 = vmatpush.msra.mxu0 0.0
      %465 = vmatpush.msra.mxu0 %v447
      %466 = vmatpush.msra.mxu0 %v446
      %467 = vmatmul.f32.gmra.mxu0 %v297
      %v468 = vpop.f32.mrf.mxu0
      %v469 = vadd.f32 0.0, %v468
      %470 = vmatmul.f32.gmra.mxu0 %v299
      %v471 = vpop.f32.mrf.mxu0
      %v472 = vadd.f32 0.0, %v471
      %473 = vmatmul.f32.gmra.mxu0 %v301
      %v474 = vpop.f32.mrf.mxu0
      %v475 = vadd.f32 0.0, %v474
      %476 = vmatmul.f32.gmra.mxu0 %v303
      %v477 = vpop.f32.mrf.mxu0
      %v478 = vadd.f32 0.0, %v477
      %479 = vmatmul.f32.gmra.mxu0 %v305
      %v480 = vpop.f32.mrf.mxu0
      %v481 = vadd.f32 0.0, %v480
      %482 = vmatmul.f32.gmra.mxu0 %v307
      %v483 = vpop.f32.mrf.mxu0
      %v484 = vadd.f32 0.0, %v483
      %485 = vmatmul.f32.gmra.mxu0 %v309
      %v486 = vpop.f32.mrf.mxu0
      %v487 = vadd.f32 0.0, %v486
      %488 = vmatmul.f32.gmra.mxu0 %v449
      %v489 = vpop.f32.mrf.mxu0
      %v490 = vadd.f32 0.0, %v489
      %491 = vdwg.mxu0
      %v492 = vadd.f32 %v437, %v469
      %v493 = vadd.f32 %v438, %v472
      %v494 = vadd.f32 %v439, %v475
      %v495 = vadd.f32 %v440, %v478
      %v496 = vadd.f32 %v441, %v481
      %v497 = vadd.f32 %v442, %v484
      %v498 = vadd.f32 %v443, %v487
      %v499 = vadd.f32 %v444, %v490
      %v501 = vrot.slane %v187, 1
      %v502 = vrot.slane %v188, 1
      %v503 = vsel %vm209, %v501, %v502
      %s504 = scalar_lea.vmem %s1, 64
      %v505 = vld [vmem:[%s504] sm:$0xff]
      %v506 = vld [vmem:[%s504 + $0x8] sm:$0xff]
      %v507 = vsel %vm237, %v503, 0
      %509 = vmatpush.msra.mxu0 0.0
      %510 = vmatpush.msra.mxu0 0.0
      %511 = vmatpush.msra.mxu0 0.0
      %512 = vmatpush.msra.mxu0 0.0
      %513 = vmatpush.msra.mxu0 0.0
      %514 = vmatpush.msra.mxu0 0.0
      %515 = vmatpush.msra.mxu0 0.0
      %516 = vmatpush.msra.mxu0 0.0
      %517 = vmatpush.msra.mxu0 0.0
      %518 = vmatpush.msra.mxu0 0.0
      %519 = vmatpush.msra.mxu0 0.0
      %520 = vmatpush.msra.mxu0 0.0
      %521 = vmatpush.msra.mxu0 0.0
      %522 = vmatpush.msra.mxu0 0.0
      %523 = vmatpush.msra.mxu0 %v506
      %524 = vmatpush.msra.mxu0 %v505
      %525 = vmatmul.f32.gmra.mxu0 %v240
      %v526 = vpop.f32.mrf.mxu0
      %v527 = vadd.f32 0.0, %v526
      %528 = vmatmul.f32.gmra.mxu0 %v242
      %v529 = vpop.f32.mrf.mxu0
      %v530 = vadd.f32 0.0, %v529
      %531 = vmatmul.f32.gmra.mxu0 %v244
      %v532 = vpop.f32.mrf.mxu0
      %v533 = vadd.f32 0.0, %v532
      %534 = vmatmul.f32.gmra.mxu0 %v246
      %v535 = vpop.f32.mrf.mxu0
      %v536 = vadd.f32 0.0, %v535
      %537 = vmatmul.f32.gmra.mxu0 %v248
      %v538 = vpop.f32.mrf.mxu0
      %v539 = vadd.f32 0.0, %v538
      %540 = vmatmul.f32.gmra.mxu0 %v250
      %v541 = vpop.f32.mrf.mxu0
      %v542 = vadd.f32 0.0, %v541
      %543 = vmatmul.f32.gmra.mxu0 %v252
      %v544 = vpop.f32.mrf.mxu0
      %v545 = vadd.f32 0.0, %v544
      %546 = vmatmul.f32.gmra.mxu0 %v507
      %v547 = vpop.f32.mrf.mxu0
      %v548 = vadd.f32 0.0, %v547
      %549 = vdwg.mxu0
      %v550 = vadd.f32 %v492, %v527
      %v551 = vadd.f32 %v493, %v530
      %v552 = vadd.f32 %v494, %v533
      %v553 = vadd.f32 %v495, %v536
      %v554 = vadd.f32 %v496, %v539
      %v555 = vadd.f32 %v497, %v542
      %v556 = vadd.f32 %v498, %v545
      %v557 = vadd.f32 %v499, %v548
      %v558 = vrot.slane %v187, 2
      %v559 = vrot.slane %v188, 2
      %v560 = vsel %vm352, %v558, %v559
      %s561 = scalar_lea.vmem %s1, 80
      %v562 = vld [vmem:[%s561] sm:$0xff]
      %v563 = vld [vmem:[%s561 + $0x8] sm:$0xff]
      %v564 = vsel %vm237, %v560, 0
      %566 = vmatpush.msra.mxu0 0.0
      %567 = vmatpush.msra.mxu0 0.0
      %568 = vmatpush.msra.mxu0 0.0
      %569 = vmatpush.msra.mxu0 0.0
      %570 = vmatpush.msra.mxu0 0.0
      %571 = vmatpush.msra.mxu0 0.0
      %572 = vmatpush.msra.mxu0 0.0
      %573 = vmatpush.msra.mxu0 0.0
      %574 = vmatpush.msra.mxu0 0.0
      %575 = vmatpush.msra.mxu0 0.0
      %576 = vmatpush.msra.mxu0 0.0
      %577 = vmatpush.msra.mxu0 0.0
      %578 = vmatpush.msra.mxu0 0.0
      %579 = vmatpush.msra.mxu0 0.0
      %580 = vmatpush.msra.mxu0 %v563
      %581 = vmatpush.msra.mxu0 %v562
      %582 = vmatmul.f32.gmra.mxu0 %v382
      %v583 = vpop.f32.mrf.mxu0
      %v584 = vadd.f32 0.0, %v583
      %585 = vmatmul.f32.gmra.mxu0 %v384
      %v586 = vpop.f32.mrf.mxu0
      %v587 = vadd.f32 0.0, %v586
      %588 = vmatmul.f32.gmra.mxu0 %v386
      %v589 = vpop.f32.mrf.mxu0
      %v590 = vadd.f32 0.0, %v589
      %591 = vmatmul.f32.gmra.mxu0 %v388
      %v592 = vpop.f32.mrf.mxu0
      %v593 = vadd.f32 0.0, %v592
      %594 = vmatmul.f32.gmra.mxu0 %v390
      %v595 = vpop.f32.mrf.mxu0
      %v596 = vadd.f32 0.0, %v595
      %597 = vmatmul.f32.gmra.mxu0 %v392
      %v598 = vpop.f32.mrf.mxu0
      %v599 = vadd.f32 0.0, %v598
      %600 = vmatmul.f32.gmra.mxu0 %v394
      %v601 = vpop.f32.mrf.mxu0
      %v602 = vadd.f32 0.0, %v601
      %603 = vmatmul.f32.gmra.mxu0 %v564
      %v604 = vpop.f32.mrf.mxu0
      %v605 = vadd.f32 0.0, %v604
      %606 = vdwg.mxu0
      %v607 = vadd.f32 %v550, %v584
      %v608 = vadd.f32 %v551, %v587
      %v609 = vadd.f32 %v552, %v590
      %v610 = vadd.f32 %v553, %v593
      %v611 = vadd.f32 %v554, %v596
      %v612 = vadd.f32 %v555, %v599
      %v613 = vadd.f32 %v556, %v602
      %v614 = vadd.f32 %v557, %v605
      %s615 = scalar_lea.vmem %s1, 96
      %v616 = vld [vmem:[%s615] sm:$0xff]
      %v617 = vld [vmem:[%s615 + $0x8] sm:$0xff]
      %v619 = vsel %vm237, %v189, 0
      %621 = vmatpush.msra.mxu0 0.0
      %622 = vmatpush.msra.mxu0 0.0
      %623 = vmatpush.msra.mxu0 0.0
      %624 = vmatpush.msra.mxu0 0.0
      %625 = vmatpush.msra.mxu0 0.0
      %626 = vmatpush.msra.mxu0 0.0
      %627 = vmatpush.msra.mxu0 0.0
      %628 = vmatpush.msra.mxu0 0.0
      %629 = vmatpush.msra.mxu0 0.0
      %630 = vmatpush.msra.mxu0 0.0
      %631 = vmatpush.msra.mxu0 0.0
      %632 = vmatpush.msra.mxu0 0.0
      %633 = vmatpush.msra.mxu0 0.0
      %634 = vmatpush.msra.mxu0 0.0
      %635 = vmatpush.msra.mxu0 %v617
      %636 = vmatpush.msra.mxu0 %v616
      %637 = vmatmul.f32.gmra.mxu0 %v299
      %v638 = vpop.f32.mrf.mxu0
      %v639 = vadd.f32 0.0, %v638
      %640 = vmatmul.f32.gmra.mxu0 %v301
      %v641 = vpop.f32.mrf.mxu0
      %v642 = vadd.f32 0.0, %v641
      %643 = vmatmul.f32.gmra.mxu0 %v303
      %v644 = vpop.f32.mrf.mxu0
      %v645 = vadd.f32 0.0, %v644
      %646 = vmatmul.f32.gmra.mxu0 %v305
      %v647 = vpop.f32.mrf.mxu0
      %v648 = vadd.f32 0.0, %v647
      %649 = vmatmul.f32.gmra.mxu0 %v307
      %v650 = vpop.f32.mrf.mxu0
      %v651 = vadd.f32 0.0, %v650
      %652 = vmatmul.f32.gmra.mxu0 %v309
      %v653 = vpop.f32.mrf.mxu0
      %v654 = vadd.f32 0.0, %v653
      %655 = vmatmul.f32.gmra.mxu0 %v449
      %v656 = vpop.f32.mrf.mxu0
      %v657 = vadd.f32 0.0, %v656
      %658 = vmatmul.f32.gmra.mxu0 %v619
      %v659 = vpop.f32.mrf.mxu0
      %v660 = vadd.f32 0.0, %v659
      %661 = vdwg.mxu0
      %v662 = vadd.f32 %v607, %v639
      %v663 = vadd.f32 %v608, %v642
      %v664 = vadd.f32 %v609, %v645
      %v665 = vadd.f32 %v610, %v648
      %v666 = vadd.f32 %v611, %v651
      %v667 = vadd.f32 %v612, %v654
      %v668 = vadd.f32 %v613, %v657
      %v669 = vadd.f32 %v614, %v660
      %v671 = vrot.slane %v189, 1
      %v672 = vrot.slane %v190, 1
      %v673 = vsel %vm209, %v671, %v672
      %s674 = scalar_lea.vmem %s1, 112
      %v675 = vld [vmem:[%s674] sm:$0xff]
      %v676 = vld [vmem:[%s674 + $0x8] sm:$0xff]
      %v677 = vsel %vm237, %v673, 0
      %679 = vmatpush.msra.mxu0 0.0
      %680 = vmatpush.msra.mxu0 0.0
      %681 = vmatpush.msra.mxu0 0.0
      %682 = vmatpush.msra.mxu0 0.0
      %683 = vmatpush.msra.mxu0 0.0
      %684 = vmatpush.msra.mxu0 0.0
      %685 = vmatpush.msra.mxu0 0.0
      %686 = vmatpush.msra.mxu0 0.0
      %687 = vmatpush.msra.mxu0 0.0
      %688 = vmatpush.msra.mxu0 0.0
      %689 = vmatpush.msra.mxu0 0.0
      %690 = vmatpush.msra.mxu0 0.0
      %691 = vmatpush.msra.mxu0 0.0
      %692 = vmatpush.msra.mxu0 0.0
      %693 = vmatpush.msra.mxu0 %v676
      %694 = vmatpush.msra.mxu0 %v675
      %695 = vmatmul.f32.gmra.mxu0 %v242
      %v696 = vpop.f32.mrf.mxu0
      %v697 = vadd.f32 0.0, %v696
      %698 = vmatmul.f32.gmra.mxu0 %v244
      %v699 = vpop.f32.mrf.mxu0
      %v700 = vadd.f32 0.0, %v699
      %701 = vmatmul.f32.gmra.mxu0 %v246
      %v702 = vpop.f32.mrf.mxu0
      %v703 = vadd.f32 0.0, %v702
      %704 = vmatmul.f32.gmra.mxu0 %v248
      %v705 = vpop.f32.mrf.mxu0
      %v706 = vadd.f32 0.0, %v705
      %707 = vmatmul.f32.gmra.mxu0 %v250
      %v708 = vpop.f32.mrf.mxu0
      %v709 = vadd.f32 0.0, %v708
      %710 = vmatmul.f32.gmra.mxu0 %v252
      %v711 = vpop.f32.mrf.mxu0
      %v712 = vadd.f32 0.0, %v711
      %713 = vmatmul.f32.gmra.mxu0 %v507
      %v714 = vpop.f32.mrf.mxu0
      %v715 = vadd.f32 0.0, %v714
      %716 = vmatmul.f32.gmra.mxu0 %v677
      %v717 = vpop.f32.mrf.mxu0
      %v718 = vadd.f32 0.0, %v717
      %719 = vdwg.mxu0
      %v720 = vadd.f32 %v662, %v697
      %v721 = vadd.f32 %v663, %v700
      %v722 = vadd.f32 %v664, %v703
      %v723 = vadd.f32 %v665, %v706
      %v724 = vadd.f32 %v666, %v709
      %v725 = vadd.f32 %v667, %v712
      %v726 = vadd.f32 %v668, %v715
      %v727 = vadd.f32 %v669, %v718
      %v728 = vrot.slane %v189, 2
      %v729 = vrot.slane %v190, 2
      %v730 = vsel %vm352, %v728, %v729
      %s731 = scalar_lea.vmem %s1, 128
      %v732 = vld [vmem:[%s731] sm:$0xff]
      %v733 = vld [vmem:[%s731 + $0x8] sm:$0xff]
      %v734 = vsel %vm237, %v730, 0
      %736 = vmatpush.msra.mxu0 0.0
      %737 = vmatpush.msra.mxu0 0.0
      %738 = vmatpush.msra.mxu0 0.0
      %739 = vmatpush.msra.mxu0 0.0
      %740 = vmatpush.msra.mxu0 0.0
      %741 = vmatpush.msra.mxu0 0.0
      %742 = vmatpush.msra.mxu0 0.0
      %743 = vmatpush.msra.mxu0 0.0
      %744 = vmatpush.msra.mxu0 0.0
      %745 = vmatpush.msra.mxu0 0.0
      %746 = vmatpush.msra.mxu0 0.0
      %747 = vmatpush.msra.mxu0 0.0
      %748 = vmatpush.msra.mxu0 0.0
      %749 = vmatpush.msra.mxu0 0.0
      %750 = vmatpush.msra.mxu0 %v733
      %751 = vmatpush.msra.mxu0 %v732
      %752 = vmatmul.f32.gmra.mxu0 %v384
      %v753 = vpop.f32.mrf.mxu0
      %v754 = vadd.f32 0.0, %v753
      %755 = vmatmul.f32.gmra.mxu0 %v386
      %v756 = vpop.f32.mrf.mxu0
      %v757 = vadd.f32 0.0, %v756
      %758 = vmatmul.f32.gmra.mxu0 %v388
      %v759 = vpop.f32.mrf.mxu0
      %v760 = vadd.f32 0.0, %v759
      %761 = vmatmul.f32.gmra.mxu0 %v390
      %v762 = vpop.f32.mrf.mxu0
      %v763 = vadd.f32 0.0, %v762
      %764 = vmatmul.f32.gmra.mxu0 %v392
      %v765 = vpop.f32.mrf.mxu0
      %v766 = vadd.f32 0.0, %v765
      %767 = vmatmul.f32.gmra.mxu0 %v394
      %v768 = vpop.f32.mrf.mxu0
      %v769 = vadd.f32 0.0, %v768
      %770 = vmatmul.f32.gmra.mxu0 %v564
      %v771 = vpop.f32.mrf.mxu0
      %v772 = vadd.f32 0.0, %v771
      %773 = vmatmul.f32.gmra.mxu0 %v734
      %v774 = vpop.f32.mrf.mxu0
      %v775 = vadd.f32 0.0, %v774
      %776 = vdwg.mxu0
      %v777 = vadd.f32 %v720, %v754
      %v778 = vadd.f32 %v721, %v757
      %v779 = vadd.f32 %v722, %v760
      %v780 = vadd.f32 %v723, %v763
      %v781 = vadd.f32 %v724, %v766
      %v782 = vadd.f32 %v725, %v769
      %v783 = vadd.f32 %v726, %v772
      %v784 = vadd.f32 %v727, %v775
      %v785 = vld [vmem:[%s2] sm:$0x1]
      %v787 = vperm.slane %v785, 0
      %v789 = vadd.f32 %v777, %v787
      %v790 = vadd.f32 %v778, %v787
      %v791 = vadd.f32 %v779, %v787
      %v792 = vadd.f32 %v780, %v787
      %v793 = vadd.f32 %v781, %v787
      %v794 = vadd.f32 %v782, %v787
      %v795 = vadd.f32 %v783, %v787
      %v796 = vadd.f32 %v784, %v787
      %v797 = vmax.f32 %v789, 0.0
      %v798 = vmax.f32 %v790, 0.0
      %v799 = vmax.f32 %v791, 0.0
      %v800 = vmax.f32 %v792, 0.0
      %v801 = vmax.f32 %v793, 0.0
      %v802 = vmax.f32 %v794, 0.0
      %v803 = vmax.f32 %v795, 0.0
      %v804 = vmax.f32 %v796, 0.0
      %vm805 = vcmask 261120
      %v806 = vsel %vm805, %v797, -inf
      %v807 = vsel %vm805, %v798, -inf
      %v808 = vmax.f32 %v806, %v807
      %v809 = vsel %vm805, %v799, -inf
      %v810 = vsel %vm805, %v800, -inf
      %v811 = vmax.f32 %v809, %v810
      %v812 = vsel %vm805, %v801, -inf
      %v813 = vsel %vm805, %v802, -inf
      %v814 = vmax.f32 %v812, %v813
      %v815 = vsel %vm805, %v803, -inf
      %v816 = vsel %vm805, %v804, -inf
      %v817 = vmax.f32 %v815, %v816
      %v822 = vrot.slane %v808, 2
      %v823 = vrot.slane %v808, 4
      %v824 = vrot.slane %v808, 6
      %v825 = vrot.slane %v811, 2
      %v826 = vrot.slane %v811, 4
      %v827 = vrot.slane %v811, 6
      %v828 = vrot.slane %v814, 2
      %v829 = vrot.slane %v814, 4
      %v830 = vrot.slane %v814, 6
      %v831 = vrot.slane %v817, 2
      %v832 = vrot.slane %v817, 4
      %v833 = vrot.slane %v817, 6
      %vm846 = vcmask 254976
      %v847 = vsel %vm846, %v808, -inf
      %v848 = vrot.slane %v847, 4
      %v849 = vmax.f32 %v847, %v848
      %v850 = vrot.slane %v849, 2
      %v851 = vmax.f32 %v849, %v850
      %v852 = vrot.slane %v851, 1
      %v853 = vmax.f32 %v851, %v852
      %v854 = vsel %vm846, %v822, -inf
      %v855 = vrot.slane %v854, 4
      %v856 = vmax.f32 %v854, %v855
      %v857 = vrot.slane %v856, 2
      %v858 = vmax.f32 %v856, %v857
      %v859 = vrot.slane %v858, 1
      %v860 = vmax.f32 %v858, %v859
      %v861 = vsel %vm846, %v823, -inf
      %v862 = vrot.slane %v861, 4
      %v863 = vmax.f32 %v861, %v862
      %v864 = vrot.slane %v863, 2
      %v865 = vmax.f32 %v863, %v864
      %v866 = vrot.slane %v865, 1
      %v867 = vmax.f32 %v865, %v866
      %v868 = vsel %vm846, %v824, -inf
      %v869 = vrot.slane %v868, 4
      %v870 = vmax.f32 %v868, %v869
      %v871 = vrot.slane %v870, 2
      %v872 = vmax.f32 %v870, %v871
      %v873 = vrot.slane %v872, 1
      %v874 = vmax.f32 %v872, %v873
      %v875 = vsel %vm846, %v811, -inf
      %v876 = vrot.slane %v875, 4
      %v877 = vmax.f32 %v875, %v876
      %v878 = vrot.slane %v877, 2
      %v879 = vmax.f32 %v877, %v878
      %v880 = vrot.slane %v879, 1
      %v881 = vmax.f32 %v879, %v880
      %v882 = vsel %vm846, %v825, -inf
      %v883 = vrot.slane %v882, 4
      %v884 = vmax.f32 %v882, %v883
      %v885 = vrot.slane %v884, 2
      %v886 = vmax.f32 %v884, %v885
      %v887 = vrot.slane %v886, 1
      %v888 = vmax.f32 %v886, %v887
      %v889 = vsel %vm846, %v826, -inf
      %v890 = vrot.slane %v889, 4
      %v891 = vmax.f32 %v889, %v890
      %v892 = vrot.slane %v891, 2
      %v893 = vmax.f32 %v891, %v892
      %v894 = vrot.slane %v893, 1
      %v895 = vmax.f32 %v893, %v894
      %v896 = vsel %vm846, %v827, -inf
      %v897 = vrot.slane %v896, 4
      %v898 = vmax.f32 %v896, %v897
      %v899 = vrot.slane %v898, 2
      %v900 = vmax.f32 %v898, %v899
      %v901 = vrot.slane %v900, 1
      %v902 = vmax.f32 %v900, %v901
      %v903 = vsel %vm846, %v814, -inf
      %v904 = vrot.slane %v903, 4
      %v905 = vmax.f32 %v903, %v904
      %v906 = vrot.slane %v905, 2
      %v907 = vmax.f32 %v905, %v906
      %v908 = vrot.slane %v907, 1
      %v909 = vmax.f32 %v907, %v908
      %v910 = vsel %vm846, %v828, -inf
      %v911 = vrot.slane %v910, 4
      %v912 = vmax.f32 %v910, %v911
      %v913 = vrot.slane %v912, 2
      %v914 = vmax.f32 %v912, %v913
      %v915 = vrot.slane %v914, 1
      %v916 = vmax.f32 %v914, %v915
      %v917 = vsel %vm846, %v829, -inf
      %v918 = vrot.slane %v917, 4
      %v919 = vmax.f32 %v917, %v918
      %v920 = vrot.slane %v919, 2
      %v921 = vmax.f32 %v919, %v920
      %v922 = vrot.slane %v921, 1
      %v923 = vmax.f32 %v921, %v922
      %v924 = vsel %vm846, %v830, -inf
      %v925 = vrot.slane %v924, 4
      %v926 = vmax.f32 %v924, %v925
      %v927 = vrot.slane %v926, 2
      %v928 = vmax.f32 %v926, %v927
      %v929 = vrot.slane %v928, 1
      %v930 = vmax.f32 %v928, %v929
      %v931 = vsel %vm846, %v817, -inf
      %v932 = vrot.slane %v931, 4
      %v933 = vmax.f32 %v931, %v932
      %v934 = vrot.slane %v933, 2
      %v935 = vmax.f32 %v933, %v934
      %v936 = vrot.slane %v935, 1
      %v937 = vmax.f32 %v935, %v936
      %v938 = vsel %vm846, %v831, -inf
      %v939 = vrot.slane %v938, 4
      %v940 = vmax.f32 %v938, %v939
      %v941 = vrot.slane %v940, 2
      %v942 = vmax.f32 %v940, %v941
      %v943 = vrot.slane %v942, 1
      %v944 = vmax.f32 %v942, %v943
      %v945 = vsel %vm846, %v832, -inf
      %v946 = vrot.slane %v945, 4
      %v947 = vmax.f32 %v945, %v946
      %v948 = vrot.slane %v947, 2
      %v949 = vmax.f32 %v947, %v948
      %v950 = vrot.slane %v949, 1
      %v951 = vmax.f32 %v949, %v950
      %v952 = vsel %vm846, %v833, -inf
      %v953 = vrot.slane %v952, 4
      %v954 = vmax.f32 %v952, %v953
      %v955 = vrot.slane %v954, 2
      %v956 = vmax.f32 %v954, %v955
      %v957 = vrot.slane %v956, 1
      %v958 = vmax.f32 %v956, %v957
      %vm975 = vcmask 1041409
      %v976 = vsel %vm975, %v860, %v853
      %vm977 = vcmask 1042434
      %v978 = vsel %vm977, %v867, %v976
      %vm979 = vcmask 1043459
      %v980 = vsel %vm979, %v874, %v978
      %v981 = vsel %vm975, %v888, %v881
      %v982 = vsel %vm977, %v895, %v981
      %v983 = vsel %vm979, %v902, %v982
      %v984 = vsel %vm975, %v916, %v909
      %v985 = vsel %vm977, %v923, %v984
      %v986 = vsel %vm979, %v930, %v985
      %v987 = vsel %vm975, %v944, %v937
      %v988 = vsel %vm977, %v951, %v987
      %v989 = vsel %vm979, %v958, %v988
      %vm994 = vcmask 257024
      %995 = vst.msk [vmem:[%s170] sm:$0xf] %vm994, %v980
      %996 = vst.msk [vmem:[%s170 + $0x4] sm:$0xf] %vm994, %v983
      %997 = vst.msk [vmem:[%s170 + $0x8] sm:$0xf] %vm994, %v986
      %998 = vst.msk [vmem:[%s170 + $0xc] sm:$0xf] %vm994, %v989
      %p999 = scmp.lt.s32.totalorder %s14, 1
      %s1000 = scalar_select %p999, %s14, 1
      %s1001 = smul.addr %s1000, 4
      %s1002 = smul.addr %s1001, 4
      %s1003 = scalar_lea.vmem %s3, %s1002
      // Predicated region
      $region33: #{multimodal_forward.4} parent=31 // pred_check
        %p1004 = pneg %p100
      $region34: #{multimodal_forward.4} parent=31 // pred_check_branch
        %1006 = sbr.rel (%p1004) target = $region36
      $region35: #{multimodal_forward.4} parent=31 // pred_region
        _
      $region36: #{multimodal_forward.4} parent=31 // pred_fallthru
        _
    $region32: #{multimodal_forward.4} parent=5 // pred_fallthru
      _
    %p1007 = scmp.le.s32.totalorder 2, %s9
    // Predicated region
    $region37: #{multimodal_forward.4} parent=5 // pred_check
      %p1008 = pneg %p1007
    $region38: #{multimodal_forward.4} parent=5 // pred_check_branch
      %1010 = sbr.rel (%p1008) target = $region40
    $region39: #{multimodal_forward.4} parent=5 // pred_region
      %s1011 = ssub.s32 %s9, 2
      // Predicated region
      $region41: #{multimodal_forward.4} parent=39 // pred_check
        %p1012 = pneg %p106
      $region42: #{multimodal_forward.4} parent=39 // pred_check_branch
        %1014 = sbr.rel (%p1012) target = $region44
      $region43: #{multimodal_forward.4} parent=39 // pred_region
        %p1015 = scmp.lt.s32.totalorder %s15, 1
        %s1016 = scalar_select %p1015, %s15, 1
        %s1017 = smul.addr %s1016, 4
        %s1018 = smul.addr %s1017, 4
        %s1019 = scalar_lea.vmem %s3, %s1018
      $region44: #{multimodal_forward.4} parent=39 // pred_fallthru
        _
    $region40: #{multimodal_forward.4} parent=5 // pred_fallthru
      _
  $region6: #{multimodal_forward.4} parent=0 // loop_footer
    %s13 = sadd.s32 1, %s9
  $region7: #{multimodal_forward.4} parent=0 // loop_footer_branch
    %8 = sbr.rel target = $region3
  $region8: #{multimodal_forward.4} parent=0 // loop_exit
    _

// kernel: multimodal_forward.5
$region0: #{multimodal_forward.5}
  #allocation0 [shape = 'u32[]', space=smem, size = 0x4, offset = 0x4, fixed_abs, tag = 'smem constant byte address 0x4 - core index']
  #allocation1 [shape = 'u32[72,128]{1,0:T(1,128)}', space=vmem, size = 0x9000, scoped, tag = 'internal scratch']
  %s0 = inlined_call_operand.vmem [shape: f32[2,512], index: 0, kind: input, shape index: {}]
  %s1 = inlined_call_operand.vmem [shape: f32[2,16], index: 1, kind: input, shape index: {}]
  %s2 = inlined_call_operand.vmem [shape: f32[832,128], index: 2, kind: input, shape index: {}]
  %s3 = inlined_call_operand.vmem [shape: f32[11,128], index: 3, kind: input, shape index: {}]
  %s4 = inlined_call_operand.vmem [shape: f32[2,5], index: 4, kind: output, shape index: {}]
  %s5 = sld [smem:[#allocation0]]
  $region26: #{multimodal_forward.5} parent=0
    _
  %s7 = ssub.s32 1, %s5
  %s8 = scalar_select 0, %s7, %s5
  // Predicated region
  $region2: #{multimodal_forward.5} parent=0 // pred_check
    _
  $region3: #{multimodal_forward.5} parent=0 // pred_check_branch
    %10 = sbr.rel (0) target = $region5
  $region4: #{multimodal_forward.5} parent=0 // pred_region
    _
  $region5: #{multimodal_forward.5} parent=0 // pred_fallthru
    _
  // Predicated region
  $region6: #{multimodal_forward.5} parent=0 // pred_check
    _
  $region7: #{multimodal_forward.5} parent=0 // pred_check_branch
    %12 = sbr.rel (0) target = $region9
  $region8: #{multimodal_forward.5} parent=0 // pred_region
    _
  $region9: #{multimodal_forward.5} parent=0 // pred_fallthru
    _
  // Predicated region
  $region10: #{multimodal_forward.5} parent=0 // pred_check
    _
  $region11: #{multimodal_forward.5} parent=0 // pred_check_branch
    %14 = sbr.rel (0) target = $region13
  $region12: #{multimodal_forward.5} parent=0 // pred_region
    _
  $region13: #{multimodal_forward.5} parent=0 // pred_fallthru
    _
  // Predicated region
  $region14: #{multimodal_forward.5} parent=0 // pred_check
    _
  $region15: #{multimodal_forward.5} parent=0 // pred_check_branch
    %16 = sbr.rel (0) target = $region17
  $region16: #{multimodal_forward.5} parent=0 // pred_region
    _
  $region17: #{multimodal_forward.5} parent=0 // pred_fallthru
    _
  %v17 = vld [vmem:[%s0] sm:$0xff]
  %v18 = vld [vmem:[%s2] sm:$0xff]
  %v19 = vld [vmem:[%s2 + $0x8] sm:$0xff]
  %v20 = vld [vmem:[%s2 + $0x10] sm:$0xff]
  %v21 = vld [vmem:[%s2 + $0x18] sm:$0xff]
  %v22 = vld [vmem:[%s2 + $0x20] sm:$0xff]
  %v23 = vld [vmem:[%s2 + $0x28] sm:$0xff]
  %v24 = vld [vmem:[%s2 + $0x30] sm:$0xff]
  %v25 = vld [vmem:[%s2 + $0x38] sm:$0xff]
  %v26 = vld [vmem:[%s2 + $0x40] sm:$0xff]
  %v27 = vld [vmem:[%s2 + $0x48] sm:$0xff]
  %v28 = vld [vmem:[%s2 + $0x50] sm:$0xff]
  %v29 = vld [vmem:[%s2 + $0x58] sm:$0xff]
  %v30 = vld [vmem:[%s2 + $0x60] sm:$0xff]
  %v31 = vld [vmem:[%s2 + $0x68] sm:$0xff]
  %v32 = vld [vmem:[%s2 + $0x70] sm:$0xff]
  %v33 = vld [vmem:[%s2 + $0x78] sm:$0xff]
  %v34 = vld [vmem:[%s2 + $0x80] sm:$0xff]
  %v35 = vld [vmem:[%s2 + $0x88] sm:$0xff]
  %v36 = vld [vmem:[%s2 + $0x90] sm:$0xff]
  %v37 = vld [vmem:[%s2 + $0x98] sm:$0xff]
  %v38 = vld [vmem:[%s2 + $0xa0] sm:$0xff]
  %v39 = vld [vmem:[%s2 + $0xa8] sm:$0xff]
  %v40 = vld [vmem:[%s2 + $0xb0] sm:$0xff]
  %v41 = vld [vmem:[%s2 + $0xb8] sm:$0xff]
  %v42 = vld [vmem:[%s2 + $0xc0] sm:$0xff]
  %v43 = vld [vmem:[%s2 + $0xc8] sm:$0xff]
  %v44 = vld [vmem:[%s2 + $0xd0] sm:$0xff]
  %v45 = vld [vmem:[%s2 + $0xd8] sm:$0xff]
  %v46 = vld [vmem:[%s2 + $0xe0] sm:$0xff]
  %v47 = vld [vmem:[%s2 + $0xe8] sm:$0xff]
  %v48 = vld [vmem:[%s2 + $0xf0] sm:$0xff]
  %v49 = vld [vmem:[%s2 + $0xf8] sm:$0xff]
  %v50 = vld [vmem:[%s2 + $0x100] sm:$0xff]
  %v51 = vld [vmem:[%s2 + $0x108] sm:$0xff]
  %v52 = vld [vmem:[%s2 + $0x110] sm:$0xff]
  %v53 = vld [vmem:[%s2 + $0x118] sm:$0xff]
  %v54 = vld [vmem:[%s2 + $0x120] sm:$0xff]
  %v55 = vld [vmem:[%s2 + $0x128] sm:$0xff]
  %v56 = vld [vmem:[%s2 + $0x130] sm:$0xff]
  %v57 = vld [vmem:[%s2 + $0x138] sm:$0xff]
  %v58 = vld [vmem:[%s2 + $0x140] sm:$0xff]
  %v59 = vld [vmem:[%s2 + $0x148] sm:$0xff]
  %v60 = vld [vmem:[%s2 + $0x150] sm:$0xff]
  %v61 = vld [vmem:[%s2 + $0x158] sm:$0xff]
  %v62 = vld [vmem:[%s2 + $0x160] sm:$0xff]
  %v63 = vld [vmem:[%s2 + $0x168] sm:$0xff]
  %v64 = vld [vmem:[%s2 + $0x170] sm:$0xff]
  %v65 = vld [vmem:[%s2 + $0x178] sm:$0xff]
  %v66 = vld [vmem:[%s2 + $0x180] sm:$0xff]
  %v67 = vld [vmem:[%s2 + $0x188] sm:$0xff]
  %v68 = vld [vmem:[%s2 + $0x190] sm:$0xff]
  %v69 = vld [vmem:[%s2 + $0x198] sm:$0xff]
  %v70 = vld [vmem:[%s2 + $0x1a0] sm:$0xff]
  %v71 = vld [vmem:[%s2 + $0x1a8] sm:$0xff]
  %v72 = vld [vmem:[%s2 + $0x1b0] sm:$0xff]
  %v73 = vld [vmem:[%s2 + $0x1b8] sm:$0xff]
  %v74 = vld [vmem:[%s2 + $0x1c0] sm:$0xff]
  %v75 = vld [vmem:[%s2 + $0x1c8] sm:$0xff]
  %v76 = vld [vmem:[%s2 + $0x1d0] sm:$0xff]
  %v77 = vld [vmem:[%s2 + $0x1d8] sm:$0xff]
  %v78 = vld [vmem:[%s2 + $0x1e0] sm:$0xff]
  %v79 = vld [vmem:[%s2 + $0x1e8] sm:$0xff]
  %v80 = vld [vmem:[%s2 + $0x1f0] sm:$0xff]
  %v81 = vld [vmem:[%s2 + $0x1f8] sm:$0xff]
  %v82 = vld [vmem:[%s3] sm:$0x1]
  %v83 = vperm.slane %v82, 0
  %85 = vst [vmem:[#allocation1] ss:$4 sm:$0xff] %v17
  %v86 = vld.sshfl [vmem:[#allocation1] sm:$0xff pattern:$0x73625140]
  %v87 = vld.sshfl [vmem:[#allocation1 + $0x8] sm:$0xff pattern:$0x73625140]
  %v88 = vld.sshfl [vmem:[#allocation1 + $0x10] sm:$0xff pattern:$0x73625140]
  %v89 = vld.sshfl [vmem:[#allocation1 + $0x18] sm:$0xff pattern:$0x73625140]
  %94 = vmatpush.msra.mxu0 %v33
  %95 = vmatpush.msra.mxu0 %v32
  %96 = vmatpush.msra.mxu0 %v31
  %97 = vmatpush.msra.mxu0 %v30
  %98 = vmatpush.msra.mxu0 %v29
  %99 = vmatpush.msra.mxu0 %v28
  %100 = vmatpush.msra.mxu0 %v27
  %101 = vmatpush.msra.mxu0 %v26
  %102 = vmatpush.msra.mxu0 %v25
  %103 = vmatpush.msra.mxu0 %v24
  %104 = vmatpush.msra.mxu0 %v23
  %105 = vmatpush.msra.mxu0 %v22
  %106 = vmatpush.msra.mxu0 %v21
  %107 = vmatpush.msra.mxu0 %v20
  %108 = vmatpush.msra.mxu0 %v19
  %109 = vmatpush.msra.mxu0 %v18
  %110 = vmatmul.f32.gmra.mxu0 %v86
  %v111 = vpop.f32.mrf.mxu0
  %v112 = vadd.f32 %v83, %v111
  %113 = vdwg.mxu0
  %114 = vmatpush.msra.mxu0 %v49
  %115 = vmatpush.msra.mxu0 %v48
  %116 = vmatpush.msra.mxu0 %v47
  %117 = vmatpush.msra.mxu0 %v46
  %118 = vmatpush.msra.mxu0 %v45
  %119 = vmatpush.msra.mxu0 %v44
  %120 = vmatpush.msra.mxu0 %v43
  %121 = vmatpush.msra.mxu0 %v42
  %122 = vmatpush.msra.mxu0 %v41
  %123 = vmatpush.msra.mxu0 %v40
  %124 = vmatpush.msra.mxu0 %v39
  %125 = vmatpush.msra.mxu0 %v38
  %126 = vmatpush.msra.mxu0 %v37
  %127 = vmatpush.msra.mxu0 %v36
  %128 = vmatpush.msra.mxu0 %v35
  %129 = vmatpush.msra.mxu0 %v34
  %130 = vmatmul.f32.gmra.mxu0 %v87
  %v131 = vpop.f32.mrf.mxu0
  %v132 = vadd.f32 %v112, %v131
  %133 = vdwg.mxu0
  %134 = vmatpush.msra.mxu0 %v65
  %135 = vmatpush.msra.mxu0 %v64
  %136 = vmatpush.msra.mxu0 %v63
  %137 = vmatpush.msra.mxu0 %v62
  %138 = vmatpush.msra.mxu0 %v61
  %139 = vmatpush.msra.mxu0 %v60
  %140 = vmatpush.msra.mxu0 %v59
  %141 = vmatpush.msra.mxu0 %v58
  %142 = vmatpush.msra.mxu0 %v57
  %143 = vmatpush.msra.mxu0 %v56
  %144 = vmatpush.msra.mxu0 %v55
  %145 = vmatpush.msra.mxu0 %v54
  %146 = vmatpush.msra.mxu0 %v53
  %147 = vmatpush.msra.mxu0 %v52
  %148 = vmatpush.msra.mxu0 %v51
  %149 = vmatpush.msra.mxu0 %v50
  %150 = vmatmul.f32.gmra.mxu0 %v88
  %v151 = vpop.f32.mrf.mxu0
  %v152 = vadd.f32 %v132, %v151
  %153 = vdwg.mxu0
  %154 = vmatpush.msra.mxu0 %v81
  %155 = vmatpush.msra.mxu0 %v80
  %156 = vmatpush.msra.mxu0 %v79
  %157 = vmatpush.msra.mxu0 %v78
  %158 = vmatpush.msra.mxu0 %v77
  %159 = vmatpush.msra.mxu0 %v76
  %160 = vmatpush.msra.mxu0 %v75
  %161 = vmatpush.msra.mxu0 %v74
  %162 = vmatpush.msra.mxu0 %v73
  %163 = vmatpush.msra.mxu0 %v72
  %164 = vmatpush.msra.mxu0 %v71
  %165 = vmatpush.msra.mxu0 %v70
  %166 = vmatpush.msra.mxu0 %v69
  %167 = vmatpush.msra.mxu0 %v68
  %168 = vmatpush.msra.mxu0 %v67
  %169 = vmatpush.msra.mxu0 %v66
  %170 = vmatmul.f32.gmra.mxu0 %v89
  %v171 = vpop.f32.mrf.mxu0
  %v172 = vadd.f32 %v152, %v171
  %173 = vdwg.mxu0
  %v174 = vmax.f32 %v172, 0.0
  %v175 = vld [vmem:[%s2 + $0x200] sm:$0xff]
  %v176 = vld [vmem:[%s2 + $0x208] sm:$0xff]
  %v177 = vld [vmem:[%s2 + $0x210] sm:$0xff]
  %v178 = vld [vmem:[%s2 + $0x218] sm:$0xff]
  %v179 = vld [vmem:[%s2 + $0x220] sm:$0xff]
  %v180 = vld [vmem:[%s2 + $0x228] sm:$0xff]
  %v181 = vld [vmem:[%s2 + $0x230] sm:$0xff]
  %v182 = vld [vmem:[%s2 + $0x238] sm:$0xff]
  %v183 = vld [vmem:[%s2 + $0x240] sm:$0xff]
  %v184 = vld [vmem:[%s2 + $0x248] sm:$0xff]
  %v185 = vld [vmem:[%s2 + $0x250] sm:$0xff]
  %v186 = vld [vmem:[%s2 + $0x258] sm:$0xff]
  %v187 = vld [vmem:[%s2 + $0x260] sm:$0xff]
  %v188 = vld [vmem:[%s2 + $0x268] sm:$0xff]
  %v189 = vld [vmem:[%s2 + $0x270] sm:$0xff]
  %v190 = vld [vmem:[%s2 + $0x278] sm:$0xff]
  %v191 = vld [vmem:[%s3 + $0x1] sm:$0x1]
  %v192 = vperm.slane %v191, 0
  %193 = vmatpush.msra.mxu0 %v190
  %194 = vmatpush.msra.mxu0 %v189
  %195 = vmatpush.msra.mxu0 %v188
  %196 = vmatpush.msra.mxu0 %v187
  %197 = vmatpush.msra.mxu0 %v186
  %198 = vmatpush.msra.mxu0 %v185
  %199 = vmatpush.msra.mxu0 %v184
  %200 = vmatpush.msra.mxu0 %v183
  %201 = vmatpush.msra.mxu0 %v182
  %202 = vmatpush.msra.mxu0 %v181
  %203 = vmatpush.msra.mxu0 %v180
  %204 = vmatpush.msra.mxu0 %v179
  %205 = vmatpush.msra.mxu0 %v178
  %206 = vmatpush.msra.mxu0 %v177
  %207 = vmatpush.msra.mxu0 %v176
  %208 = vmatpush.msra.mxu0 %v175
  %209 = vmatmul.f32.gmra.mxu0 %v174
  %v210 = vpop.f32.mrf.mxu0
  %v211 = vadd.f32 %v192, %v210
  %212 = vdwg.mxu0
  %v213 = vld [vmem:[%s1] sm:$0x3]
  %v214 = vld [vmem:[%s2 + $0x280] sm:$0xff]
  %v215 = vld [vmem:[%s2 + $0x288] sm:$0xff]
  %v216 = vld [vmem:[%s3 + $0x2] sm:$0x1]
  %v217 = vperm.slane %v216, 0
  %vm218 = vcmask 130048
  %v220 = vsel %vm218, %v213, 0
  %222 = vmatpush.msra.mxu0 0.0
  %223 = vmatpush.msra.mxu0 0.0
  %224 = vmatpush.msra.mxu0 0.0
  %225 = vmatpush.msra.mxu0 0.0
  %226 = vmatpush.msra.mxu0 0.0
  %227 = vmatpush.msra.mxu0 0.0
  %228 = vmatpush.msra.mxu0 0.0
  %229 = vmatpush.msra.mxu0 0.0
  %230 = vmatpush.msra.mxu0 0.0
  %231 = vmatpush.msra.mxu0 0.0
  %232 = vmatpush.msra.mxu0 0.0
  %233 = vmatpush.msra.mxu0 0.0
  %234 = vmatpush.msra.mxu0 0.0
  %235 = vmatpush.msra.mxu0 0.0
  %236 = vmatpush.msra.mxu0 %v215
  %237 = vmatpush.msra.mxu0 %v214
  %238 = vmatmul.f32.gmra.mxu0 %v220
  %v239 = vpop.f32.mrf.mxu0
  %v240 = vadd.f32 %v217, %v239
  %241 = vdwg.mxu0
  %v242 = vmax.f32 %v240, 0.0
  %v243 = vld [vmem:[%s2 + $0x290] sm:$0xff]
  %v244 = vld [vmem:[%s2 + $0x298] sm:$0xff]
  %v245 = vld [vmem:[%s2 + $0x2a0] sm:$0xff]
  %v246 = vld [vmem:[%s2 + $0x2a8] sm:$0xff]
  %v247 = vld [vmem:[%s2 + $0x2b0] sm:$0xff]
  %v248 = vld [vmem:[%s2 + $0x2b8] sm:$0xff]
  %v249 = vld [vmem:[%s2 + $0x2c0] sm:$0xff]
  %v250 = vld [vmem:[%s2 + $0x2c8] sm:$0xff]
  %v251 = vld [vmem:[%s3 + $0x3] sm:$0x1]
  %v252 = vperm.slane %v251, 0
  %vm253 = vcmask 523264
  %v255 = vsel %vm253, %v242, 0
  %257 = vmatpush.msra.mxu0 0.0
  %258 = vmatpush.msra.mxu0 0.0
  %259 = vmatpush.msra.mxu0 0.0
  %260 = vmatpush.msra.mxu0 0.0
  %261 = vmatpush.msra.mxu0 0.0
  %262 = vmatpush.msra.mxu0 0.0
  %263 = vmatpush.msra.mxu0 0.0
  %264 = vmatpush.msra.mxu0 0.0
  %265 = vmatpush.msra.mxu0 %v250
  %266 = vmatpush.msra.mxu0 %v249
  %267 = vmatpush.msra.mxu0 %v248
  %268 = vmatpush.msra.mxu0 %v247
  %269 = vmatpush.msra.mxu0 %v246
  %270 = vmatpush.msra.mxu0 %v245
  %271 = vmatpush.msra.mxu0 %v244
  %272 = vmatpush.msra.mxu0 %v243
  %273 = vmatmul.f32.gmra.mxu0 %v255
  %v274 = vpop.f32.mrf.mxu0
  %v275 = vadd.f32 %v252, %v274
  %276 = vdwg.mxu0
  %v277 = vmax.f32 %v275, 0.0
  %v278 = vld [vmem:[%s2 + $0x2d0] sm:$0xff]
  %v279 = vld [vmem:[%s2 + $0x2d8] sm:$0xff]
  %v280 = vld [vmem:[%s2 + $0x2e0] sm:$0xff]
  %v281 = vld [vmem:[%s2 + $0x2e8] sm:$0xff]
  %v282 = vld [vmem:[%s3 + $0x4] sm:$0x1]
  %v283 = vperm.slane %v282, 0
  %vm284 = vcmask 261120
  %v286 = vsel %vm284, %v277, 0
  %288 = vmatpush.msra.mxu0 0.0
  %289 = vmatpush.msra.mxu0 0.0
  %290 = vmatpush.msra.mxu0 0.0
  %291 = vmatpush.msra.mxu0 0.0
  %292 = vmatpush.msra.mxu0 0.0
  %293 = vmatpush.msra.mxu0 0.0
  %294 = vmatpush.msra.mxu0 0.0
  %295 = vmatpush.msra.mxu0 0.0
  %296 = vmatpush.msra.mxu0 0.0
  %297 = vmatpush.msra.mxu0 0.0
  %298 = vmatpush.msra.mxu0 0.0
  %299 = vmatpush.msra.mxu0 0.0
  %300 = vmatpush.msra.mxu0 %v281
  %301 = vmatpush.msra.mxu0 %v280
  %302 = vmatpush.msra.mxu0 %v279
  %303 = vmatpush.msra.mxu0 %v278
  %304 = vmatmul.f32.gmra.mxu0 %v286
  %v305 = vpop.f32.mrf.mxu0
  %v306 = vadd.f32 %v283, %v305
  %307 = vdwg.mxu0
  %v308 = vmax.f32 %v306, 0.0
  %v309 = vld [vmem:[%s2 + $0x2f0] sm:$0xff]
  %v310 = vld [vmem:[%s2 + $0x2f8] sm:$0xff]
  %v311 = vld [vmem:[%s3 + $0x5] sm:$0x1]
  %v312 = vperm.slane %v311, 0
  %v314 = vsel %vm218, %v308, 0
  %316 = vmatpush.msra.mxu0 0.0
  %317 = vmatpush.msra.mxu0 0.0
  %318 = vmatpush.msra.mxu0 0.0
  %319 = vmatpush.msra.mxu0 0.0
  %320 = vmatpush.msra.mxu0 0.0
  %321 = vmatpush.msra.mxu0 0.0
  %322 = vmatpush.msra.mxu0 0.0
  %323 = vmatpush.msra.mxu0 0.0
  %324 = vmatpush.msra.mxu0 0.0
  %325 = vmatpush.msra.mxu0 0.0
  %326 = vmatpush.msra.mxu0 0.0
  %327 = vmatpush.msra.mxu0 0.0
  %328 = vmatpush.msra.mxu0 0.0
  %329 = vmatpush.msra.mxu0 0.0
  %330 = vmatpush.msra.mxu0 %v310
  %331 = vmatpush.msra.mxu0 %v309
  %332 = vmatmul.f32.gmra.mxu0 %v314
  %v333 = vpop.f32.mrf.mxu0
  %v334 = vadd.f32 %v312, %v333
  %335 = vdwg.mxu0
  %v336 = vmax.f32 %v334, 0.0
  %v337 = vld [vmem:[%s2 + $0x300] sm:$0xff]
  %v338 = vld [vmem:[%s3 + $0x6] sm:$0x1]
  %v339 = vperm.slane %v338, 0
  %vm340 = vcmask 64512
  %v342 = vsel %vm340, %v336, 0
  %344 = vmatpush.msra.mxu0 0.0
  %345 = vmatpush.msra.mxu0 0.0
  %346 = vmatpush.msra.mxu0 0.0
  %347 = vmatpush.msra.mxu0 0.0
  %348 = vmatpush.msra.mxu0 0.0
  %349 = vmatpush.msra.mxu0 0.0
  %350 = vmatpush.msra.mxu0 0.0
  %351 = vmatpush.msra.mxu0 0.0
  %352 = vmatpush.msra.mxu0 0.0
  %353 = vmatpush.msra.mxu0 0.0
  %354 = vmatpush.msra.mxu0 0.0
  %355 = vmatpush.msra.mxu0 0.0
  %356 = vmatpush.msra.mxu0 0.0
  %357 = vmatpush.msra.mxu0 0.0
  %358 = vmatpush.msra.mxu0 0.0
  %359 = vmatpush.msra.mxu0 %v337
  %360 = vmatmul.f32.gmra.mxu0 %v342
  %v361 = vpop.f32.mrf.mxu0
  %v362 = vadd.f32 %v339, %v361
  %363 = vdwg.mxu0
  %v364 = vld [vmem:[%s2 + $0x308] sm:$0x3f]
  %v365 = vld [vmem:[%s2 + $0x30e] sm:$0x3f]
  %vm366 = vcmask 48128
  %v368 = vsel %vm366, %v362, 0
  %vm370 = vcmask 1045504
  %v372 = vsel %vm370, %v365, 0
  %374 = vmatpush.msra.mxu0 0.0
  %375 = vmatpush.msra.mxu0 0.0
  %376 = vmatpush.msra.mxu0 0.0
  %377 = vmatpush.msra.mxu0 0.0
  %378 = vmatpush.msra.mxu0 0.0
  %379 = vmatpush.msra.mxu0 0.0
  %380 = vmatpush.msra.mxu0 0.0
  %381 = vmatpush.msra.mxu0 0.0
  %382 = vmatpush.msra.mxu0 0.0
  %383 = vmatpush.msra.mxu0 0.0
  %384 = vmatpush.msra.mxu0 0.0
  %385 = vmatpush.msra.mxu0 0.0
  %386 = vmatpush.msra.mxu0 0.0
  %387 = vmatpush.msra.mxu0 0.0
  %388 = vmatpush.msra.mxu0 0.0
  %389 = vmatpush.msra.mxu0 %v372
  %390 = vmatmul.f32.gmra.mxu0 %v368
  %v391 = vpop.f32.mrf.mxu0
  %v392 = vadd.f32 0.0, %v391
  %393 = vdwg.mxu0
  %v395 = vsel %vm366, %v211, 0
  %v398 = vsel %vm370, %v364, 0
  %400 = vmatpush.msra.mxu0 0.0
  %401 = vmatpush.msra.mxu0 0.0
  %402 = vmatpush.msra.mxu0 0.0
  %403 = vmatpush.msra.mxu0 0.0
  %404 = vmatpush.msra.mxu0 0.0
  %405 = vmatpush.msra.mxu0 0.0
  %406 = vmatpush.msra.mxu0 0.0
  %407 = vmatpush.msra.mxu0 0.0
  %408 = vmatpush.msra.mxu0 0.0
  %409 = vmatpush.msra.mxu0 0.0
  %410 = vmatpush.msra.mxu0 0.0
  %411 = vmatpush.msra.mxu0 0.0
  %412 = vmatpush.msra.mxu0 0.0
  %413 = vmatpush.msra.mxu0 0.0
  %414 = vmatpush.msra.mxu0 0.0
  %415 = vmatpush.msra.mxu0 %v398
  %416 = vmatmul.f32.gmra.mxu0 %v395
  %v417 = vpop.f32.mrf.mxu0
  %v418 = vadd.f32 %v392, %v417
  %419 = vdwg.mxu0
  %v420 = vld [vmem:[%s3 + $0x7] sm:$0x1]
  %v421 = vperm.slane %v420, 0
  %v422 = vadd.f32 %v418, %v421
  %v423 = vld [vmem:[%s2 + $0x318] sm:$0xff]
  %v424 = vld [vmem:[%s2 + $0x320] sm:$0xf]
  %v425 = vld [vmem:[%s3 + $0x8] sm:$0x1]
  %v426 = vperm.slane %v425, 0
  %vm427 = vcmask 97280
  %v429 = vsel %vm427, %v422, 0
  %vm431 = vcmask 1043456
  %v433 = vsel %vm431, %v424, 0
  %435 = vmatpush.msra.mxu0 0.0
  %436 = vmatpush.msra.mxu0 0.0
  %437 = vmatpush.msra.mxu0 0.0
  %438 = vmatpush.msra.mxu0 0.0
  %439 = vmatpush.msra.mxu0 0.0
  %440 = vmatpush.msra.mxu0 0.0
  %441 = vmatpush.msra.mxu0 0.0
  %442 = vmatpush.msra.mxu0 0.0
  %443 = vmatpush.msra.mxu0 0.0
  %444 = vmatpush.msra.mxu0 0.0
  %445 = vmatpush.msra.mxu0 0.0
  %446 = vmatpush.msra.mxu0 0.0
  %447 = vmatpush.msra.mxu0 0.0
  %448 = vmatpush.msra.mxu0 0.0
  %449 = vmatpush.msra.mxu0 %v433
  %450 = vmatpush.msra.mxu0 %v423
  %451 = vmatmul.f32.gmra.mxu0 %v429
  %v452 = vpop.f32.mrf.mxu0
  %v453 = vadd.f32 %v426, %v452
  %454 = vdwg.mxu0
  %v455 = vld [vmem:[%s2 + $0x328] sm:$0xff]
  %v456 = vld [vmem:[%s2 + $0x330] sm:$0xf]
  %v457 = vld [vmem:[%s3 + $0x9] sm:$0x1]
  %v458 = vperm.slane %v457, 0
  %v460 = vsel %vm427, %v453, 0
  %v463 = vsel %vm431, %v456, 0
  %465 = vmatpush.msra.mxu0 0.0
  %466 = vmatpush.msra.mxu0 0.0
  %467 = vmatpush.msra.mxu0 0.0
  %468 = vmatpush.msra.mxu0 0.0
  %469 = vmatpush.msra.mxu0 0.0
  %470 = vmatpush.msra.mxu0 0.0
  %471 = vmatpush.msra.mxu0 0.0
  %472 = vmatpush.msra.mxu0 0.0
  %473 = vmatpush.msra.mxu0 0.0
  %474 = vmatpush.msra.mxu0 0.0
  %475 = vmatpush.msra.mxu0 0.0
  %476 = vmatpush.msra.mxu0 0.0
  %477 = vmatpush.msra.mxu0 0.0
  %478 = vmatpush.msra.mxu0 0.0
  %479 = vmatpush.msra.mxu0 %v463
  %480 = vmatpush.msra.mxu0 %v455
  %481 = vmatmul.f32.gmra.mxu0 %v460
  %v482 = vpop.f32.mrf.mxu0
  %v483 = vadd.f32 %v458, %v482
  %484 = vdwg.mxu0
  %vm485 = vcmask 9216
  %v486 = vsel %vm485, %v483, -inf
  %487 = vmax.xlane.f32.xlu0 %v486
  %v488 = vpop.xlane.xlu0 %487
  %v489 = vsub.f32 %v483, %v488
  %v490 = vmul.f32 %v489, 1.442695
  %v491 = vpow.pop %v490
  %v492 = vsel %vm485, %v491, 0.0
  %493 = vadd.xlane.f32.xlu0 %v492
  %v494 = vpop.xlane.xlu0 %493
  %v495 = vrcp.pop %v494
  %v496 = vmul.f32 %v494, %v495
  %v497 = vsub.f32 1.0, %v496
  %v498 = vmul.f32 %v495, %v497
  %v499 = vadd.f32 %v495, %v498
  %vm500 = vweird.f32 %v494
  %vm501 = vweird.f32 %v495
  %vm502 = vmor %vm500, %vm501
  %v503 = vsel %vm502, %v495, %v499
  %v504 = vand.u32 2147483647, %v494
  %vm505 = vcmp.eq.f32.partialorder %v504, 8.507059e+37
  %v506 = vand.u32 %v494, 2147483648
  %v507 = vor.u32 1.1754944e-38, %v506
  %v508 = vsel %vm505, %v507, %v503
  %v509 = vmul.f32 %v491, %v508
  %511 = vset.pattern.permute.xlu0 0
  %512 = vperm.xlu0 %511, %v509
  %v513 = vpop.permute.xlu0 %512
  %v515 = vmul.f32 %v513, %v211
  %516 = vset.pattern.permute.xlu0 1
  %517 = vperm.xlu0 %516, %v509
  %v518 = vpop.permute.xlu0 %517
  %v520 = vmul.f32 %v518, %v362
  %v521 = vadd.f32 %v515, %v520
  %v522 = vld [vmem:[%s2 + $0x338] sm:$0x3f]
  %v523 = vld [vmem:[%s3 + $0xa] sm:$0x1]
  %v524 = vperm.slane %v523, 0
  %v526 = vsel %vm366, %v521, 0
  %v529 = vsel %vm370, %v522, 0
  %531 = vmatpush.msra.mxu0 0.0
  %532 = vmatpush.msra.mxu0 0.0
  %533 = vmatpush.msra.mxu0 0.0
  %534 = vmatpush.msra.mxu0 0.0
  %535 = vmatpush.msra.mxu0 0.0
  %536 = vmatpush.msra.mxu0 0.0
  %537 = vmatpush.msra.mxu0 0.0
  %538 = vmatpush.msra.mxu0 0.0
  %539 = vmatpush.msra.mxu0 0.0
  %540 = vmatpush.msra.mxu0 0.0
  %541 = vmatpush.msra.mxu0 0.0
  %542 = vmatpush.msra.mxu0 0.0
  %543 = vmatpush.msra.mxu0 0.0
  %544 = vmatpush.msra.mxu0 0.0
  %545 = vmatpush.msra.mxu0 0.0
  %546 = vmatpush.msra.mxu0 %v529
  %547 = vmatmul.f32.gmra.mxu0 %v526
  %v548 = vpop.f32.mrf.mxu0
  %v549 = vadd.f32 %v524, %v548
  %550 = vdwg.mxu0
  %vm551 = vcmask 33792
  %552 = vst.msk [vmem:[%s4] sm:$0x3] %vm551, %v549
  // Predicated region
  $region18: #{multimodal_forward.5} parent=0 // pred_check
    _
  $region19: #{multimodal_forward.5} parent=0 // pred_check_branch
    %554 = sbr.rel (0) target = $region21
  $region20: #{multimodal_forward.5} parent=0 // pred_region
    _
  $region21: #{multimodal_forward.5} parent=0 // pred_fallthru
    _
  // Predicated region
  $region22: #{multimodal_forward.5} parent=0 // pred_check
    _
  $region23: #{multimodal_forward.5} parent=0 // pred_check_branch
    %556 = sbr.rel (0) target = $region25
  $region24: #{multimodal_forward.5} parent=0 // pred_region
    _
  $region25: #{multimodal_forward.5} parent=0 // pred_fallthru
    _

// kernel: multimodal_forward.3
$region0: #{multimodal_forward.3}
  #allocation0 [shape = 'u32[]', space=smem, size = 0x4, offset = 0x4, fixed_abs, tag = 'smem constant byte address 0x4 - core index']
  #allocation1 [shape = 'u32[72,128]{1,0:T(1,128)}', space=vmem, size = 0x9000, scoped, tag = 'internal scratch']
  %s0 = inlined_call_operand.vmem [shape: f32[2,18,18,3], index: 0, kind: input, shape index: {}]
  %s1 = inlined_call_operand.vmem [shape: f32[9,3,16], index: 1, kind: input, shape index: {}]
  %s2 = inlined_call_operand.vmem [shape: f32[1,16], index: 2, kind: input, shape index: {}]
  %s3 = inlined_call_operand.vmem [shape: f32[2,8,8,16], index: 3, kind: output, shape index: {}]
  %s4 = sld [smem:[#allocation0]]
  $region45: #{multimodal_forward.3} parent=0
    _
  %s6 = ssub.s32 1, %s4
  %s7 = scalar_select 0, %s6, %s4
  loop: start=0, step=1, limit=4
  $region2: #{multimodal_forward.3} parent=0 // loop_pre_header
    _
  $region3: #{multimodal_forward.3} parent=0 // loop_header
    %s9 = sphi 0, %s13
    %p10 = scmp.ge.s32.totalorder %s9, 4
    %s19 = sphi 0, %s21
    %s22 = sphi 0, %s19
    %s23 = sphi 0, %s22
    %s39 = sphi 0, %s23
    %s43 = sphi 0, %s43
    %s45 = sphi 0, %s43
    %s46 = sphi 0, %s45
    %s60 = sphi 0, %s46
    %s64 = sphi 0, %s64
    %s66 = sphi 0, %s64
    %s67 = sphi 0, %s66
    %s81 = sphi 0, %s67
    %s87 = sphi 0, %s89
    %s90 = sphi 0, %s87
    %s91 = sphi 0, %s90
    %s107 = sphi 0, %s91
  $region4: #{multimodal_forward.3} parent=0 // loop_header_branch
    %12 = sbr.rel (%p10) target = $region8
  $region5: #{multimodal_forward.3} parent=0 // loop_body
    %s14 = ssub.s32 %s9, 1
    %s15 = ssub.s32 %s9, 2
    %s16 = sadd.s32 %s9, 1
    %s17 = ssub.s32 %s9, %s16
    %p18 = scmp.eq.s32.totalorder %s17, 0
    %s20 = sadd.s32 %s19, 1
    %s21 = scalar_select %p18, %s19, %s20
    %p24 = pneg %p18
    %p25 = scmp.eq.s32.totalorder %s9, 1
    %p26 = por %p24, %p25
    %p27 = scmp.ne.s32.totalorder %s19, %s22
    %p28 = scmp.eq.s32.totalorder %s9, 0
    %p29 = por %p27, %p28
    %p30 = scmp.ne.s32.totalorder %s19, %s22
    %p31 = scmp.eq.s32.totalorder %s14, 1
    %p32 = por %p30, %p31
    %p33 = scmp.ne.s32.totalorder %s22, %s23
    %p34 = scmp.eq.s32.totalorder %s14, 0
    %p35 = por %p33, %p34
    %p36 = scmp.ne.s32.totalorder %s22, %s23
    %p37 = scmp.eq.s32.totalorder %s15, 1
    %p38 = por %p36, %p37
    %p40 = scmp.ne.s32.totalorder %s23, %s39
    %p41 = scmp.eq.s32.totalorder %s15, 0
    %p42 = por %p40, %p41
    %s44 = sadd.s32 %s43, 1
    %p47 = scmp.eq.s32.totalorder %s9, 1
    %p48 = scmp.ne.s32.totalorder %s43, %s45
    %p49 = scmp.eq.s32.totalorder %s9, 0
    %p50 = por %p48, %p49
    %p51 = scmp.ne.s32.totalorder %s43, %s45
    %p52 = scmp.eq.s32.totalorder %s14, 1
    %p53 = por %p51, %p52
    %p54 = scmp.ne.s32.totalorder %s45, %s46
    %p55 = scmp.eq.s32.totalorder %s14, 0
    %p56 = por %p54, %p55
    %p57 = scmp.ne.s32.totalorder %s45, %s46
    %p58 = scmp.eq.s32.totalorder %s15, 1
    %p59 = por %p57, %p58
    %p61 = scmp.ne.s32.totalorder %s46, %s60
    %p62 = scmp.eq.s32.totalorder %s15, 0
    %p63 = por %p61, %p62
    %s65 = sadd.s32 %s64, 1
    %p68 = scmp.eq.s32.totalorder %s9, 1
    %p69 = scmp.ne.s32.totalorder %s64, %s66
    %p70 = scmp.eq.s32.totalorder %s9, 0
    %p71 = por %p69, %p70
    %p72 = scmp.ne.s32.totalorder %s64, %s66
    %p73 = scmp.eq.s32.totalorder %s14, 1
    %p74 = por %p72, %p73
    %p75 = scmp.ne.s32.totalorder %s66, %s67
    %p76 = scmp.eq.s32.totalorder %s14, 0
    %p77 = por %p75, %p76
    %p78 = scmp.ne.s32.totalorder %s66, %s67
    %p79 = scmp.eq.s32.totalorder %s15, 1
    %p80 = por %p78, %p79
    %p82 = scmp.ne.s32.totalorder %s67, %s81
    %p83 = scmp.eq.s32.totalorder %s15, 0
    %p84 = por %p82, %p83
    %s85 = ssub.s32 %s9, %s16
    %p86 = scmp.eq.s32.totalorder %s85, 0
    %s88 = sadd.s32 %s87, 1
    %s89 = scalar_select %p86, %s87, %s88
    %p92 = pneg %p86
    %p93 = scmp.eq.s32.totalorder %s9, 1
    %p94 = por %p92, %p93
    %p95 = scmp.ne.s32.totalorder %s87, %s90
    %p96 = scmp.eq.s32.totalorder %s9, 0
    %p97 = por %p95, %p96
    %p98 = scmp.ne.s32.totalorder %s87, %s90
    %p99 = scmp.eq.s32.totalorder %s14, 1
    %p100 = por %p98, %p99
    %p101 = scmp.ne.s32.totalorder %s90, %s91
    %p102 = scmp.eq.s32.totalorder %s14, 0
    %p103 = por %p101, %p102
    %p104 = scmp.ne.s32.totalorder %s90, %s91
    %p105 = scmp.eq.s32.totalorder %s15, 1
    %p106 = por %p104, %p105
    %p108 = scmp.ne.s32.totalorder %s91, %s107
    %p109 = scmp.eq.s32.totalorder %s15, 0
    %p110 = por %p108, %p109
    %p111 = scmp.le.s32.totalorder 1, %s9
    %p112 = scmp.lt.s32.totalorder %s9, 3
    %p113 = pnand %p111, %p112
    %p114 = pneg %p113
    // Predicated region
    $region9: #{multimodal_forward.3} parent=5 // pred_check
      _
    $region10: #{multimodal_forward.3} parent=5 // pred_check_branch
      %116 = sbr.rel (%p113) target = $region12
    $region11: #{multimodal_forward.3} parent=5 // pred_region
      %s117 = ssub.s32 %s9, 1
      // Predicated region
      $region13: #{multimodal_forward.3} parent=11 // pred_check
        %p118 = pneg %p56
      $region14: #{multimodal_forward.3} parent=11 // pred_check_branch
        %120 = sbr.rel (%p118) target = $region16
      $region15: #{multimodal_forward.3} parent=11 // pred_region
        _
      $region16: #{multimodal_forward.3} parent=11 // pred_fallthru
        _
      // Predicated region
      $region17: #{multimodal_forward.3} parent=11 // pred_check
        %p121 = pneg %p77
      $region18: #{multimodal_forward.3} parent=11 // pred_check_branch
        %123 = sbr.rel (%p121) target = $region20
      $region19: #{multimodal_forward.3} parent=11 // pred_region
        _
      $region20: #{multimodal_forward.3} parent=11 // pred_fallthru
        _
    $region12: #{multimodal_forward.3} parent=5 // pred_fallthru
      _
    %p124 = scmp.lt.s32.totalorder %s9, 2
    // Predicated region
    $region21: #{multimodal_forward.3} parent=5 // pred_check
      %p125 = pneg %p124
    $region22: #{multimodal_forward.3} parent=5 // pred_check_branch
      %127 = sbr.rel (%p125) target = $region24
    $region23: #{multimodal_forward.3} parent=5 // pred_region
      // Predicated region
      $region25: #{multimodal_forward.3} parent=23 // pred_check
        %p128 = pneg %p29
      $region26: #{multimodal_forward.3} parent=23 // pred_check_branch
        %130 = sbr.rel (%p128) target = $region28
      $region27: #{multimodal_forward.3} parent=23 // pred_region
        %p131 = scmp.lt.s32.totalorder %s9, 1
        %s132 = scalar_select %p131, %s9, 1
        %s133 = smul.addr %s132, 54
        %s134 = smul.addr %s133, 8
        %s135 = scalar_lea.vmem %s0, %s134
      $region28: #{multimodal_forward.3} parent=23 // pred_fallthru
        _
    $region24: #{multimodal_forward.3} parent=5 // pred_fallthru
      _
    %p136 = scmp.le.s32.totalorder 1, %s9
    %p137 = scmp.lt.s32.totalorder %s9, 3
    %p138 = pnand %p136, %p137
    %p139 = pneg %p138
    // Predicated region
    $region29: #{multimodal_forward.3} parent=5 // pred_check
      _
    $region30: #{multimodal_forward.3} parent=5 // pred_check_branch
      %141 = sbr.rel (%p138) target = $region32
    $region31: #{multimodal_forward.3} parent=5 // pred_region
      %s142 = ssub.s32 %s9, 1
      %p143 = scmp.lt.s32.totalorder %s14, 1
      %s144 = scalar_select %p143, %s14, 1
      %s145 = smul.addr %s144, 54
      %s146 = smul.addr %s145, 8
      %s147 = scalar_lea.vmem %s0, %s146
      %p148 = pneg %p35
      %p149 = pneg %p32
      %p150 = pneg %p56
      %p151 = pneg %p53
      %p152 = pneg %p77
      %p153 = pneg %p74
      %p154 = pneg %p103
      %p155 = pneg %p100
      %p156 = scmp.lt.s32.totalorder %s14, 1
      %s157 = scalar_select %p156, %s14, 1
      %s158 = smul.addr %s157, 8
      %s159 = smul.addr %s158, 8
      %s160 = scalar_lea.vmem %s3, %s159
      %p161 = scmp.lt.s32.totalorder %s14, 1
      %s162 = scalar_select %p161, %s14, 1
      %s163 = smul.addr %s162, 54
      %s164 = smul.addr %s163, 8
      %s165 = scalar_lea.vmem %s0, %s164
      %p166 = scmp.lt.s32.totalorder %s14, 1
      %s167 = scalar_select %p166, %s14, 1
      %s168 = smul.addr %s167, 8
      %s169 = smul.addr %s168, 8
      %s170 = scalar_lea.vmem %s3, %s169
      %v171 = vld [vmem:[%s165] sm:$0xff]
      %v172 = vld [vmem:[%s165 + $0x8] sm:$0xff]
      %v173 = vld [vmem:[%s165 + $0x10] sm:$0x3]
      %v174 = vld [vmem:[%s165 + $0x18] sm:$0xff]
      %v175 = vld [vmem:[%s165 + $0x20] sm:$0xff]
      %v176 = vld [vmem:[%s165 + $0x28] sm:$0x3]
      %v177 = vld [vmem:[%s165 + $0x30] sm:$0xff]
      %v178 = vld [vmem:[%s165 + $0x38] sm:$0xff]
      %v179 = vld [vmem:[%s165 + $0x40] sm:$0x3]
      %v180 = vld [vmem:[%s165 + $0x48] sm:$0xff]
      %v181 = vld [vmem:[%s165 + $0x50] sm:$0xff]
      %v182 = vld [vmem:[%s165 + $0x58] sm:$0x3]
      %v183 = vld [vmem:[%s165 + $0x60] sm:$0xff]
      %v184 = vld [vmem:[%s165 + $0x68] sm:$0xff]
      %v185 = vld [vmem:[%s165 + $0x70] sm:$0x3]
      %v186 = vld [vmem:[%s165 + $0x78] sm:$0xff]
      %v187 = vld [vmem:[%s165 + $0x80] sm:$0xff]
      %v188 = vld [vmem:[%s165 + $0x88] sm:$0x3]
      %v189 = vld [vmem:[%s165 + $0x90] sm:$0xff]
      %v190 = vld [vmem:[%s165 + $0x98] sm:$0xff]
      %v191 = vld [vmem:[%s165 + $0xa0] sm:$0x3]
      %v192 = vld [vmem:[%s165 + $0xa8] sm:$0xff]
      %v193 = vld [vmem:[%s165 + $0xb0] sm:$0xff]
      %v194 = vld [vmem:[%s165 + $0xb8] sm:$0x3]
      %v195 = vld [vmem:[%s165 + $0xc0] sm:$0xff]
      %v196 = vld [vmem:[%s165 + $0xc8] sm:$0xff]
      %v197 = vld [vmem:[%s165 + $0xd0] sm:$0x3]
      %v198 = vld [vmem:[%s165 + $0xd8] sm:$0xff]
      %v199 = vld [vmem:[%s165 + $0xe0] sm:$0xff]
      %v200 = vld [vmem:[%s165 + $0xe8] sm:$0x3]
      %v201 = vld [vmem:[%s165 + $0xf0] sm:$0xff]
      %v202 = vld [vmem:[%s165 + $0xf8] sm:$0xff]
      %v203 = vld [vmem:[%s165 + $0x100] sm:$0x3]
      %v204 = vld [vmem:[%s165 + $0x108] sm:$0xff]
      %v205 = vld [vmem:[%s165 + $0x110] sm:$0xff]
      %v206 = vld [vmem:[%s165 + $0x118] sm:$0x3]
      %v207 = vld [vmem:[%s165 + $0x120] sm:$0xff]
      %v208 = vld [vmem:[%s165 + $0x128] sm:$0xff]
      %v209 = vld [vmem:[%s165 + $0x130] sm:$0x3]
      %v210 = vld [vmem:[%s165 + $0x138] sm:$0xff]
      %v211 = vld [vmem:[%s165 + $0x140] sm:$0xff]
      %v212 = vld [vmem:[%s165 + $0x148] sm:$0x3]
      %v213 = vld [vmem:[%s165 + $0x150] sm:$0xff]
      %v214 = vld [vmem:[%s165 + $0x158] sm:$0xff]
      %v215 = vld [vmem:[%s165 + $0x160] sm:$0x3]
      %v216 = vld [vmem:[%s165 + $0x168] sm:$0xff]
      %v217 = vld [vmem:[%s165 + $0x170] sm:$0xff]
      %v218 = vld [vmem:[%s165 + $0x178] sm:$0x3]
      %v219 = vld [vmem:[%s165 + $0x180] sm:$0xff]
      %v220 = vld [vmem:[%s165 + $0x188] sm:$0xff]
      %v221 = vld [vmem:[%s165 + $0x190] sm:$0x3]
      %v222 = vld [vmem:[%s165 + $0x198] sm:$0xff]
      %v223 = vld [vmem:[%s165 + $0x1a0] sm:$0xff]
      %v224 = vld [vmem:[%s165 + $0x1a8] sm:$0x3]
      %v225 = vld [vmem:[%s1] sm:$0x7]
      %vm274 = vcmask 1046528
      %v275 = vrot.slane %v171, 1
      %v276 = vrot.slane %v172, 1
      %v277 = vsel %vm274, %v275, %v276
      %v278 = vrot.slane %v173, 1
      %v279 = vsel %vm274, %v276, %v278
      %v280 = vrot.slane %v174, 1
      %v281 = vrot.slane %v175, 1
      %v282 = vsel %vm274, %v280, %v281
      %v283 = vrot.slane %v176, 1
      %v284 = vsel %vm274, %v281, %v283
      %v285 = vrot.slane %v177, 1
      %v286 = vrot.slane %v178, 1
      %v287 = vsel %vm274, %v285, %v286
      %v288 = vrot.slane %v179, 1
      %v289 = vsel %vm274, %v286, %v288
      %v290 = vrot.slane %v180, 1
      %v291 = vrot.slane %v181, 1
      %v292 = vsel %vm274, %v290, %v291
      %v293 = vrot.slane %v182, 1
      %v294 = vsel %vm274, %v291, %v293
      %v295 = vrot.slane %v183, 1
      %v296 = vrot.slane %v184, 1
      %v297 = vsel %vm274, %v295, %v296
      %v298 = vrot.slane %v185, 1
      %v299 = vsel %vm274, %v296, %v298
      %v300 = vrot.slane %v186, 1
      %v301 = vrot.slane %v187, 1
      %v302 = vsel %vm274, %v300, %v301
      %v303 = vrot.slane %v188, 1
      %v304 = vsel %vm274, %v301, %v303
      %v305 = vrot.slane %v189, 1
      %v306 = vrot.slane %v190, 1
      %v307 = vsel %vm274, %v305, %v306
      %v308 = vrot.slane %v191, 1
      %v309 = vsel %vm274, %v306, %v308
      %v310 = vrot.slane %v192, 1
      %v311 = vrot.slane %v193, 1
      %v312 = vsel %vm274, %v310, %v311
      %v313 = vrot.slane %v194, 1
      %v314 = vsel %vm274, %v311, %v313
      %v315 = vrot.slane %v195, 1
      %v316 = vrot.slane %v196, 1
      %v317 = vsel %vm274, %v315, %v316
      %v318 = vrot.slane %v197, 1
      %v319 = vsel %vm274, %v316, %v318
      %v320 = vrot.slane %v198, 1
      %v321 = vrot.slane %v199, 1
      %v322 = vsel %vm274, %v320, %v321
      %v323 = vrot.slane %v200, 1
      %v324 = vsel %vm274, %v321, %v323
      %v325 = vrot.slane %v201, 1
      %v326 = vrot.slane %v202, 1
      %v327 = vsel %vm274, %v325, %v326
      %v328 = vrot.slane %v203, 1
      %v329 = vsel %vm274, %v326, %v328
      %v330 = vrot.slane %v204, 1
      %v331 = vrot.slane %v205, 1
      %v332 = vsel %vm274, %v330, %v331
      %v333 = vrot.slane %v206, 1
      %v334 = vsel %vm274, %v331, %v333
      %v335 = vrot.slane %v207, 1
      %v336 = vrot.slane %v208, 1
      %v337 = vsel %vm274, %v335, %v336
      %v338 = vrot.slane %v209, 1
      %v339 = vsel %vm274, %v336, %v338
      %v340 = vrot.slane %v210, 1
      %v341 = vrot.slane %v211, 1
      %v342 = vsel %vm274, %v340, %v341
      %v343 = vrot.slane %v212, 1
      %v344 = vsel %vm274, %v341, %v343
      %v345 = vrot.slane %v213, 1
      %v346 = vrot.slane %v214, 1
      %v347 = vsel %vm274, %v345, %v346
      %v348 = vrot.slane %v215, 1
      %v349 = vsel %vm274, %v346, %v348
      %v350 = vrot.slane %v216, 1
      %v351 = vrot.slane %v217, 1
      %v352 = vsel %vm274, %v350, %v351
      %v353 = vrot.slane %v218, 1
      %v354 = vsel %vm274, %v351, %v353
      %s355 = scalar_lea.vmem %s1, 4
      %v356 = vld [vmem:[%s355] sm:$0x7]
      %vm357 = vcmask 23552
      %v358 = vsel %vm357, %v277, 0
      %v360 = vsel %vm357, %v279, 0
      %v362 = vsel %vm357, %v282, 0
      %v364 = vsel %vm357, %v284, 0
      %v366 = vsel %vm357, %v287, 0
      %v368 = vsel %vm357, %v289, 0
      %v370 = vsel %vm357, %v292, 0
      %v372 = vsel %vm357, %v294, 0
      %v374 = vsel %vm357, %v297, 0
      %v376 = vsel %vm357, %v299, 0
      %v378 = vsel %vm357, %v302, 0
      %v380 = vsel %vm357, %v304, 0
      %v382 = vsel %vm357, %v307, 0
      %v384 = vsel %vm357, %v309, 0
      %v386 = vsel %vm357, %v312, 0
      %v388 = vsel %vm357, %v314, 0
      %v390 = vsel %vm357, %v317, 0
      %v392 = vsel %vm357, %v319, 0
      %v394 = vsel %vm357, %v322, 0
      %v396 = vsel %vm357, %v324, 0
      %v398 = vsel %vm357, %v327, 0
      %v400 = vsel %vm357, %v329, 0
      %v402 = vsel %vm357, %v332, 0
      %v404 = vsel %vm357, %v334, 0
      %v406 = vsel %vm357, %v337, 0
      %v408 = vsel %vm357, %v339, 0
      %v410 = vsel %vm357, %v342, 0
      %v412 = vsel %vm357, %v344, 0
      %v414 = vsel %vm357, %v347, 0
      %v416 = vsel %vm357, %v349, 0
      %v418 = vsel %vm357, %v352, 0
      %v420 = vsel %vm357, %v354, 0
      %vm422 = vcmask 1042432
      %v424 = vsel %vm422, %v356, 0
      %426 = vmatpush.msra.mxu0 0.0
      %427 = vmatpush.msra.mxu0 0.0
      %428 = vmatpush.msra.mxu0 0.0
      %429 = vmatpush.msra.mxu0 0.0
      %430 = vmatpush.msra.mxu0 0.0
      %431 = vmatpush.msra.mxu0 0.0
      %432 = vmatpush.msra.mxu0 0.0
      %433 = vmatpush.msra.mxu0 0.0
      %434 = vmatpush.msra.mxu0 0.0
      %435 = vmatpush.msra.mxu0 0.0
      %436 = vmatpush.msra.mxu0 0.0
      %437 = vmatpush.msra.mxu0 0.0
      %438 = vmatpush.msra.mxu0 0.0
      %439 = vmatpush.msra.mxu0 0.0
      %440 = vmatpush.msra.mxu0 0.0
      %441 = vmatpush.msra.mxu0 %v424
      %442 = vmatmul.f32.gmra.mxu0 %v358
      %v443 = vpop.f32.mrf.mxu0
      %v444 = vadd.f32 0.0, %v443
      %445 = vmatmul.f32.gmra.mxu0 %v360
      %v446 = vpop.f32.mrf.mxu0
      %v447 = vadd.f32 0.0, %v446
      %448 = vmatmul.f32.gmra.mxu0 %v362
      %v449 = vpop.f32.mrf.mxu0
      %v450 = vadd.f32 0.0, %v449
      %451 = vmatmul.f32.gmra.mxu0 %v364
      %v452 = vpop.f32.mrf.mxu0
      %v453 = vadd.f32 0.0, %v452
      %454 = vmatmul.f32.gmra.mxu0 %v366
      %v455 = vpop.f32.mrf.mxu0
      %v456 = vadd.f32 0.0, %v455
      %457 = vmatmul.f32.gmra.mxu0 %v368
      %v458 = vpop.f32.mrf.mxu0
      %v459 = vadd.f32 0.0, %v458
      %460 = vmatmul.f32.gmra.mxu0 %v370
      %v461 = vpop.f32.mrf.mxu0
      %v462 = vadd.f32 0.0, %v461
      %463 = vmatmul.f32.gmra.mxu0 %v372
      %v464 = vpop.f32.mrf.mxu0
      %v465 = vadd.f32 0.0, %v464
      %466 = vmatmul.f32.gmra.mxu0 %v374
      %v467 = vpop.f32.mrf.mxu0
      %v468 = vadd.f32 0.0, %v467
      %469 = vmatmul.f32.gmra.mxu0 %v376
      %v470 = vpop.f32.mrf.mxu0
      %v471 = vadd.f32 0.0, %v470
      %472 = vmatmul.f32.gmra.mxu0 %v378
      %v473 = vpop.f32.mrf.mxu0
      %v474 = vadd.f32 0.0, %v473
      %475 = vmatmul.f32.gmra.mxu0 %v380
      %v476 = vpop.f32.mrf.mxu0
      %v477 = vadd.f32 0.0, %v476
      %478 = vmatmul.f32.gmra.mxu0 %v382
      %v479 = vpop.f32.mrf.mxu0
      %v480 = vadd.f32 0.0, %v479
      %481 = vmatmul.f32.gmra.mxu0 %v384
      %v482 = vpop.f32.mrf.mxu0
      %v483 = vadd.f32 0.0, %v482
      %484 = vmatmul.f32.gmra.mxu0 %v386
      %v485 = vpop.f32.mrf.mxu0
      %v486 = vadd.f32 0.0, %v485
      %487 = vmatmul.f32.gmra.mxu0 %v388
      %v488 = vpop.f32.mrf.mxu0
      %v489 = vadd.f32 0.0, %v488
      %490 = vmatmul.f32.gmra.mxu0 %v390
      %v491 = vpop.f32.mrf.mxu0
      %v492 = vadd.f32 0.0, %v491
      %493 = vmatmul.f32.gmra.mxu0 %v392
      %v494 = vpop.f32.mrf.mxu0
      %v495 = vadd.f32 0.0, %v494
      %496 = vmatmul.f32.gmra.mxu0 %v394
      %v497 = vpop.f32.mrf.mxu0
      %v498 = vadd.f32 0.0, %v497
      %499 = vmatmul.f32.gmra.mxu0 %v396
      %v500 = vpop.f32.mrf.mxu0
      %v501 = vadd.f32 0.0, %v500
      %502 = vmatmul.f32.gmra.mxu0 %v398
      %v503 = vpop.f32.mrf.mxu0
      %v504 = vadd.f32 0.0, %v503
      %505 = vmatmul.f32.gmra.mxu0 %v400
      %v506 = vpop.f32.mrf.mxu0
      %v507 = vadd.f32 0.0, %v506
      %508 = vmatmul.f32.gmra.mxu0 %v402
      %v509 = vpop.f32.mrf.mxu0
      %v510 = vadd.f32 0.0, %v509
      %511 = vmatmul.f32.gmra.mxu0 %v404
      %v512 = vpop.f32.mrf.mxu0
      %v513 = vadd.f32 0.0, %v512
      %514 = vmatmul.f32.gmra.mxu0 %v406
      %v515 = vpop.f32.mrf.mxu0
      %v516 = vadd.f32 0.0, %v515
      %517 = vmatmul.f32.gmra.mxu0 %v408
      %v518 = vpop.f32.mrf.mxu0
      %v519 = vadd.f32 0.0, %v518
      %520 = vmatmul.f32.gmra.mxu0 %v410
      %v521 = vpop.f32.mrf.mxu0
      %v522 = vadd.f32 0.0, %v521
      %523 = vmatmul.f32.gmra.mxu0 %v412
      %v524 = vpop.f32.mrf.mxu0
      %v525 = vadd.f32 0.0, %v524
      %526 = vmatmul.f32.gmra.mxu0 %v414
      %v527 = vpop.f32.mrf.mxu0
      %v528 = vadd.f32 0.0, %v527
      %529 = vmatmul.f32.gmra.mxu0 %v416
      %v530 = vpop.f32.mrf.mxu0
      %v531 = vadd.f32 0.0, %v530
      %532 = vmatmul.f32.gmra.mxu0 %v418
      %v533 = vpop.f32.mrf.mxu0
      %v534 = vadd.f32 0.0, %v533
      %535 = vmatmul.f32.gmra.mxu0 %v420
      %v536 = vpop.f32.mrf.mxu0
      %v537 = vadd.f32 0.0, %v536
      %538 = vdwg.mxu0
      %v539 = vsel %vm357, %v171, 0
      %v541 = vsel %vm357, %v172, 0
      %v543 = vsel %vm357, %v174, 0
      %v545 = vsel %vm357, %v175, 0
      %v547 = vsel %vm357, %v177, 0
      %v549 = vsel %vm357, %v178, 0
      %v551 = vsel %vm357, %v180, 0
      %v553 = vsel %vm357, %v181, 0
      %v555 = vsel %vm357, %v183, 0
      %v557 = vsel %vm357, %v184, 0
      %v559 = vsel %vm357, %v186, 0
      %v561 = vsel %vm357, %v187, 0
      %v563 = vsel %vm357, %v189, 0
      %v565 = vsel %vm357, %v190, 0
      %v567 = vsel %vm357, %v192, 0
      %v569 = vsel %vm357, %v193, 0
      %v571 = vsel %vm357, %v195, 0
      %v573 = vsel %vm357, %v196, 0
      %v575 = vsel %vm357, %v198, 0
      %v577 = vsel %vm357, %v199, 0
      %v579 = vsel %vm357, %v201, 0
      %v581 = vsel %vm357, %v202, 0
      %v583 = vsel %vm357, %v204, 0
      %v585 = vsel %vm357, %v205, 0
      %v587 = vsel %vm357, %v207, 0
      %v589 = vsel %vm357, %v208, 0
      %v591 = vsel %vm357, %v210, 0
      %v593 = vsel %vm357, %v211, 0
      %v595 = vsel %vm357, %v213, 0
      %v597 = vsel %vm357, %v214, 0
      %v599 = vsel %vm357, %v216, 0
      %v601 = vsel %vm357, %v217, 0
      %v604 = vsel %vm422, %v225, 0
      %606 = vmatpush.msra.mxu0 0.0
      %607 = vmatpush.msra.mxu0 0.0
      %608 = vmatpush.msra.mxu0 0.0
      %609 = vmatpush.msra.mxu0 0.0
      %610 = vmatpush.msra.mxu0 0.0
      %611 = vmatpush.msra.mxu0 0.0
      %612 = vmatpush.msra.mxu0 0.0
      %613 = vmatpush.msra.mxu0 0.0
      %614 = vmatpush.msra.mxu0 0.0
      %615 = vmatpush.msra.mxu0 0.0
      %616 = vmatpush.msra.mxu0 0.0
      %617 = vmatpush.msra.mxu0 0.0
      %618 = vmatpush.msra.mxu0 0.0
      %619 = vmatpush.msra.mxu0 0.0
      %620 = vmatpush.msra.mxu0 0.0
      %621 = vmatpush.msra.mxu0 %v604
      %622 = vmatmul.f32.gmra.mxu0 %v539
      %v623 = vpop.f32.mrf.mxu0
      %v624 = vadd.f32 %v444, %v623
      %625 = vmatmul.f32.gmra.mxu0 %v541
      %v626 = vpop.f32.mrf.mxu0
      %v627 = vadd.f32 %v447, %v626
      %628 = vmatmul.f32.gmra.mxu0 %v543
      %v629 = vpop.f32.mrf.mxu0
      %v630 = vadd.f32 %v450, %v629
      %631 = vmatmul.f32.gmra.mxu0 %v545
      %v632 = vpop.f32.mrf.mxu0
      %v633 = vadd.f32 %v453, %v632
      %634 = vmatmul.f32.gmra.mxu0 %v547
      %v635 = vpop.f32.mrf.mxu0
      %v636 = vadd.f32 %v456, %v635
      %637 = vmatmul.f32.gmra.mxu0 %v549
      %v638 = vpop.f32.mrf.mxu0
      %v639 = vadd.f32 %v459, %v638
      %640 = vmatmul.f32.gmra.mxu0 %v551
      %v641 = vpop.f32.mrf.mxu0
      %v642 = vadd.f32 %v462, %v641
      %643 = vmatmul.f32.gmra.mxu0 %v553
      %v644 = vpop.f32.mrf.mxu0
      %v645 = vadd.f32 %v465, %v644
      %646 = vmatmul.f32.gmra.mxu0 %v555
      %v647 = vpop.f32.mrf.mxu0
      %v648 = vadd.f32 %v468, %v647
      %649 = vmatmul.f32.gmra.mxu0 %v557
      %v650 = vpop.f32.mrf.mxu0
      %v651 = vadd.f32 %v471, %v650
      %652 = vmatmul.f32.gmra.mxu0 %v559
      %v653 = vpop.f32.mrf.mxu0
      %v654 = vadd.f32 %v474, %v653
      %655 = vmatmul.f32.gmra.mxu0 %v561
      %v656 = vpop.f32.mrf.mxu0
      %v657 = vadd.f32 %v477, %v656
      %658 = vmatmul.f32.gmra.mxu0 %v563
      %v659 = vpop.f32.mrf.mxu0
      %v660 = vadd.f32 %v480, %v659
      %661 = vmatmul.f32.gmra.mxu0 %v565
      %v662 = vpop.f32.mrf.mxu0
      %v663 = vadd.f32 %v483, %v662
      %664 = vmatmul.f32.gmra.mxu0 %v567
      %v665 = vpop.f32.mrf.mxu0
      %v666 = vadd.f32 %v486, %v665
      %667 = vmatmul.f32.gmra.mxu0 %v569
      %v668 = vpop.f32.mrf.mxu0
      %v669 = vadd.f32 %v489, %v668
      %670 = vmatmul.f32.gmra.mxu0 %v571
      %v671 = vpop.f32.mrf.mxu0
      %v672 = vadd.f32 %v492, %v671
      %673 = vmatmul.f32.gmra.mxu0 %v573
      %v674 = vpop.f32.mrf.mxu0
      %v675 = vadd.f32 %v495, %v674
      %676 = vmatmul.f32.gmra.mxu0 %v575
      %v677 = vpop.f32.mrf.mxu0
      %v678 = vadd.f32 %v498, %v677
      %679 = vmatmul.f32.gmra.mxu0 %v577
      %v680 = vpop.f32.mrf.mxu0
      %v681 = vadd.f32 %v501, %v680
      %682 = vmatmul.f32.gmra.mxu0 %v579
      %v683 = vpop.f32.mrf.mxu0
      %v684 = vadd.f32 %v504, %v683
      %685 = vmatmul.f32.gmra.mxu0 %v581
      %v686 = vpop.f32.mrf.mxu0
      %v687 = vadd.f32 %v507, %v686
      %688 = vmatmul.f32.gmra.mxu0 %v583
      %v689 = vpop.f32.mrf.mxu0
      %v690 = vadd.f32 %v510, %v689
      %691 = vmatmul.f32.gmra.mxu0 %v585
      %v692 = vpop.f32.mrf.mxu0
      %v693 = vadd.f32 %v513, %v692
      %694 = vmatmul.f32.gmra.mxu0 %v587
      %v695 = vpop.f32.mrf.mxu0
      %v696 = vadd.f32 %v516, %v695
      %697 = vmatmul.f32.gmra.mxu0 %v589
      %v698 = vpop.f32.mrf.mxu0
      %v699 = vadd.f32 %v519, %v698
      %700 = vmatmul.f32.gmra.mxu0 %v591
      %v701 = vpop.f32.mrf.mxu0
      %v702 = vadd.f32 %v522, %v701
      %703 = vmatmul.f32.gmra.mxu0 %v593
      %v704 = vpop.f32.mrf.mxu0
      %v705 = vadd.f32 %v525, %v704
      %706 = vmatmul.f32.gmra.mxu0 %v595
      %v707 = vpop.f32.mrf.mxu0
      %v708 = vadd.f32 %v528, %v707
      %709 = vmatmul.f32.gmra.mxu0 %v597
      %v710 = vpop.f32.mrf.mxu0
      %v711 = vadd.f32 %v531, %v710
      %712 = vmatmul.f32.gmra.mxu0 %v599
      %v713 = vpop.f32.mrf.mxu0
      %v714 = vadd.f32 %v534, %v713
      %715 = vmatmul.f32.gmra.mxu0 %v601
      %v716 = vpop.f32.mrf.mxu0
      %v717 = vadd.f32 %v537, %v716
      %718 = vdwg.mxu0
      %vm719 = vcmask 1045504
      %v720 = vrot.slane %v171, 2
      %v721 = vrot.slane %v172, 2
      %v722 = vsel %vm719, %v720, %v721
      %v723 = vrot.slane %v173, 2
      %v724 = vsel %vm719, %v721, %v723
      %v725 = vrot.slane %v174, 2
      %v726 = vrot.slane %v175, 2
      %v727 = vsel %vm719, %v725, %v726
      %v728 = vrot.slane %v176, 2
      %v729 = vsel %vm719, %v726, %v728
      %v730 = vrot.slane %v177, 2
      %v731 = vrot.slane %v178, 2
      %v732 = vsel %vm719, %v730, %v731
      %v733 = vrot.slane %v179, 2
      %v734 = vsel %vm719, %v731, %v733
      %v735 = vrot.slane %v180, 2
      %v736 = vrot.slane %v181, 2
      %v737 = vsel %vm719, %v735, %v736
      %v738 = vrot.slane %v182, 2
      %v739 = vsel %vm719, %v736, %v738
      %v740 = vrot.slane %v183, 2
      %v741 = vrot.slane %v184, 2
      %v742 = vsel %vm719, %v740, %v741
      %v743 = vrot.slane %v185, 2
      %v744 = vsel %vm719, %v741, %v743
      %v745 = vrot.slane %v186, 2
      %v746 = vrot.slane %v187, 2
      %v747 = vsel %vm719, %v745, %v746
      %v748 = vrot.slane %v188, 2
      %v749 = vsel %vm719, %v746, %v748
      %v750 = vrot.slane %v189, 2
      %v751 = vrot.slane %v190, 2
      %v752 = vsel %vm719, %v750, %v751
      %v753 = vrot.slane %v191, 2
      %v754 = vsel %vm719, %v751, %v753
      %v755 = vrot.slane %v192, 2
      %v756 = vrot.slane %v193, 2
      %v757 = vsel %vm719, %v755, %v756
      %v758 = vrot.slane %v194, 2
      %v759 = vsel %vm719, %v756, %v758
      %v760 = vrot.slane %v195, 2
      %v761 = vrot.slane %v196, 2
      %v762 = vsel %vm719, %v760, %v761
      %v763 = vrot.slane %v197, 2
      %v764 = vsel %vm719, %v761, %v763
      %v765 = vrot.slane %v198, 2
      %v766 = vrot.slane %v199, 2
      %v767 = vsel %vm719, %v765, %v766
      %v768 = vrot.slane %v200, 2
      %v769 = vsel %vm719, %v766, %v768
      %v770 = vrot.slane %v201, 2
      %v771 = vrot.slane %v202, 2
      %v772 = vsel %vm719, %v770, %v771
      %v773 = vrot.slane %v203, 2
      %v774 = vsel %vm719, %v771, %v773
      %v775 = vrot.slane %v204, 2
      %v776 = vrot.slane %v205, 2
      %v777 = vsel %vm719, %v775, %v776
      %v778 = vrot.slane %v206, 2
      %v779 = vsel %vm719, %v776, %v778
      %v780 = vrot.slane %v207, 2
      %v781 = vrot.slane %v208, 2
      %v782 = vsel %vm719, %v780, %v781
      %v783 = vrot.slane %v209, 2
      %v784 = vsel %vm719, %v781, %v783
      %v785 = vrot.slane %v210, 2
      %v786 = vrot.slane %v211, 2
      %v787 = vsel %vm719, %v785, %v786
      %v788 = vrot.slane %v212, 2
      %v789 = vsel %vm719, %v786, %v788
      %v790 = vrot.slane %v213, 2
      %v791 = vrot.slane %v214, 2
      %v792 = vsel %vm719, %v790, %v791
      %v793 = vrot.slane %v215, 2
      %v794 = vsel %vm719, %v791, %v793
      %v795 = vrot.slane %v216, 2
      %v796 = vrot.slane %v217, 2
      %v797 = vsel %vm719, %v795, %v796
      %v798 = vrot.slane %v218, 2
      %v799 = vsel %vm719, %v796, %v798
      %s800 = scalar_lea.vmem %s1, 8
      %v801 = vld [vmem:[%s800] sm:$0x7]
      %v802 = vsel %vm357, %v722, 0
      %v804 = vsel %vm357, %v724, 0
      %v806 = vsel %vm357, %v727, 0
      %v808 = vsel %vm357, %v729, 0
      %v810 = vsel %vm357, %v732, 0
      %v812 = vsel %vm357, %v734, 0
      %v814 = vsel %vm357, %v737, 0
      %v816 = vsel %vm357, %v739, 0
      %v818 = vsel %vm357, %v742, 0
      %v820 = vsel %vm357, %v744, 0
      %v822 = vsel %vm357, %v747, 0
      %v824 = vsel %vm357, %v749, 0
      %v826 = vsel %vm357, %v752, 0
      %v828 = vsel %vm357, %v754, 0
      %v830 = vsel %vm357, %v757, 0
      %v832 = vsel %vm357, %v759, 0
      %v834 = vsel %vm357, %v762, 0
      %v836 = vsel %vm357, %v764, 0
      %v838 = vsel %vm357, %v767, 0
      %v840 = vsel %vm357, %v769, 0
      %v842 = vsel %vm357, %v772, 0
      %v844 = vsel %vm357, %v774, 0
      %v846 = vsel %vm357, %v777, 0
      %v848 = vsel %vm357, %v779, 0
      %v850 = vsel %vm357, %v782, 0
      %v852 = vsel %vm357, %v784, 0
      %v854 = vsel %vm357, %v787, 0
      %v856 = vsel %vm357, %v789, 0
      %v858 = vsel %vm357, %v792, 0
      %v860 = vsel %vm357, %v794, 0
      %v862 = vsel %vm357, %v797, 0
      %v864 = vsel %vm357, %v799, 0
      %v867 = vsel %vm422, %v801, 0
      %869 = vmatpush.msra.mxu0 0.0
      %870 = vmatpush.msra.mxu0 0.0
      %871 = vmatpush.msra.mxu0 0.0
      %872 = vmatpush.msra.mxu0 0.0
      %873 = vmatpush.msra.mxu0 0.0
      %874 = vmatpush.msra.mxu0 0.0
      %875 = vmatpush.msra.mxu0 0.0
      %876 = vmatpush.msra.mxu0 0.0
      %877 = vmatpush.msra.mxu0 0.0
      %878 = vmatpush.msra.mxu0 0.0
      %879 = vmatpush.msra.mxu0 0.0
      %880 = vmatpush.msra.mxu0 0.0
      %881 = vmatpush.msra.mxu0 0.0
      %882 = vmatpush.msra.mxu0 0.0
      %883 = vmatpush.msra.mxu0 0.0
      %884 = vmatpush.msra.mxu0 %v867
      %885 = vmatmul.f32.gmra.mxu0 %v802
      %v886 = vpop.f32.mrf.mxu0
      %v887 = vadd.f32 0.0, %v886
      %888 = vmatmul.f32.gmra.mxu0 %v804
      %v889 = vpop.f32.mrf.mxu0
      %v890 = vadd.f32 0.0, %v889
      %891 = vmatmul.f32.gmra.mxu0 %v806
      %v892 = vpop.f32.mrf.mxu0
      %v893 = vadd.f32 0.0, %v892
      %894 = vmatmul.f32.gmra.mxu0 %v808
      %v895 = vpop.f32.mrf.mxu0
      %v896 = vadd.f32 0.0, %v895
      %897 = vmatmul.f32.gmra.mxu0 %v810
      %v898 = vpop.f32.mrf.mxu0
      %v899 = vadd.f32 0.0, %v898
      %900 = vmatmul.f32.gmra.mxu0 %v812
      %v901 = vpop.f32.mrf.mxu0
      %v902 = vadd.f32 0.0, %v901
      %903 = vmatmul.f32.gmra.mxu0 %v814
      %v904 = vpop.f32.mrf.mxu0
      %v905 = vadd.f32 0.0, %v904
      %906 = vmatmul.f32.gmra.mxu0 %v816
      %v907 = vpop.f32.mrf.mxu0
      %v908 = vadd.f32 0.0, %v907
      %909 = vmatmul.f32.gmra.mxu0 %v818
      %v910 = vpop.f32.mrf.mxu0
      %v911 = vadd.f32 0.0, %v910
      %912 = vmatmul.f32.gmra.mxu0 %v820
      %v913 = vpop.f32.mrf.mxu0
      %v914 = vadd.f32 0.0, %v913
      %915 = vmatmul.f32.gmra.mxu0 %v822
      %v916 = vpop.f32.mrf.mxu0
      %v917 = vadd.f32 0.0, %v916
      %918 = vmatmul.f32.gmra.mxu0 %v824
      %v919 = vpop.f32.mrf.mxu0
      %v920 = vadd.f32 0.0, %v919
      %921 = vmatmul.f32.gmra.mxu0 %v826
      %v922 = vpop.f32.mrf.mxu0
      %v923 = vadd.f32 0.0, %v922
      %924 = vmatmul.f32.gmra.mxu0 %v828
      %v925 = vpop.f32.mrf.mxu0
      %v926 = vadd.f32 0.0, %v925
      %927 = vmatmul.f32.gmra.mxu0 %v830
      %v928 = vpop.f32.mrf.mxu0
      %v929 = vadd.f32 0.0, %v928
      %930 = vmatmul.f32.gmra.mxu0 %v832
      %v931 = vpop.f32.mrf.mxu0
      %v932 = vadd.f32 0.0, %v931
      %933 = vmatmul.f32.gmra.mxu0 %v834
      %v934 = vpop.f32.mrf.mxu0
      %v935 = vadd.f32 0.0, %v934
      %936 = vmatmul.f32.gmra.mxu0 %v836
      %v937 = vpop.f32.mrf.mxu0
      %v938 = vadd.f32 0.0, %v937
      %939 = vmatmul.f32.gmra.mxu0 %v838
      %v940 = vpop.f32.mrf.mxu0
      %v941 = vadd.f32 0.0, %v940
      %942 = vmatmul.f32.gmra.mxu0 %v840
      %v943 = vpop.f32.mrf.mxu0
      %v944 = vadd.f32 0.0, %v943
      %945 = vmatmul.f32.gmra.mxu0 %v842
      %v946 = vpop.f32.mrf.mxu0
      %v947 = vadd.f32 0.0, %v946
      %948 = vmatmul.f32.gmra.mxu0 %v844
      %v949 = vpop.f32.mrf.mxu0
      %v950 = vadd.f32 0.0, %v949
      %951 = vmatmul.f32.gmra.mxu0 %v846
      %v952 = vpop.f32.mrf.mxu0
      %v953 = vadd.f32 0.0, %v952
      %954 = vmatmul.f32.gmra.mxu0 %v848
      %v955 = vpop.f32.mrf.mxu0
      %v956 = vadd.f32 0.0, %v955
      %957 = vmatmul.f32.gmra.mxu0 %v850
      %v958 = vpop.f32.mrf.mxu0
      %v959 = vadd.f32 0.0, %v958
      %960 = vmatmul.f32.gmra.mxu0 %v852
      %v961 = vpop.f32.mrf.mxu0
      %v962 = vadd.f32 0.0, %v961
      %963 = vmatmul.f32.gmra.mxu0 %v854
      %v964 = vpop.f32.mrf.mxu0
      %v965 = vadd.f32 0.0, %v964
      %966 = vmatmul.f32.gmra.mxu0 %v856
      %v967 = vpop.f32.mrf.mxu0
      %v968 = vadd.f32 0.0, %v967
      %969 = vmatmul.f32.gmra.mxu0 %v858
      %v970 = vpop.f32.mrf.mxu0
      %v971 = vadd.f32 0.0, %v970
      %972 = vmatmul.f32.gmra.mxu0 %v860
      %v973 = vpop.f32.mrf.mxu0
      %v974 = vadd.f32 0.0, %v973
      %975 = vmatmul.f32.gmra.mxu0 %v862
      %v976 = vpop.f32.mrf.mxu0
      %v977 = vadd.f32 0.0, %v976
      %978 = vmatmul.f32.gmra.mxu0 %v864
      %v979 = vpop.f32.mrf.mxu0
      %v980 = vadd.f32 0.0, %v979
      %981 = vdwg.mxu0
      %v982 = vadd.f32 %v624, %v887
      %v983 = vadd.f32 %v627, %v890
      %v984 = vadd.f32 %v630, %v893
      %v985 = vadd.f32 %v633, %v896
      %v986 = vadd.f32 %v636, %v899
      %v987 = vadd.f32 %v639, %v902
      %v988 = vadd.f32 %v642, %v905
      %v989 = vadd.f32 %v645, %v908
      %v990 = vadd.f32 %v648, %v911
      %v991 = vadd.f32 %v651, %v914
      %v992 = vadd.f32 %v654, %v917
      %v993 = vadd.f32 %v657, %v920
      %v994 = vadd.f32 %v660, %v923
      %v995 = vadd.f32 %v663, %v926
      %v996 = vadd.f32 %v666, %v929
      %v997 = vadd.f32 %v669, %v932
      %v998 = vadd.f32 %v672, %v935
      %v999 = vadd.f32 %v675, %v938
      %v1000 = vadd.f32 %v678, %v941
      %v1001 = vadd.f32 %v681, %v944
      %v1002 = vadd.f32 %v684, %v947
      %v1003 = vadd.f32 %v687, %v950
      %v1004 = vadd.f32 %v690, %v953
      %v1005 = vadd.f32 %v693, %v956
      %v1006 = vadd.f32 %v696, %v959
      %v1007 = vadd.f32 %v699, %v962
      %v1008 = vadd.f32 %v702, %v965
      %v1009 = vadd.f32 %v705, %v968
      %v1010 = vadd.f32 %v708, %v971
      %v1011 = vadd.f32 %v711, %v974
      %v1012 = vadd.f32 %v714, %v977
      %v1013 = vadd.f32 %v717, %v980
      %s1014 = scalar_lea.vmem %s1, 12
      %v1015 = vld [vmem:[%s1014] sm:$0x7]
      %v1017 = vsel %vm357, %v219, 0
      %v1020 = vsel %vm357, %v220, 0
      %v1023 = vsel %vm422, %v1015, 0
      %1025 = vmatpush.msra.mxu0 0.0
      %1026 = vmatpush.msra.mxu0 0.0
      %1027 = vmatpush.msra.mxu0 0.0
      %1028 = vmatpush.msra.mxu0 0.0
      %1029 = vmatpush.msra.mxu0 0.0
      %1030 = vmatpush.msra.mxu0 0.0
      %1031 = vmatpush.msra.mxu0 0.0
      %1032 = vmatpush.msra.mxu0 0.0
      %1033 = vmatpush.msra.mxu0 0.0
      %1034 = vmatpush.msra.mxu0 0.0
      %1035 = vmatpush.msra.mxu0 0.0
      %1036 = vmatpush.msra.mxu0 0.0
      %1037 = vmatpush.msra.mxu0 0.0
      %1038 = vmatpush.msra.mxu0 0.0
      %1039 = vmatpush.msra.mxu0 0.0
      %1040 = vmatpush.msra.mxu0 %v1023
      %1041 = vmatmul.f32.gmra.mxu0 %v543
      %v1042 = vpop.f32.mrf.mxu0
      %v1043 = vadd.f32 0.0, %v1042
      %1044 = vmatmul.f32.gmra.mxu0 %v545
      %v1045 = vpop.f32.mrf.mxu0
      %v1046 = vadd.f32 0.0, %v1045
      %1047 = vmatmul.f32.gmra.mxu0 %v547
      %v1048 = vpop.f32.mrf.mxu0
      %v1049 = vadd.f32 0.0, %v1048
      %1050 = vmatmul.f32.gmra.mxu0 %v549
      %v1051 = vpop.f32.mrf.mxu0
      %v1052 = vadd.f32 0.0, %v1051
      %1053 = vmatmul.f32.gmra.mxu0 %v551
      %v1054 = vpop.f32.mrf.mxu0
      %v1055 = vadd.f32 0.0, %v1054
      %1056 = vmatmul.f32.gmra.mxu0 %v553
      %v1057 = vpop.f32.mrf.mxu0
      %v1058 = vadd.f32 0.0, %v1057
      %1059 = vmatmul.f32.gmra.mxu0 %v555
      %v1060 = vpop.f32.mrf.mxu0
      %v1061 = vadd.f32 0.0, %v1060
      %1062 = vmatmul.f32.gmra.mxu0 %v557
      %v1063 = vpop.f32.mrf.mxu0
      %v1064 = vadd.f32 0.0, %v1063
      %1065 = vmatmul.f32.gmra.mxu0 %v559
      %v1066 = vpop.f32.mrf.mxu0
      %v1067 = vadd.f32 0.0, %v1066
      %1068 = vmatmul.f32.gmra.mxu0 %v561
      %v1069 = vpop.f32.mrf.mxu0
      %v1070 = vadd.f32 0.0, %v1069
      %1071 = vmatmul.f32.gmra.mxu0 %v563
      %v1072 = vpop.f32.mrf.mxu0
      %v1073 = vadd.f32 0.0, %v1072
      %1074 = vmatmul.f32.gmra.mxu0 %v565
      %v1075 = vpop.f32.mrf.mxu0
      %v1076 = vadd.f32 0.0, %v1075
      %1077 = vmatmul.f32.gmra.mxu0 %v567
      %v1078 = vpop.f32.mrf.mxu0
      %v1079 = vadd.f32 0.0, %v1078
      %1080 = vmatmul.f32.gmra.mxu0 %v569
      %v1081 = vpop.f32.mrf.mxu0
      %v1082 = vadd.f32 0.0, %v1081
      %1083 = vmatmul.f32.gmra.mxu0 %v571
      %v1084 = vpop.f32.mrf.mxu0
      %v1085 = vadd.f32 0.0, %v1084
      %1086 = vmatmul.f32.gmra.mxu0 %v573
      %v1087 = vpop.f32.mrf.mxu0
      %v1088 = vadd.f32 0.0, %v1087
      %1089 = vmatmul.f32.gmra.mxu0 %v575
      %v1090 = vpop.f32.mrf.mxu0
      %v1091 = vadd.f32 0.0, %v1090
      %1092 = vmatmul.f32.gmra.mxu0 %v577
      %v1093 = vpop.f32.mrf.mxu0
      %v1094 = vadd.f32 0.0, %v1093
      %1095 = vmatmul.f32.gmra.mxu0 %v579
      %v1096 = vpop.f32.mrf.mxu0
      %v1097 = vadd.f32 0.0, %v1096
      %1098 = vmatmul.f32.gmra.mxu0 %v581
      %v1099 = vpop.f32.mrf.mxu0
      %v1100 = vadd.f32 0.0, %v1099
      %1101 = vmatmul.f32.gmra.mxu0 %v583
      %v1102 = vpop.f32.mrf.mxu0
      %v1103 = vadd.f32 0.0, %v1102
      %1104 = vmatmul.f32.gmra.mxu0 %v585
      %v1105 = vpop.f32.mrf.mxu0
      %v1106 = vadd.f32 0.0, %v1105
      %1107 = vmatmul.f32.gmra.mxu0 %v587
      %v1108 = vpop.f32.mrf.mxu0
      %v1109 = vadd.f32 0.0, %v1108
      %1110 = vmatmul.f32.gmra.mxu0 %v589
      %v1111 = vpop.f32.mrf.mxu0
      %v1112 = vadd.f32 0.0, %v1111
      %1113 = vmatmul.f32.gmra.mxu0 %v591
      %v1114 = vpop.f32.mrf.mxu0
      %v1115 = vadd.f32 0.0, %v1114
      %1116 = vmatmul.f32.gmra.mxu0 %v593
      %v1117 = vpop.f32.mrf.mxu0
      %v1118 = vadd.f32 0.0, %v1117
      %1119 = vmatmul.f32.gmra.mxu0 %v595
      %v1120 = vpop.f32.mrf.mxu0
      %v1121 = vadd.f32 0.0, %v1120
      %1122 = vmatmul.f32.gmra.mxu0 %v597
      %v1123 = vpop.f32.mrf.mxu0
      %v1124 = vadd.f32 0.0, %v1123
      %1125 = vmatmul.f32.gmra.mxu0 %v599
      %v1126 = vpop.f32.mrf.mxu0
      %v1127 = vadd.f32 0.0, %v1126
      %1128 = vmatmul.f32.gmra.mxu0 %v601
      %v1129 = vpop.f32.mrf.mxu0
      %v1130 = vadd.f32 0.0, %v1129
      %1131 = vmatmul.f32.gmra.mxu0 %v1017
      %v1132 = vpop.f32.mrf.mxu0
      %v1133 = vadd.f32 0.0, %v1132
      %1134 = vmatmul.f32.gmra.mxu0 %v1020
      %v1135 = vpop.f32.mrf.mxu0
      %v1136 = vadd.f32 0.0, %v1135
      %1137 = vdwg.mxu0
      %v1138 = vadd.f32 %v982, %v1043
      %v1139 = vadd.f32 %v983, %v1046
      %v1140 = vadd.f32 %v984, %v1049
      %v1141 = vadd.f32 %v985, %v1052
      %v1142 = vadd.f32 %v986, %v1055
      %v1143 = vadd.f32 %v987, %v1058
      %v1144 = vadd.f32 %v988, %v1061
      %v1145 = vadd.f32 %v989, %v1064
      %v1146 = vadd.f32 %v990, %v1067
      %v1147 = vadd.f32 %v991, %v1070
      %v1148 = vadd.f32 %v992, %v1073
      %v1149 = vadd.f32 %v993, %v1076
      %v1150 = vadd.f32 %v994, %v1079
      %v1151 = vadd.f32 %v995, %v1082
      %v1152 = vadd.f32 %v996, %v1085
      %v1153 = vadd.f32 %v997, %v1088
      %v1154 = vadd.f32 %v998, %v1091
      %v1155 = vadd.f32 %v999, %v1094
      %v1156 = vadd.f32 %v1000, %v1097
      %v1157 = vadd.f32 %v1001, %v1100
      %v1158 = vadd.f32 %v1002, %v1103
      %v1159 = vadd.f32 %v1003, %v1106
      %v1160 = vadd.f32 %v1004, %v1109
      %v1161 = vadd.f32 %v1005, %v1112
      %v1162 = vadd.f32 %v1006, %v1115
      %v1163 = vadd.f32 %v1007, %v1118
      %v1164 = vadd.f32 %v1008, %v1121
      %v1165 = vadd.f32 %v1009, %v1124
      %v1166 = vadd.f32 %v1010, %v1127
      %v1167 = vadd.f32 %v1011, %v1130
      %v1168 = vadd.f32 %v1012, %v1133
      %v1169 = vadd.f32 %v1013, %v1136
      %v1171 = vrot.slane %v219, 1
      %v1172 = vrot.slane %v220, 1
      %v1173 = vsel %vm274, %v1171, %v1172
      %v1174 = vrot.slane %v221, 1
      %v1175 = vsel %vm274, %v1172, %v1174
      %s1176 = scalar_lea.vmem %s1, 16
      %v1177 = vld [vmem:[%s1176] sm:$0x7]
      %v1178 = vsel %vm357, %v1173, 0
      %v1180 = vsel %vm357, %v1175, 0
      %v1183 = vsel %vm422, %v1177, 0
      %1185 = vmatpush.msra.mxu0 0.0
      %1186 = vmatpush.msra.mxu0 0.0
      %1187 = vmatpush.msra.mxu0 0.0
      %1188 = vmatpush.msra.mxu0 0.0
      %1189 = vmatpush.msra.mxu0 0.0
      %1190 = vmatpush.msra.mxu0 0.0
      %1191 = vmatpush.msra.mxu0 0.0
      %1192 = vmatpush.msra.mxu0 0.0
      %1193 = vmatpush.msra.mxu0 0.0
      %1194 = vmatpush.msra.mxu0 0.0
      %1195 = vmatpush.msra.mxu0 0.0
      %1196 = vmatpush.msra.mxu0 0.0
      %1197 = vmatpush.msra.mxu0 0.0
      %1198 = vmatpush.msra.mxu0 0.0
      %1199 = vmatpush.msra.mxu0 0.0
      %1200 = vmatpush.msra.mxu0 %v1183
      %1201 = vmatmul.f32.gmra.mxu0 %v362
      %v1202 = vpop.f32.mrf.mxu0
      %v1203 = vadd.f32 0.0, %v1202
      %1204 = vmatmul.f32.gmra.mxu0 %v364
      %v1205 = vpop.f32.mrf.mxu0
      %v1206 = vadd.f32 0.0, %v1205
      %1207 = vmatmul.f32.gmra.mxu0 %v366
      %v1208 = vpop.f32.mrf.mxu0
      %v1209 = vadd.f32 0.0, %v1208
      %1210 = vmatmul.f32.gmra.mxu0 %v368
      %v1211 = vpop.f32.mrf.mxu0
      %v1212 = vadd.f32 0.0, %v1211
      %1213 = vmatmul.f32.gmra.mxu0 %v370
      %v1214 = vpop.f32.mrf.mxu0
      %v1215 = vadd.f32 0.0, %v1214
      %1216 = vmatmul.f32.gmra.mxu0 %v372
      %v1217 = vpop.f32.mrf.mxu0
      %v1218 = vadd.f32 0.0, %v1217
      %1219 = vmatmul.f32.gmra.mxu0 %v374
      %v1220 = vpop.f32.mrf.mxu0
      %v1221 = vadd.f32 0.0, %v1220
      %1222 = vmatmul.f32.gmra.mxu0 %v376
      %v1223 = vpop.f32.mrf.mxu0
      %v1224 = vadd.f32 0.0, %v1223
      %1225 = vmatmul.f32.gmra.mxu0 %v378
      %v1226 = vpop.f32.mrf.mxu0
      %v1227 = vadd.f32 0.0, %v1226
      %1228 = vmatmul.f32.gmra.mxu0 %v380
      %v1229 = vpop.f32.mrf.mxu0
      %v1230 = vadd.f32 0.0, %v1229
      %1231 = vmatmul.f32.gmra.mxu0 %v382
      %v1232 = vpop.f32.mrf.mxu0
      %v1233 = vadd.f32 0.0, %v1232
      %1234 = vmatmul.f32.gmra.mxu0 %v384
      %v1235 = vpop.f32.mrf.mxu0
      %v1236 = vadd.f32 0.0, %v1235
      %1237 = vmatmul.f32.gmra.mxu0 %v386
      %v1238 = vpop.f32.mrf.mxu0
      %v1239 = vadd.f32 0.0, %v1238
      %1240 = vmatmul.f32.gmra.mxu0 %v388
      %v1241 = vpop.f32.mrf.mxu0
      %v1242 = vadd.f32 0.0, %v1241
      %1243 = vmatmul.f32.gmra.mxu0 %v390
      %v1244 = vpop.f32.mrf.mxu0
      %v1245 = vadd.f32 0.0, %v1244
      %1246 = vmatmul.f32.gmra.mxu0 %v392
      %v1247 = vpop.f32.mrf.mxu0
      %v1248 = vadd.f32 0.0, %v1247
      %1249 = vmatmul.f32.gmra.mxu0 %v394
      %v1250 = vpop.f32.mrf.mxu0
      %v1251 = vadd.f32 0.0, %v1250
      %1252 = vmatmul.f32.gmra.mxu0 %v396
      %v1253 = vpop.f32.mrf.mxu0
      %v1254 = vadd.f32 0.0, %v1253
      %1255 = vmatmul.f32.gmra.mxu0 %v398
      %v1256 = vpop.f32.mrf.mxu0
      %v1257 = vadd.f32 0.0, %v1256
      %1258 = vmatmul.f32.gmra.mxu0 %v400
      %v1259 = vpop.f32.mrf.mxu0
      %v1260 = vadd.f32 0.0, %v1259
      %1261 = vmatmul.f32.gmra.mxu0 %v402
      %v1262 = vpop.f32.mrf.mxu0
      %v1263 = vadd.f32 0.0, %v1262
      %1264 = vmatmul.f32.gmra.mxu0 %v404
      %v1265 = vpop.f32.mrf.mxu0
      %v1266 = vadd.f32 0.0, %v1265
      %1267 = vmatmul.f32.gmra.mxu0 %v406
      %v1268 = vpop.f32.mrf.mxu0
      %v1269 = vadd.f32 0.0, %v1268
      %1270 = vmatmul.f32.gmra.mxu0 %v408
      %v1271 = vpop.f32.mrf.mxu0
      %v1272 = vadd.f32 0.0, %v1271
      %1273 = vmatmul.f32.gmra.mxu0 %v410
      %v1274 = vpop.f32.mrf.mxu0
      %v1275 = vadd.f32 0.0, %v1274
      %1276 = vmatmul.f32.gmra.mxu0 %v412
      %v1277 = vpop.f32.mrf.mxu0
      %v1278 = vadd.f32 0.0, %v1277
      %1279 = vmatmul.f32.gmra.mxu0 %v414
      %v1280 = vpop.f32.mrf.mxu0
      %v1281 = vadd.f32 0.0, %v1280
      %1282 = vmatmul.f32.gmra.mxu0 %v416
      %v1283 = vpop.f32.mrf.mxu0
      %v1284 = vadd.f32 0.0, %v1283
      %1285 = vmatmul.f32.gmra.mxu0 %v418
      %v1286 = vpop.f32.mrf.mxu0
      %v1287 = vadd.f32 0.0, %v1286
      %1288 = vmatmul.f32.gmra.mxu0 %v420
      %v1289 = vpop.f32.mrf.mxu0
      %v1290 = vadd.f32 0.0, %v1289
      %1291 = vmatmul.f32.gmra.mxu0 %v1178
      %v1292 = vpop.f32.mrf.mxu0
      %v1293 = vadd.f32 0.0, %v1292
      %1294 = vmatmul.f32.gmra.mxu0 %v1180
      %v1295 = vpop.f32.mrf.mxu0
      %v1296 = vadd.f32 0.0, %v1295
      %1297 = vdwg.mxu0
      %v1298 = vadd.f32 %v1138, %v1203
      %v1299 = vadd.f32 %v1139, %v1206
      %v1300 = vadd.f32 %v1140, %v1209
      %v1301 = vadd.f32 %v1141, %v1212
      %v1302 = vadd.f32 %v1142, %v1215
      %v1303 = vadd.f32 %v1143, %v1218
      %v1304 = vadd.f32 %v1144, %v1221
      %v1305 = vadd.f32 %v1145, %v1224
      %v1306 = vadd.f32 %v1146, %v1227
      %v1307 = vadd.f32 %v1147, %v1230
      %v1308 = vadd.f32 %v1148, %v1233
      %v1309 = vadd.f32 %v1149, %v1236
      %v1310 = vadd.f32 %v1150, %v1239
      %v1311 = vadd.f32 %v1151, %v1242
      %v1312 = vadd.f32 %v1152, %v1245
      %v1313 = vadd.f32 %v1153, %v1248
      %v1314 = vadd.f32 %v1154, %v1251
      %v1315 = vadd.f32 %v1155, %v1254
      %v1316 = vadd.f32 %v1156, %v1257
      %v1317 = vadd.f32 %v1157, %v1260
      %v1318 = vadd.f32 %v1158, %v1263
      %v1319 = vadd.f32 %v1159, %v1266
      %v1320 = vadd.f32 %v1160, %v1269
      %v1321 = vadd.f32 %v1161, %v1272
      %v1322 = vadd.f32 %v1162, %v1275
      %v1323 = vadd.f32 %v1163, %v1278
      %v1324 = vadd.f32 %v1164, %v1281
      %v1325 = vadd.f32 %v1165, %v1284
      %v1326 = vadd.f32 %v1166, %v1287
      %v1327 = vadd.f32 %v1167, %v1290
      %v1328 = vadd.f32 %v1168, %v1293
      %v1329 = vadd.f32 %v1169, %v1296
      %v1330 = vrot.slane %v219, 2
      %v1331 = vrot.slane %v220, 2
      %v1332 = vsel %vm719, %v1330, %v1331
      %v1333 = vrot.slane %v221, 2
      %v1334 = vsel %vm719, %v1331, %v1333
      %s1335 = scalar_lea.vmem %s1, 20
      %v1336 = vld [vmem:[%s1335] sm:$0x7]
      %v1337 = vsel %vm357, %v1332, 0
      %v1339 = vsel %vm357, %v1334, 0
      %v1342 = vsel %vm422, %v1336, 0
      %1344 = vmatpush.msra.mxu0 0.0
      %1345 = vmatpush.msra.mxu0 0.0
      %1346 = vmatpush.msra.mxu0 0.0
      %1347 = vmatpush.msra.mxu0 0.0
      %1348 = vmatpush.msra.mxu0 0.0
      %1349 = vmatpush.msra.mxu0 0.0
      %1350 = vmatpush.msra.mxu0 0.0
      %1351 = vmatpush.msra.mxu0 0.0
      %1352 = vmatpush.msra.mxu0 0.0
      %1353 = vmatpush.msra.mxu0 0.0
      %1354 = vmatpush.msra.mxu0 0.0
      %1355 = vmatpush.msra.mxu0 0.0
      %1356 = vmatpush.msra.mxu0 0.0
      %1357 = vmatpush.msra.mxu0 0.0
      %1358 = vmatpush.msra.mxu0 0.0
      %1359 = vmatpush.msra.mxu0 %v1342
      %1360 = vmatmul.f32.gmra.mxu0 %v806
      %v1361 = vpop.f32.mrf.mxu0
      %v1362 = vadd.f32 0.0, %v1361
      %1363 = vmatmul.f32.gmra.mxu0 %v808
      %v1364 = vpop.f32.mrf.mxu0
      %v1365 = vadd.f32 0.0, %v1364
      %1366 = vmatmul.f32.gmra.mxu0 %v810
      %v1367 = vpop.f32.mrf.mxu0
      %v1368 = vadd.f32 0.0, %v1367
      %1369 = vmatmul.f32.gmra.mxu0 %v812
      %v1370 = vpop.f32.mrf.mxu0
      %v1371 = vadd.f32 0.0, %v1370
      %1372 = vmatmul.f32.gmra.mxu0 %v814
      %v1373 = vpop.f32.mrf.mxu0
      %v1374 = vadd.f32 0.0, %v1373
      %1375 = vmatmul.f32.gmra.mxu0 %v816
      %v1376 = vpop.f32.mrf.mxu0
      %v1377 = vadd.f32 0.0, %v1376
      %1378 = vmatmul.f32.gmra.mxu0 %v818
      %v1379 = vpop.f32.mrf.mxu0
      %v1380 = vadd.f32 0.0, %v1379
      %1381 = vmatmul.f32.gmra.mxu0 %v820
      %v1382 = vpop.f32.mrf.mxu0
      %v1383 = vadd.f32 0.0, %v1382
      %1384 = vmatmul.f32.gmra.mxu0 %v822
      %v1385 = vpop.f32.mrf.mxu0
      %v1386 = vadd.f32 0.0, %v1385
      %1387 = vmatmul.f32.gmra.mxu0 %v824
      %v1388 = vpop.f32.mrf.mxu0
      %v1389 = vadd.f32 0.0, %v1388
      %1390 = vmatmul.f32.gmra.mxu0 %v826
      %v1391 = vpop.f32.mrf.mxu0
      %v1392 = vadd.f32 0.0, %v1391
      %1393 = vmatmul.f32.gmra.mxu0 %v828
      %v1394 = vpop.f32.mrf.mxu0
      %v1395 = vadd.f32 0.0, %v1394
      %1396 = vmatmul.f32.gmra.mxu0 %v830
      %v1397 = vpop.f32.mrf.mxu0
      %v1398 = vadd.f32 0.0, %v1397
      %1399 = vmatmul.f32.gmra.mxu0 %v832
      %v1400 = vpop.f32.mrf.mxu0
      %v1401 = vadd.f32 0.0, %v1400
      %1402 = vmatmul.f32.gmra.mxu0 %v834
      %v1403 = vpop.f32.mrf.mxu0
      %v1404 = vadd.f32 0.0, %v1403
      %1405 = vmatmul.f32.gmra.mxu0 %v836
      %v1406 = vpop.f32.mrf.mxu0
      %v1407 = vadd.f32 0.0, %v1406
      %1408 = vmatmul.f32.gmra.mxu0 %v838
      %v1409 = vpop.f32.mrf.mxu0
      %v1410 = vadd.f32 0.0, %v1409
      %1411 = vmatmul.f32.gmra.mxu0 %v840
      %v1412 = vpop.f32.mrf.mxu0
      %v1413 = vadd.f32 0.0, %v1412
      %1414 = vmatmul.f32.gmra.mxu0 %v842
      %v1415 = vpop.f32.mrf.mxu0
      %v1416 = vadd.f32 0.0, %v1415
      %1417 = vmatmul.f32.gmra.mxu0 %v844
      %v1418 = vpop.f32.mrf.mxu0
      %v1419 = vadd.f32 0.0, %v1418
      %1420 = vmatmul.f32.gmra.mxu0 %v846
      %v1421 = vpop.f32.mrf.mxu0
      %v1422 = vadd.f32 0.0, %v1421
      %1423 = vmatmul.f32.gmra.mxu0 %v848
      %v1424 = vpop.f32.mrf.mxu0
      %v1425 = vadd.f32 0.0, %v1424
      %1426 = vmatmul.f32.gmra.mxu0 %v850
      %v1427 = vpop.f32.mrf.mxu0
      %v1428 = vadd.f32 0.0, %v1427
      %1429 = vmatmul.f32.gmra.mxu0 %v852
      %v1430 = vpop.f32.mrf.mxu0
      %v1431 = vadd.f32 0.0, %v1430
      %1432 = vmatmul.f32.gmra.mxu0 %v854
      %v1433 = vpop.f32.mrf.mxu0
      %v1434 = vadd.f32 0.0, %v1433
      %1435 = vmatmul.f32.gmra.mxu0 %v856
      %v1436 = vpop.f32.mrf.mxu0
      %v1437 = vadd.f32 0.0, %v1436
      %1438 = vmatmul.f32.gmra.mxu0 %v858
      %v1439 = vpop.f32.mrf.mxu0
      %v1440 = vadd.f32 0.0, %v1439
      %1441 = vmatmul.f32.gmra.mxu0 %v860
      %v1442 = vpop.f32.mrf.mxu0
      %v1443 = vadd.f32 0.0, %v1442
      %1444 = vmatmul.f32.gmra.mxu0 %v862
      %v1445 = vpop.f32.mrf.mxu0
      %v1446 = vadd.f32 0.0, %v1445
      %1447 = vmatmul.f32.gmra.mxu0 %v864
      %v1448 = vpop.f32.mrf.mxu0
      %v1449 = vadd.f32 0.0, %v1448
      %1450 = vmatmul.f32.gmra.mxu0 %v1337
      %v1451 = vpop.f32.mrf.mxu0
      %v1452 = vadd.f32 0.0, %v1451
      %1453 = vmatmul.f32.gmra.mxu0 %v1339
      %v1454 = vpop.f32.mrf.mxu0
      %v1455 = vadd.f32 0.0, %v1454
      %1456 = vdwg.mxu0
      %v1457 = vadd.f32 %v1298, %v1362
      %v1458 = vadd.f32 %v1299, %v1365
      %v1459 = vadd.f32 %v1300, %v1368
      %v1460 = vadd.f32 %v1301, %v1371
      %v1461 = vadd.f32 %v1302, %v1374
      %v1462 = vadd.f32 %v1303, %v1377
      %v1463 = vadd.f32 %v1304, %v1380
      %v1464 = vadd.f32 %v1305, %v1383
      %v1465 = vadd.f32 %v1306, %v1386
      %v1466 = vadd.f32 %v1307, %v1389
      %v1467 = vadd.f32 %v1308, %v1392
      %v1468 = vadd.f32 %v1309, %v1395
      %v1469 = vadd.f32 %v1310, %v1398
      %v1470 = vadd.f32 %v1311, %v1401
      %v1471 = vadd.f32 %v1312, %v1404
      %v1472 = vadd.f32 %v1313, %v1407
      %v1473 = vadd.f32 %v1314, %v1410
      %v1474 = vadd.f32 %v1315, %v1413
      %v1475 = vadd.f32 %v1316, %v1416
      %v1476 = vadd.f32 %v1317, %v1419
      %v1477 = vadd.f32 %v1318, %v1422
      %v1478 = vadd.f32 %v1319, %v1425
      %v1479 = vadd.f32 %v1320, %v1428
      %v1480 = vadd.f32 %v1321, %v1431
      %v1481 = vadd.f32 %v1322, %v1434
      %v1482 = vadd.f32 %v1323, %v1437
      %v1483 = vadd.f32 %v1324, %v1440
      %v1484 = vadd.f32 %v1325, %v1443
      %v1485 = vadd.f32 %v1326, %v1446
      %v1486 = vadd.f32 %v1327, %v1449
      %v1487 = vadd.f32 %v1328, %v1452
      %v1488 = vadd.f32 %v1329, %v1455
      %s1489 = scalar_lea.vmem %s1, 24
      %v1490 = vld [vmem:[%s1489] sm:$0x7]
      %v1492 = vsel %vm357, %v222, 0
      %v1495 = vsel %vm357, %v223, 0
      %v1498 = vsel %vm422, %v1490, 0
      %1500 = vmatpush.msra.mxu0 0.0
      %1501 = vmatpush.msra.mxu0 0.0
      %1502 = vmatpush.msra.mxu0 0.0
      %1503 = vmatpush.msra.mxu0 0.0
      %1504 = vmatpush.msra.mxu0 0.0
      %1505 = vmatpush.msra.mxu0 0.0
      %1506 = vmatpush.msra.mxu0 0.0
      %1507 = vmatpush.msra.mxu0 0.0
      %1508 = vmatpush.msra.mxu0 0.0
      %1509 = vmatpush.msra.mxu0 0.0
      %1510 = vmatpush.msra.mxu0 0.0
      %1511 = vmatpush.msra.mxu0 0.0
      %1512 = vmatpush.msra.mxu0 0.0
      %1513 = vmatpush.msra.mxu0 0.0
      %1514 = vmatpush.msra.mxu0 0.0
      %1515 = vmatpush.msra.mxu0 %v1498
      %1516 = vmatmul.f32.gmra.mxu0 %v547
      %v1517 = vpop.f32.mrf.mxu0
      %v1518 = vadd.f32 0.0, %v1517
      %1519 = vmatmul.f32.gmra.mxu0 %v549
      %v1520 = vpop.f32.mrf.mxu0
      %v1521 = vadd.f32 0.0, %v1520
      %1522 = vmatmul.f32.gmra.mxu0 %v551
      %v1523 = vpop.f32.mrf.mxu0
      %v1524 = vadd.f32 0.0, %v1523
      %1525 = vmatmul.f32.gmra.mxu0 %v553
      %v1526 = vpop.f32.mrf.mxu0
      %v1527 = vadd.f32 0.0, %v1526
      %1528 = vmatmul.f32.gmra.mxu0 %v555
      %v1529 = vpop.f32.mrf.mxu0
      %v1530 = vadd.f32 0.0, %v1529
      %1531 = vmatmul.f32.gmra.mxu0 %v557
      %v1532 = vpop.f32.mrf.mxu0
      %v1533 = vadd.f32 0.0, %v1532
      %1534 = vmatmul.f32.gmra.mxu0 %v559
      %v1535 = vpop.f32.mrf.mxu0
      %v1536 = vadd.f32 0.0, %v1535
      %1537 = vmatmul.f32.gmra.mxu0 %v561
      %v1538 = vpop.f32.mrf.mxu0
      %v1539 = vadd.f32 0.0, %v1538
      %1540 = vmatmul.f32.gmra.mxu0 %v563
      %v1541 = vpop.f32.mrf.mxu0
      %v1542 = vadd.f32 0.0, %v1541
      %1543 = vmatmul.f32.gmra.mxu0 %v565
      %v1544 = vpop.f32.mrf.mxu0
      %v1545 = vadd.f32 0.0, %v1544
      %1546 = vmatmul.f32.gmra.mxu0 %v567
      %v1547 = vpop.f32.mrf.mxu0
      %v1548 = vadd.f32 0.0, %v1547
      %1549 = vmatmul.f32.gmra.mxu0 %v569
      %v1550 = vpop.f32.mrf.mxu0
      %v1551 = vadd.f32 0.0, %v1550
      %1552 = vmatmul.f32.gmra.mxu0 %v571
      %v1553 = vpop.f32.mrf.mxu0
      %v1554 = vadd.f32 0.0, %v1553
      %1555 = vmatmul.f32.gmra.mxu0 %v573
      %v1556 = vpop.f32.mrf.mxu0
      %v1557 = vadd.f32 0.0, %v1556
      %1558 = vmatmul.f32.gmra.mxu0 %v575
      %v1559 = vpop.f32.mrf.mxu0
      %v1560 = vadd.f32 0.0, %v1559
      %1561 = vmatmul.f32.gmra.mxu0 %v577
      %v1562 = vpop.f32.mrf.mxu0
      %v1563 = vadd.f32 0.0, %v1562
      %1564 = vmatmul.f32.gmra.mxu0 %v579
      %v1565 = vpop.f32.mrf.mxu0
      %v1566 = vadd.f32 0.0, %v1565
      %1567 = vmatmul.f32.gmra.mxu0 %v581
      %v1568 = vpop.f32.mrf.mxu0
      %v1569 = vadd.f32 0.0, %v1568
      %1570 = vmatmul.f32.gmra.mxu0 %v583
      %v1571 = vpop.f32.mrf.mxu0
      %v1572 = vadd.f32 0.0, %v1571
      %1573 = vmatmul.f32.gmra.mxu0 %v585
      %v1574 = vpop.f32.mrf.mxu0
      %v1575 = vadd.f32 0.0, %v1574
      %1576 = vmatmul.f32.gmra.mxu0 %v587
      %v1577 = vpop.f32.mrf.mxu0
      %v1578 = vadd.f32 0.0, %v1577
      %1579 = vmatmul.f32.gmra.mxu0 %v589
      %v1580 = vpop.f32.mrf.mxu0
      %v1581 = vadd.f32 0.0, %v1580
      %1582 = vmatmul.f32.gmra.mxu0 %v591
      %v1583 = vpop.f32.mrf.mxu0
      %v1584 = vadd.f32 0.0, %v1583
      %1585 = vmatmul.f32.gmra.mxu0 %v593
      %v1586 = vpop.f32.mrf.mxu0
      %v1587 = vadd.f32 0.0, %v1586
      %1588 = vmatmul.f32.gmra.mxu0 %v595
      %v1589 = vpop.f32.mrf.mxu0
      %v1590 = vadd.f32 0.0, %v1589
      %1591 = vmatmul.f32.gmra.mxu0 %v597
      %v1592 = vpop.f32.mrf.mxu0
      %v1593 = vadd.f32 0.0, %v1592
      %1594 = vmatmul.f32.gmra.mxu0 %v599
      %v1595 = vpop.f32.mrf.mxu0
      %v1596 = vadd.f32 0.0, %v1595
      %1597 = vmatmul.f32.gmra.mxu0 %v601
      %v1598 = vpop.f32.mrf.mxu0
      %v1599 = vadd.f32 0.0, %v1598
      %1600 = vmatmul.f32.gmra.mxu0 %v1017
      %v1601 = vpop.f32.mrf.mxu0
      %v1602 = vadd.f32 0.0, %v1601
      %1603 = vmatmul.f32.gmra.mxu0 %v1020
      %v1604 = vpop.f32.mrf.mxu0
      %v1605 = vadd.f32 0.0, %v1604
      %1606 = vmatmul.f32.gmra.mxu0 %v1492
      %v1607 = vpop.f32.mrf.mxu0
      %v1608 = vadd.f32 0.0, %v1607
      %1609 = vmatmul.f32.gmra.mxu0 %v1495
      %v1610 = vpop.f32.mrf.mxu0
      %v1611 = vadd.f32 0.0, %v1610
      %1612 = vdwg.mxu0
      %v1613 = vadd.f32 %v1457, %v1518
      %v1614 = vadd.f32 %v1458, %v1521
      %v1615 = vadd.f32 %v1459, %v1524
      %v1616 = vadd.f32 %v1460, %v1527
      %v1617 = vadd.f32 %v1461, %v1530
      %v1618 = vadd.f32 %v1462, %v1533
      %v1619 = vadd.f32 %v1463, %v1536
      %v1620 = vadd.f32 %v1464, %v1539
      %v1621 = vadd.f32 %v1465, %v1542
      %v1622 = vadd.f32 %v1466, %v1545
      %v1623 = vadd.f32 %v1467, %v1548
      %v1624 = vadd.f32 %v1468, %v1551
      %v1625 = vadd.f32 %v1469, %v1554
      %v1626 = vadd.f32 %v1470, %v1557
      %v1627 = vadd.f32 %v1471, %v1560
      %v1628 = vadd.f32 %v1472, %v1563
      %v1629 = vadd.f32 %v1473, %v1566
      %v1630 = vadd.f32 %v1474, %v1569
      %v1631 = vadd.f32 %v1475, %v1572
      %v1632 = vadd.f32 %v1476, %v1575
      %v1633 = vadd.f32 %v1477, %v1578
      %v1634 = vadd.f32 %v1478, %v1581
      %v1635 = vadd.f32 %v1479, %v1584
      %v1636 = vadd.f32 %v1480, %v1587
      %v1637 = vadd.f32 %v1481, %v1590
      %v1638 = vadd.f32 %v1482, %v1593
      %v1639 = vadd.f32 %v1483, %v1596
      %v1640 = vadd.f32 %v1484, %v1599
      %v1641 = vadd.f32 %v1485, %v1602
      %v1642 = vadd.f32 %v1486, %v1605
      %v1643 = vadd.f32 %v1487, %v1608
      %v1644 = vadd.f32 %v1488, %v1611
      %v1646 = vrot.slane %v222, 1
      %v1647 = vrot.slane %v223, 1
      %v1648 = vsel %vm274, %v1646, %v1647
      %v1649 = vrot.slane %v224, 1
      %v1650 = vsel %vm274, %v1647, %v1649
      %s1651 = scalar_lea.vmem %s1, 28
      %v1652 = vld [vmem:[%s1651] sm:$0x7]
      %v1653 = vsel %vm357, %v1648, 0
      %v1655 = vsel %vm357, %v1650, 0
      %v1658 = vsel %vm422, %v1652, 0
      %1660 = vmatpush.msra.mxu0 0.0
      %1661 = vmatpush.msra.mxu0 0.0
      %1662 = vmatpush.msra.mxu0 0.0
      %1663 = vmatpush.msra.mxu0 0.0
      %1664 = vmatpush.msra.mxu0 0.0
      %1665 = vmatpush.msra.mxu0 0.0
      %1666 = vmatpush.msra.mxu0 0.0
      %1667 = vmatpush.msra.mxu0 0.0
      %1668 = vmatpush.msra.mxu0 0.0
      %1669 = vmatpush.msra.mxu0 0.0
      %1670 = vmatpush.msra.mxu0 0.0
      %1671 = vmatpush.msra.mxu0 0.0
      %1672 = vmatpush.msra.mxu0 0.0
      %1673 = vmatpush.msra.mxu0 0.0
      %1674 = vmatpush.msra.mxu0 0.0
      %1675 = vmatpush.msra.mxu0 %v1658
      %1676 = vmatmul.f32.gmra.mxu0 %v366
      %v1677 = vpop.f32.mrf.mxu0
      %v1678 = vadd.f32 0.0, %v1677
      %1679 = vmatmul.f32.gmra.mxu0 %v368
      %v1680 = vpop.f32.mrf.mxu0
      %v1681 = vadd.f32 0.0, %v1680
      %1682 = vmatmul.f32.gmra.mxu0 %v370
      %v1683 = vpop.f32.mrf.mxu0
      %v1684 = vadd.f32 0.0, %v1683
      %1685 = vmatmul.f32.gmra.mxu0 %v372
      %v1686 = vpop.f32.mrf.mxu0
      %v1687 = vadd.f32 0.0, %v1686
      %1688 = vmatmul.f32.gmra.mxu0 %v374
      %v1689 = vpop.f32.mrf.mxu0
      %v1690 = vadd.f32 0.0, %v1689
      %1691 = vmatmul.f32.gmra.mxu0 %v376
      %v1692 = vpop.f32.mrf.mxu0
      %v1693 = vadd.f32 0.0, %v1692
      %1694 = vmatmul.f32.gmra.mxu0 %v378
      %v1695 = vpop.f32.mrf.mxu0
      %v1696 = vadd.f32 0.0, %v1695
      %1697 = vmatmul.f32.gmra.mxu0 %v380
      %v1698 = vpop.f32.mrf.mxu0
      %v1699 = vadd.f32 0.0, %v1698
      %1700 = vmatmul.f32.gmra.mxu0 %v382
      %v1701 = vpop.f32.mrf.mxu0
      %v1702 = vadd.f32 0.0, %v1701
      %1703 = vmatmul.f32.gmra.mxu0 %v384
      %v1704 = vpop.f32.mrf.mxu0
      %v1705 = vadd.f32 0.0, %v1704
      %1706 = vmatmul.f32.gmra.mxu0 %v386
      %v1707 = vpop.f32.mrf.mxu0
      %v1708 = vadd.f32 0.0, %v1707
      %1709 = vmatmul.f32.gmra.mxu0 %v388
      %v1710 = vpop.f32.mrf.mxu0
      %v1711 = vadd.f32 0.0, %v1710
      %1712 = vmatmul.f32.gmra.mxu0 %v390
      %v1713 = vpop.f32.mrf.mxu0
      %v1714 = vadd.f32 0.0, %v1713
      %1715 = vmatmul.f32.gmra.mxu0 %v392
      %v1716 = vpop.f32.mrf.mxu0
      %v1717 = vadd.f32 0.0, %v1716
      %1718 = vmatmul.f32.gmra.mxu0 %v394
      %v1719 = vpop.f32.mrf.mxu0
      %v1720 = vadd.f32 0.0, %v1719
      %1721 = vmatmul.f32.gmra.mxu0 %v396
      %v1722 = vpop.f32.mrf.mxu0
      %v1723 = vadd.f32 0.0, %v1722
      %1724 = vmatmul.f32.gmra.mxu0 %v398
      %v1725 = vpop.f32.mrf.mxu0
      %v1726 = vadd.f32 0.0, %v1725
      %1727 = vmatmul.f32.gmra.mxu0 %v400
      %v1728 = vpop.f32.mrf.mxu0
      %v1729 = vadd.f32 0.0, %v1728
      %1730 = vmatmul.f32.gmra.mxu0 %v402
      %v1731 = vpop.f32.mrf.mxu0
      %v1732 = vadd.f32 0.0, %v1731
      %1733 = vmatmul.f32.gmra.mxu0 %v404
      %v1734 = vpop.f32.mrf.mxu0
      %v1735 = vadd.f32 0.0, %v1734
      %1736 = vmatmul.f32.gmra.mxu0 %v406
      %v1737 = vpop.f32.mrf.mxu0
      %v1738 = vadd.f32 0.0, %v1737
      %1739 = vmatmul.f32.gmra.mxu0 %v408
      %v1740 = vpop.f32.mrf.mxu0
      %v1741 = vadd.f32 0.0, %v1740
      %1742 = vmatmul.f32.gmra.mxu0 %v410
      %v1743 = vpop.f32.mrf.mxu0
      %v1744 = vadd.f32 0.0, %v1743
      %1745 = vmatmul.f32.gmra.mxu0 %v412
      %v1746 = vpop.f32.mrf.mxu0
      %v1747 = vadd.f32 0.0, %v1746
      %1748 = vmatmul.f32.gmra.mxu0 %v414
      %v1749 = vpop.f32.mrf.mxu0
      %v1750 = vadd.f32 0.0, %v1749
      %1751 = vmatmul.f32.gmra.mxu0 %v416
      %v1752 = vpop.f32.mrf.mxu0
      %v1753 = vadd.f32 0.0, %v1752
      %1754 = vmatmul.f32.gmra.mxu0 %v418
      %v1755 = vpop.f32.mrf.mxu0
      %v1756 = vadd.f32 0.0, %v1755
      %1757 = vmatmul.f32.gmra.mxu0 %v420
      %v1758 = vpop.f32.mrf.mxu0
      %v1759 = vadd.f32 0.0, %v1758
      %1760 = vmatmul.f32.gmra.mxu0 %v1178
      %v1761 = vpop.f32.mrf.mxu0
      %v1762 = vadd.f32 0.0, %v1761
      %1763 = vmatmul.f32.gmra.mxu0 %v1180
      %v1764 = vpop.f32.mrf.mxu0
      %v1765 = vadd.f32 0.0, %v1764
      %1766 = vmatmul.f32.gmra.mxu0 %v1653
      %v1767 = vpop.f32.mrf.mxu0
      %v1768 = vadd.f32 0.0, %v1767
      %1769 = vmatmul.f32.gmra.mxu0 %v1655
      %v1770 = vpop.f32.mrf.mxu0
      %v1771 = vadd.f32 0.0, %v1770
      %1772 = vdwg.mxu0
      %v1773 = vadd.f32 %v1613, %v1678
      %v1774 = vadd.f32 %v1614, %v1681
      %v1775 = vadd.f32 %v1615, %v1684
      %v1776 = vadd.f32 %v1616, %v1687
      %v1777 = vadd.f32 %v1617, %v1690
      %v1778 = vadd.f32 %v1618, %v1693
      %v1779 = vadd.f32 %v1619, %v1696
      %v1780 = vadd.f32 %v1620, %v1699
      %v1781 = vadd.f32 %v1621, %v1702
      %v1782 = vadd.f32 %v1622, %v1705
      %v1783 = vadd.f32 %v1623, %v1708
      %v1784 = vadd.f32 %v1624, %v1711
      %v1785 = vadd.f32 %v1625, %v1714
      %v1786 = vadd.f32 %v1626, %v1717
      %v1787 = vadd.f32 %v1627, %v1720
      %v1788 = vadd.f32 %v1628, %v1723
      %v1789 = vadd.f32 %v1629, %v1726
      %v1790 = vadd.f32 %v1630, %v1729
      %v1791 = vadd.f32 %v1631, %v1732
      %v1792 = vadd.f32 %v1632, %v1735
      %v1793 = vadd.f32 %v1633, %v1738
      %v1794 = vadd.f32 %v1634, %v1741
      %v1795 = vadd.f32 %v1635, %v1744
      %v1796 = vadd.f32 %v1636, %v1747
      %v1797 = vadd.f32 %v1637, %v1750
      %v1798 = vadd.f32 %v1638, %v1753
      %v1799 = vadd.f32 %v1639, %v1756
      %v1800 = vadd.f32 %v1640, %v1759
      %v1801 = vadd.f32 %v1641, %v1762
      %v1802 = vadd.f32 %v1642, %v1765
      %v1803 = vadd.f32 %v1643, %v1768
      %v1804 = vadd.f32 %v1644, %v1771
      %v1805 = vrot.slane %v222, 2
      %v1806 = vrot.slane %v223, 2
      %v1807 = vsel %vm719, %v1805, %v1806
      %v1808 = vrot.slane %v224, 2
      %v1809 = vsel %vm719, %v1806, %v1808
      %s1810 = scalar_lea.vmem %s1, 32
      %v1811 = vld [vmem:[%s1810] sm:$0x7]
      %v1812 = vsel %vm357, %v1807, 0
      %v1814 = vsel %vm357, %v1809, 0
      %v1817 = vsel %vm422, %v1811, 0
      %1819 = vmatpush.msra.mxu0 0.0
      %1820 = vmatpush.msra.mxu0 0.0
      %1821 = vmatpush.msra.mxu0 0.0
      %1822 = vmatpush.msra.mxu0 0.0
      %1823 = vmatpush.msra.mxu0 0.0
      %1824 = vmatpush.msra.mxu0 0.0
      %1825 = vmatpush.msra.mxu0 0.0
      %1826 = vmatpush.msra.mxu0 0.0
      %1827 = vmatpush.msra.mxu0 0.0
      %1828 = vmatpush.msra.mxu0 0.0
      %1829 = vmatpush.msra.mxu0 0.0
      %1830 = vmatpush.msra.mxu0 0.0
      %1831 = vmatpush.msra.mxu0 0.0
      %1832 = vmatpush.msra.mxu0 0.0
      %1833 = vmatpush.msra.mxu0 0.0
      %1834 = vmatpush.msra.mxu0 %v1817
      %1835 = vmatmul.f32.gmra.mxu0 %v810
      %v1836 = vpop.f32.mrf.mxu0
      %v1837 = vadd.f32 0.0, %v1836
      %1838 = vmatmul.f32.gmra.mxu0 %v812
      %v1839 = vpop.f32.mrf.mxu0
      %v1840 = vadd.f32 0.0, %v1839
      %1841 = vmatmul.f32.gmra.mxu0 %v814
      %v1842 = vpop.f32.mrf.mxu0
      %v1843 = vadd.f32 0.0, %v1842
      %1844 = vmatmul.f32.gmra.mxu0 %v816
      %v1845 = vpop.f32.mrf.mxu0
      %v1846 = vadd.f32 0.0, %v1845
      %1847 = vmatmul.f32.gmra.mxu0 %v818
      %v1848 = vpop.f32.mrf.mxu0
      %v1849 = vadd.f32 0.0, %v1848
      %1850 = vmatmul.f32.gmra.mxu0 %v820
      %v1851 = vpop.f32.mrf.mxu0
      %v1852 = vadd.f32 0.0, %v1851
      %1853 = vmatmul.f32.gmra.mxu0 %v822
      %v1854 = vpop.f32.mrf.mxu0
      %v1855 = vadd.f32 0.0, %v1854
      %1856 = vmatmul.f32.gmra.mxu0 %v824
      %v1857 = vpop.f32.mrf.mxu0
      %v1858 = vadd.f32 0.0, %v1857
      %1859 = vmatmul.f32.gmra.mxu0 %v826
      %v1860 = vpop.f32.mrf.mxu0
      %v1861 = vadd.f32 0.0, %v1860
      %1862 = vmatmul.f32.gmra.mxu0 %v828
      %v1863 = vpop.f32.mrf.mxu0
      %v1864 = vadd.f32 0.0, %v1863
      %1865 = vmatmul.f32.gmra.mxu0 %v830
      %v1866 = vpop.f32.mrf.mxu0
      %v1867 = vadd.f32 0.0, %v1866
      %1868 = vmatmul.f32.gmra.mxu0 %v832
      %v1869 = vpop.f32.mrf.mxu0
      %v1870 = vadd.f32 0.0, %v1869
      %1871 = vmatmul.f32.gmra.mxu0 %v834
      %v1872 = vpop.f32.mrf.mxu0
      %v1873 = vadd.f32 0.0, %v1872
      %1874 = vmatmul.f32.gmra.mxu0 %v836
      %v1875 = vpop.f32.mrf.mxu0
      %v1876 = vadd.f32 0.0, %v1875
      %1877 = vmatmul.f32.gmra.mxu0 %v838
      %v1878 = vpop.f32.mrf.mxu0
      %v1879 = vadd.f32 0.0, %v1878
      %1880 = vmatmul.f32.gmra.mxu0 %v840
      %v1881 = vpop.f32.mrf.mxu0
      %v1882 = vadd.f32 0.0, %v1881
      %1883 = vmatmul.f32.gmra.mxu0 %v842
      %v1884 = vpop.f32.mrf.mxu0
      %v1885 = vadd.f32 0.0, %v1884
      %1886 = vmatmul.f32.gmra.mxu0 %v844
      %v1887 = vpop.f32.mrf.mxu0
      %v1888 = vadd.f32 0.0, %v1887
      %1889 = vmatmul.f32.gmra.mxu0 %v846
      %v1890 = vpop.f32.mrf.mxu0
      %v1891 = vadd.f32 0.0, %v1890
      %1892 = vmatmul.f32.gmra.mxu0 %v848
      %v1893 = vpop.f32.mrf.mxu0
      %v1894 = vadd.f32 0.0, %v1893
      %1895 = vmatmul.f32.gmra.mxu0 %v850
      %v1896 = vpop.f32.mrf.mxu0
      %v1897 = vadd.f32 0.0, %v1896
      %1898 = vmatmul.f32.gmra.mxu0 %v852
      %v1899 = vpop.f32.mrf.mxu0
      %v1900 = vadd.f32 0.0, %v1899
      %1901 = vmatmul.f32.gmra.mxu0 %v854
      %v1902 = vpop.f32.mrf.mxu0
      %v1903 = vadd.f32 0.0, %v1902
      %1904 = vmatmul.f32.gmra.mxu0 %v856
      %v1905 = vpop.f32.mrf.mxu0
      %v1906 = vadd.f32 0.0, %v1905
      %1907 = vmatmul.f32.gmra.mxu0 %v858
      %v1908 = vpop.f32.mrf.mxu0
      %v1909 = vadd.f32 0.0, %v1908
      %1910 = vmatmul.f32.gmra.mxu0 %v860
      %v1911 = vpop.f32.mrf.mxu0
      %v1912 = vadd.f32 0.0, %v1911
      %1913 = vmatmul.f32.gmra.mxu0 %v862
      %v1914 = vpop.f32.mrf.mxu0
      %v1915 = vadd.f32 0.0, %v1914
      %1916 = vmatmul.f32.gmra.mxu0 %v864
      %v1917 = vpop.f32.mrf.mxu0
      %v1918 = vadd.f32 0.0, %v1917
      %1919 = vmatmul.f32.gmra.mxu0 %v1337
      %v1920 = vpop.f32.mrf.mxu0
      %v1921 = vadd.f32 0.0, %v1920
      %1922 = vmatmul.f32.gmra.mxu0 %v1339
      %v1923 = vpop.f32.mrf.mxu0
      %v1924 = vadd.f32 0.0, %v1923
      %1925 = vmatmul.f32.gmra.mxu0 %v1812
      %v1926 = vpop.f32.mrf.mxu0
      %v1927 = vadd.f32 0.0, %v1926
      %1928 = vmatmul.f32.gmra.mxu0 %v1814
      %v1929 = vpop.f32.mrf.mxu0
      %v1930 = vadd.f32 0.0, %v1929
      %1931 = vdwg.mxu0
      %v1932 = vadd.f32 %v1773, %v1837
      %v1933 = vadd.f32 %v1774, %v1840
      %v1934 = vadd.f32 %v1775, %v1843
      %v1935 = vadd.f32 %v1776, %v1846
      %v1936 = vadd.f32 %v1777, %v1849
      %v1937 = vadd.f32 %v1778, %v1852
      %v1938 = vadd.f32 %v1779, %v1855
      %v1939 = vadd.f32 %v1780, %v1858
      %v1940 = vadd.f32 %v1781, %v1861
      %v1941 = vadd.f32 %v1782, %v1864
      %v1942 = vadd.f32 %v1783, %v1867
      %v1943 = vadd.f32 %v1784, %v1870
      %v1944 = vadd.f32 %v1785, %v1873
      %v1945 = vadd.f32 %v1786, %v1876
      %v1946 = vadd.f32 %v1787, %v1879
      %v1947 = vadd.f32 %v1788, %v1882
      %v1948 = vadd.f32 %v1789, %v1885
      %v1949 = vadd.f32 %v1790, %v1888
      %v1950 = vadd.f32 %v1791, %v1891
      %v1951 = vadd.f32 %v1792, %v1894
      %v1952 = vadd.f32 %v1793, %v1897
      %v1953 = vadd.f32 %v1794, %v1900
      %v1954 = vadd.f32 %v1795, %v1903
      %v1955 = vadd.f32 %v1796, %v1906
      %v1956 = vadd.f32 %v1797, %v1909
      %v1957 = vadd.f32 %v1798, %v1912
      %v1958 = vadd.f32 %v1799, %v1915
      %v1959 = vadd.f32 %v1800, %v1918
      %v1960 = vadd.f32 %v1801, %v1921
      %v1961 = vadd.f32 %v1802, %v1924
      %v1962 = vadd.f32 %v1803, %v1927
      %v1963 = vadd.f32 %v1804, %v1930
      %v1964 = vld [vmem:[%s2] sm:$0x1]
      %v1966 = vperm.slane %v1964, 0
      %v1968 = vadd.f32 %v1932, %v1966
      %v1969 = vadd.f32 %v1933, %v1966
      %v1970 = vadd.f32 %v1934, %v1966
      %v1971 = vadd.f32 %v1935, %v1966
      %v1972 = vadd.f32 %v1936, %v1966
      %v1973 = vadd.f32 %v1937, %v1966
      %v1974 = vadd.f32 %v1938, %v1966
      %v1975 = vadd.f32 %v1939, %v1966
      %v1976 = vadd.f32 %v1940, %v1966
      %v1977 = vadd.f32 %v1941, %v1966
      %v1978 = vadd.f32 %v1942, %v1966
      %v1979 = vadd.f32 %v1943, %v1966
      %v1980 = vadd.f32 %v1944, %v1966
      %v1981 = vadd.f32 %v1945, %v1966
      %v1982 = vadd.f32 %v1946, %v1966
      %v1983 = vadd.f32 %v1947, %v1966
      %v1984 = vadd.f32 %v1948, %v1966
      %v1985 = vadd.f32 %v1949, %v1966
      %v1986 = vadd.f32 %v1950, %v1966
      %v1987 = vadd.f32 %v1951, %v1966
      %v1988 = vadd.f32 %v1952, %v1966
      %v1989 = vadd.f32 %v1953, %v1966
      %v1990 = vadd.f32 %v1954, %v1966
      %v1991 = vadd.f32 %v1955, %v1966
      %v1992 = vadd.f32 %v1956, %v1966
      %v1993 = vadd.f32 %v1957, %v1966
      %v1994 = vadd.f32 %v1958, %v1966
      %v1995 = vadd.f32 %v1959, %v1966
      %v1996 = vadd.f32 %v1960, %v1966
      %v1997 = vadd.f32 %v1961, %v1966
      %v1998 = vadd.f32 %v1962, %v1966
      %v1999 = vadd.f32 %v1963, %v1966
      %v2000 = vmax.f32 %v1968, 0.0
      %v2001 = vmax.f32 %v1969, 0.0
      %v2002 = vmax.f32 %v1970, 0.0
      %v2003 = vmax.f32 %v1971, 0.0
      %v2004 = vmax.f32 %v1972, 0.0
      %v2005 = vmax.f32 %v1973, 0.0
      %v2006 = vmax.f32 %v1974, 0.0
      %v2007 = vmax.f32 %v1975, 0.0
      %v2008 = vmax.f32 %v1976, 0.0
      %v2009 = vmax.f32 %v1977, 0.0
      %v2010 = vmax.f32 %v1978, 0.0
      %v2011 = vmax.f32 %v1979, 0.0
      %v2012 = vmax.f32 %v1980, 0.0
      %v2013 = vmax.f32 %v1981, 0.0
      %v2014 = vmax.f32 %v1982, 0.0
      %v2015 = vmax.f32 %v1983, 0.0
      %v2016 = vmax.f32 %v1984, 0.0
      %v2017 = vmax.f32 %v1985, 0.0
      %v2018 = vmax.f32 %v1986, 0.0
      %v2019 = vmax.f32 %v1987, 0.0
      %v2020 = vmax.f32 %v1988, 0.0
      %v2021 = vmax.f32 %v1989, 0.0
      %v2022 = vmax.f32 %v1990, 0.0
      %v2023 = vmax.f32 %v1991, 0.0
      %v2024 = vmax.f32 %v1992, 0.0
      %v2025 = vmax.f32 %v1993, 0.0
      %v2026 = vmax.f32 %v1994, 0.0
      %v2027 = vmax.f32 %v1995, 0.0
      %v2028 = vmax.f32 %v1996, 0.0
      %v2029 = vmax.f32 %v1997, 0.0
      %v2030 = vmax.f32 %v1998, 0.0
      %v2031 = vmax.f32 %v1999, 0.0
      %vm2032 = vcmask 130048
      %v2033 = vsel %vm2032, %v2000, -inf
      %v2034 = vsel %vm2032, %v2002, -inf
      %v2035 = vmax.f32 %v2033, %v2034
      %v2036 = vsel %vm2032, %v2001, -inf
      %v2037 = vsel %vm2032, %v2003, -inf
      %v2038 = vmax.f32 %v2036, %v2037
      %v2039 = vsel %vm2032, %v2004, -inf
      %v2040 = vsel %vm2032, %v2006, -inf
      %v2041 = vmax.f32 %v2039, %v2040
      %v2042 = vsel %vm2032, %v2005, -inf
      %v2043 = vsel %vm2032, %v2007, -inf
      %v2044 = vmax.f32 %v2042, %v2043
      %v2045 = vsel %vm2032, %v2008, -inf
      %v2046 = vsel %vm2032, %v2010, -inf
      %v2047 = vmax.f32 %v2045, %v2046
      %v2048 = vsel %vm2032, %v2009, -inf
      %v2049 = vsel %vm2032, %v2011, -inf
      %v2050 = vmax.f32 %v2048, %v2049
      %v2051 = vsel %vm2032, %v2012, -inf
      %v2052 = vsel %vm2032, %v2014, -inf
      %v2053 = vmax.f32 %v2051, %v2052
      %v2054 = vsel %vm2032, %v2013, -inf
      %v2055 = vsel %vm2032, %v2015, -inf
      %v2056 = vmax.f32 %v2054, %v2055
      %v2057 = vsel %vm2032, %v2016, -inf
      %v2058 = vsel %vm2032, %v2018, -inf
      %v2059 = vmax.f32 %v2057, %v2058
      %v2060 = vsel %vm2032, %v2017, -inf
      %v2061 = vsel %vm2032, %v2019, -inf
      %v2062 = vmax.f32 %v2060, %v2061
      %v2063 = vsel %vm2032, %v2020, -inf
      %v2064 = vsel %vm2032, %v2022, -inf
      %v2065 = vmax.f32 %v2063, %v2064
      %v2066 = vsel %vm2032, %v2021, -inf
      %v2067 = vsel %vm2032, %v2023, -inf
      %v2068 = vmax.f32 %v2066, %v2067
      %v2069 = vsel %vm2032, %v2024, -inf
      %v2070 = vsel %vm2032, %v2026, -inf
      %v2071 = vmax.f32 %v2069, %v2070
      %v2072 = vsel %vm2032, %v2025, -inf
      %v2073 = vsel %vm2032, %v2027, -inf
      %v2074 = vmax.f32 %v2072, %v2073
      %v2075 = vsel %vm2032, %v2028, -inf
      %v2076 = vsel %vm2032, %v2030, -inf
      %v2077 = vmax.f32 %v2075, %v2076
      %v2078 = vsel %vm2032, %v2029, -inf
      %v2079 = vsel %vm2032, %v2031, -inf
      %v2080 = vmax.f32 %v2078, %v2079
      %v2097 = vrot.slane %v2035, 2
      %v2098 = vrot.slane %v2035, 4
      %v2099 = vrot.slane %v2035, 6
      %v2100 = vrot.slane %v2038, 2
      %v2101 = vrot.slane %v2038, 4
      %v2102 = vrot.slane %v2038, 6
      %v2103 = vrot.slane %v2041, 2
      %v2104 = vrot.slane %v2041, 4
      %v2105 = vrot.slane %v2041, 6
      %v2106 = vrot.slane %v2044, 2
      %v2107 = vrot.slane %v2044, 4
      %v2108 = vrot.slane %v2044, 6
      %v2109 = vrot.slane %v2047, 2
      %v2110 = vrot.slane %v2047, 4
      %v2111 = vrot.slane %v2047, 6
      %v2112 = vrot.slane %v2050, 2
      %v2113 = vrot.slane %v2050, 4
      %v2114 = vrot.slane %v2050, 6
      %v2115 = vrot.slane %v2053, 2
      %v2116 = vrot.slane %v2053, 4
      %v2117 = vrot.slane %v2053, 6
      %v2118 = vrot.slane %v2056, 2
      %v2119 = vrot.slane %v2056, 4
      %v2120 = vrot.slane %v2056, 6
      %v2121 = vrot.slane %v2059, 2
      %v2122 = vrot.slane %v2059, 4
      %v2123 = vrot.slane %v2059, 6
      %v2124 = vrot.slane %v2062, 2
      %v2125 = vrot.slane %v2062, 4
      %v2126 = vrot.slane %v2062, 6
      %v2127 = vrot.slane %v2065, 2
      %v2128 = vrot.slane %v2065, 4
      %v2129 = vrot.slane %v2065, 6
      %v2130 = vrot.slane %v2068, 2
      %v2131 = vrot.slane %v2068, 4
      %v2132 = vrot.slane %v2068, 6
      %v2133 = vrot.slane %v2071, 2
      %v2134 = vrot.slane %v2071, 4
      %v2135 = vrot.slane %v2071, 6
      %v2136 = vrot.slane %v2074, 2
      %v2137 = vrot.slane %v2074, 4
      %v2138 = vrot.slane %v2074, 6
      %v2139 = vrot.slane %v2077, 2
      %v2140 = vrot.slane %v2077, 4
      %v2141 = vrot.slane %v2077, 6
      %v2142 = vrot.slane %v2080, 2
      %v2143 = vrot.slane %v2080, 4
      %v2144 = vrot.slane %v2080, 6
      %vm2193 = vcmask 123904
      %v2194 = vsel %vm2193, %v2035, -inf
      %v2195 = vrot.slane %v2194, 4
      %v2196 = vmax.f32 %v2194, %v2195
      %v2197 = vrot.slane %v2196, 2
      %v2198 = vmax.f32 %v2196, %v2197
      %v2199 = vrot.slane %v2198, 1
      %v2200 = vmax.f32 %v2198, %v2199
      %v2201 = vsel %vm2193, %v2097, -inf
      %v2202 = vrot.slane %v2201, 4
      %v2203 = vmax.f32 %v2201, %v2202
      %v2204 = vrot.slane %v2203, 2
      %v2205 = vmax.f32 %v2203, %v2204
      %v2206 = vrot.slane %v2205, 1
      %v2207 = vmax.f32 %v2205, %v2206
      %v2208 = vsel %vm2193, %v2098, -inf
      %v2209 = vrot.slane %v2208, 4
      %v2210 = vmax.f32 %v2208, %v2209
      %v2211 = vrot.slane %v2210, 2
      %v2212 = vmax.f32 %v2210, %v2211
      %v2213 = vrot.slane %v2212, 1
      %v2214 = vmax.f32 %v2212, %v2213
      %v2215 = vsel %vm2193, %v2099, -inf
      %v2216 = vrot.slane %v2215, 4
      %v2217 = vmax.f32 %v2215, %v2216
      %v2218 = vrot.slane %v2217, 2
      %v2219 = vmax.f32 %v2217, %v2218
      %v2220 = vrot.slane %v2219, 1
      %v2221 = vmax.f32 %v2219, %v2220
      %v2222 = vsel %vm2193, %v2038, -inf
      %v2223 = vrot.slane %v2222, 4
      %v2224 = vmax.f32 %v2222, %v2223
      %v2225 = vrot.slane %v2224, 2
      %v2226 = vmax.f32 %v2224, %v2225
      %v2227 = vrot.slane %v2226, 1
      %v2228 = vmax.f32 %v2226, %v2227
      %v2229 = vsel %vm2193, %v2100, -inf
      %v2230 = vrot.slane %v2229, 4
      %v2231 = vmax.f32 %v2229, %v2230
      %v2232 = vrot.slane %v2231, 2
      %v2233 = vmax.f32 %v2231, %v2232
      %v2234 = vrot.slane %v2233, 1
      %v2235 = vmax.f32 %v2233, %v2234
      %v2236 = vsel %vm2193, %v2101, -inf
      %v2237 = vrot.slane %v2236, 4
      %v2238 = vmax.f32 %v2236, %v2237
      %v2239 = vrot.slane %v2238, 2
      %v2240 = vmax.f32 %v2238, %v2239
      %v2241 = vrot.slane %v2240, 1
      %v2242 = vmax.f32 %v2240, %v2241
      %v2243 = vsel %vm2193, %v2102, -inf
      %v2244 = vrot.slane %v2243, 4
      %v2245 = vmax.f32 %v2243, %v2244
      %v2246 = vrot.slane %v2245, 2
      %v2247 = vmax.f32 %v2245, %v2246
      %v2248 = vrot.slane %v2247, 1
      %v2249 = vmax.f32 %v2247, %v2248
      %v2250 = vsel %vm2193, %v2041, -inf
      %v2251 = vrot.slane %v2250, 4
      %v2252 = vmax.f32 %v2250, %v2251
      %v2253 = vrot.slane %v2252, 2
      %v2254 = vmax.f32 %v2252, %v2253
      %v2255 = vrot.slane %v2254, 1
      %v2256 = vmax.f32 %v2254, %v2255
      %v2257 = vsel %vm2193, %v2103, -inf
      %v2258 = vrot.slane %v2257, 4
      %v2259 = vmax.f32 %v2257, %v2258
      %v2260 = vrot.slane %v2259, 2
      %v2261 = vmax.f32 %v2259, %v2260
      %v2262 = vrot.slane %v2261, 1
      %v2263 = vmax.f32 %v2261, %v2262
      %v2264 = vsel %vm2193, %v2104, -inf
      %v2265 = vrot.slane %v2264, 4
      %v2266 = vmax.f32 %v2264, %v2265
      %v2267 = vrot.slane %v2266, 2
      %v2268 = vmax.f32 %v2266, %v2267
      %v2269 = vrot.slane %v2268, 1
      %v2270 = vmax.f32 %v2268, %v2269
      %v2271 = vsel %vm2193, %v2105, -inf
      %v2272 = vrot.slane %v2271, 4
      %v2273 = vmax.f32 %v2271, %v2272
      %v2274 = vrot.slane %v2273, 2
      %v2275 = vmax.f32 %v2273, %v2274
      %v2276 = vrot.slane %v2275, 1
      %v2277 = vmax.f32 %v2275, %v2276
      %v2278 = vsel %vm2193, %v2044, -inf
      %v2279 = vrot.slane %v2278, 4
      %v2280 = vmax.f32 %v2278, %v2279
      %v2281 = vrot.slane %v2280, 2
      %v2282 = vmax.f32 %v2280, %v2281
      %v2283 = vrot.slane %v2282, 1
      %v2284 = vmax.f32 %v2282, %v2283
      %v2285 = vsel %vm2193, %v2106, -inf
      %v2286 = vrot.slane %v2285, 4
      %v2287 = vmax.f32 %v2285, %v2286
      %v2288 = vrot.slane %v2287, 2
      %v2289 = vmax.f32 %v2287, %v2288
      %v2290 = vrot.slane %v2289, 1
      %v2291 = vmax.f32 %v2289, %v2290
      %v2292 = vsel %vm2193, %v2107, -inf
      %v2293 = vrot.slane %v2292, 4
      %v2294 = vmax.f32 %v2292, %v2293
      %v2295 = vrot.slane %v2294, 2
      %v2296 = vmax.f32 %v2294, %v2295
      %v2297 = vrot.slane %v2296, 1
      %v2298 = vmax.f32 %v2296, %v2297
      %v2299 = vsel %vm2193, %v2108, -inf
      %v2300 = vrot.slane %v2299, 4
      %v2301 = vmax.f32 %v2299, %v2300
      %v2302 = vrot.slane %v2301, 2
      %v2303 = vmax.f32 %v2301, %v2302
      %v2304 = vrot.slane %v2303, 1
      %v2305 = vmax.f32 %v2303, %v2304
      %v2306 = vsel %vm2193, %v2047, -inf
      %v2307 = vrot.slane %v2306, 4
      %v2308 = vmax.f32 %v2306, %v2307
      %v2309 = vrot.slane %v2308, 2
      %v2310 = vmax.f32 %v2308, %v2309
      %v2311 = vrot.slane %v2310, 1
      %v2312 = vmax.f32 %v2310, %v2311
      %v2313 = vsel %vm2193, %v2109, -inf
      %v2314 = vrot.slane %v2313, 4
      %v2315 = vmax.f32 %v2313, %v2314
      %v2316 = vrot.slane %v2315, 2
      %v2317 = vmax.f32 %v2315, %v2316
      %v2318 = vrot.slane %v2317, 1
      %v2319 = vmax.f32 %v2317, %v2318
      %v2320 = vsel %vm2193, %v2110, -inf
      %v2321 = vrot.slane %v2320, 4
      %v2322 = vmax.f32 %v2320, %v2321
      %v2323 = vrot.slane %v2322, 2
      %v2324 = vmax.f32 %v2322, %v2323
      %v2325 = vrot.slane %v2324, 1
      %v2326 = vmax.f32 %v2324, %v2325
      %v2327 = vsel %vm2193, %v2111, -inf
      %v2328 = vrot.slane %v2327, 4
      %v2329 = vmax.f32 %v2327, %v2328
      %v2330 = vrot.slane %v2329, 2
      %v2331 = vmax.f32 %v2329, %v2330
      %v2332 = vrot.slane %v2331, 1
      %v2333 = vmax.f32 %v2331, %v2332
      %v2334 = vsel %vm2193, %v2050, -inf
      %v2335 = vrot.slane %v2334, 4
      %v2336 = vmax.f32 %v2334, %v2335
      %v2337 = vrot.slane %v2336, 2
      %v2338 = vmax.f32 %v2336, %v2337
      %v2339 = vrot.slane %v2338, 1
      %v2340 = vmax.f32 %v2338, %v2339
      %v2341 = vsel %vm2193, %v2112, -inf
      %v2342 = vrot.slane %v2341, 4
      %v2343 = vmax.f32 %v2341, %v2342
      %v2344 = vrot.slane %v2343, 2
      %v2345 = vmax.f32 %v2343, %v2344
      %v2346 = vrot.slane %v2345, 1
      %v2347 = vmax.f32 %v2345, %v2346
      %v2348 = vsel %vm2193, %v2113, -inf
      %v2349 = vrot.slane %v2348, 4
      %v2350 = vmax.f32 %v2348, %v2349
      %v2351 = vrot.slane %v2350, 2
      %v2352 = vmax.f32 %v2350, %v2351
      %v2353 = vrot.slane %v2352, 1
      %v2354 = vmax.f32 %v2352, %v2353
      %v2355 = vsel %vm2193, %v2114, -inf
      %v2356 = vrot.slane %v2355, 4
      %v2357 = vmax.f32 %v2355, %v2356
      %v2358 = vrot.slane %v2357, 2
      %v2359 = vmax.f32 %v2357, %v2358
      %v2360 = vrot.slane %v2359, 1
      %v2361 = vmax.f32 %v2359, %v2360
      %v2362 = vsel %vm2193, %v2053, -inf
      %v2363 = vrot.slane %v2362, 4
      %v2364 = vmax.f32 %v2362, %v2363
      %v2365 = vrot.slane %v2364, 2
      %v2366 = vmax.f32 %v2364, %v2365
      %v2367 = vrot.slane %v2366, 1
      %v2368 = vmax.f32 %v2366, %v2367
      %v2369 = vsel %vm2193, %v2115, -inf
      %v2370 = vrot.slane %v2369, 4
      %v2371 = vmax.f32 %v2369, %v2370
      %v2372 = vrot.slane %v2371, 2
      %v2373 = vmax.f32 %v2371, %v2372
      %v2374 = vrot.slane %v2373, 1
      %v2375 = vmax.f32 %v2373, %v2374
      %v2376 = vsel %vm2193, %v2116, -inf
      %v2377 = vrot.slane %v2376, 4
      %v2378 = vmax.f32 %v2376, %v2377
      %v2379 = vrot.slane %v2378, 2
      %v2380 = vmax.f32 %v2378, %v2379
      %v2381 = vrot.slane %v2380, 1
      %v2382 = vmax.f32 %v2380, %v2381
      %v2383 = vsel %vm2193, %v2117, -inf
      %v2384 = vrot.slane %v2383, 4
      %v2385 = vmax.f32 %v2383, %v2384
      %v2386 = vrot.slane %v2385, 2
      %v2387 = vmax.f32 %v2385, %v2386
      %v2388 = vrot.slane %v2387, 1
      %v2389 = vmax.f32 %v2387, %v2388
      %v2390 = vsel %vm2193, %v2056, -inf
      %v2391 = vrot.slane %v2390, 4
      %v2392 = vmax.f32 %v2390, %v2391
      %v2393 = vrot.slane %v2392, 2
      %v2394 = vmax.f32 %v2392, %v2393
      %v2395 = vrot.slane %v2394, 1
      %v2396 = vmax.f32 %v2394, %v2395
      %v2397 = vsel %vm2193, %v2118, -inf
      %v2398 = vrot.slane %v2397, 4
      %v2399 = vmax.f32 %v2397, %v2398
      %v2400 = vrot.slane %v2399, 2
      %v2401 = vmax.f32 %v2399, %v2400
      %v2402 = vrot.slane %v2401, 1
      %v2403 = vmax.f32 %v2401, %v2402
      %v2404 = vsel %vm2193, %v2119, -inf
      %v2405 = vrot.slane %v2404, 4
      %v2406 = vmax.f32 %v2404, %v2405
      %v2407 = vrot.slane %v2406, 2
      %v2408 = vmax.f32 %v2406, %v2407
      %v2409 = vrot.slane %v2408, 1
      %v2410 = vmax.f32 %v2408, %v2409
      %v2411 = vsel %vm2193, %v2120, -inf
      %v2412 = vrot.slane %v2411, 4
      %v2413 = vmax.f32 %v2411, %v2412
      %v2414 = vrot.slane %v2413, 2
      %v2415 = vmax.f32 %v2413, %v2414
      %v2416 = vrot.slane %v2415, 1
      %v2417 = vmax.f32 %v2415, %v2416
      %v2418 = vsel %vm2193, %v2059, -inf
      %v2419 = vrot.slane %v2418, 4
      %v2420 = vmax.f32 %v2418, %v2419
      %v2421 = vrot.slane %v2420, 2
      %v2422 = vmax.f32 %v2420, %v2421
      %v2423 = vrot.slane %v2422, 1
      %v2424 = vmax.f32 %v2422, %v2423
      %v2425 = vsel %vm2193, %v2121, -inf
      %v2426 = vrot.slane %v2425, 4
      %v2427 = vmax.f32 %v2425, %v2426
      %v2428 = vrot.slane %v2427, 2
      %v2429 = vmax.f32 %v2427, %v2428
      %v2430 = vrot.slane %v2429, 1
      %v2431 = vmax.f32 %v2429, %v2430
      %v2432 = vsel %vm2193, %v2122, -inf
      %v2433 = vrot.slane %v2432, 4
      %v2434 = vmax.f32 %v2432, %v2433
      %v2435 = vrot.slane %v2434, 2
      %v2436 = vmax.f32 %v2434, %v2435
      %v2437 = vrot.slane %v2436, 1
      %v2438 = vmax.f32 %v2436, %v2437
      %v2439 = vsel %vm2193, %v2123, -inf
      %v2440 = vrot.slane %v2439, 4
      %v2441 = vmax.f32 %v2439, %v2440
      %v2442 = vrot.slane %v2441, 2
      %v2443 = vmax.f32 %v2441, %v2442
      %v2444 = vrot.slane %v2443, 1
      %v2445 = vmax.f32 %v2443, %v2444
      %v2446 = vsel %vm2193, %v2062, -inf
      %v2447 = vrot.slane %v2446, 4
      %v2448 = vmax.f32 %v2446, %v2447
      %v2449 = vrot.slane %v2448, 2
      %v2450 = vmax.f32 %v2448, %v2449
      %v2451 = vrot.slane %v2450, 1
      %v2452 = vmax.f32 %v2450, %v2451
      %v2453 = vsel %vm2193, %v2124, -inf
      %v2454 = vrot.slane %v2453, 4
      %v2455 = vmax.f32 %v2453, %v2454
      %v2456 = vrot.slane %v2455, 2
      %v2457 = vmax.f32 %v2455, %v2456
      %v2458 = vrot.slane %v2457, 1
      %v2459 = vmax.f32 %v2457, %v2458
      %v2460 = vsel %vm2193, %v2125, -inf
      %v2461 = vrot.slane %v2460, 4
      %v2462 = vmax.f32 %v2460, %v2461
      %v2463 = vrot.slane %v2462, 2
      %v2464 = vmax.f32 %v2462, %v2463
      %v2465 = vrot.slane %v2464, 1
      %v2466 = vmax.f32 %v2464, %v2465
      %v2467 = vsel %vm2193, %v2126, -inf
      %v2468 = vrot.slane %v2467, 4
      %v2469 = vmax.f32 %v2467, %v2468
      %v2470 = vrot.slane %v2469, 2
      %v2471 = vmax.f32 %v2469, %v2470
      %v2472 = vrot.slane %v2471, 1
      %v2473 = vmax.f32 %v2471, %v2472
      %v2474 = vsel %vm2193, %v2065, -inf
      %v2475 = vrot.slane %v2474, 4
      %v2476 = vmax.f32 %v2474, %v2475
      %v2477 = vrot.slane %v2476, 2
      %v2478 = vmax.f32 %v2476, %v2477
      %v2479 = vrot.slane %v2478, 1
      %v2480 = vmax.f32 %v2478, %v2479
      %v2481 = vsel %vm2193, %v2127, -inf
      %v2482 = vrot.slane %v2481, 4
      %v2483 = vmax.f32 %v2481, %v2482
      %v2484 = vrot.slane %v2483, 2
      %v2485 = vmax.f32 %v2483, %v2484
      %v2486 = vrot.slane %v2485, 1
      %v2487 = vmax.f32 %v2485, %v2486
      %v2488 = vsel %vm2193, %v2128, -inf
      %v2489 = vrot.slane %v2488, 4
      %v2490 = vmax.f32 %v2488, %v2489
      %v2491 = vrot.slane %v2490, 2
      %v2492 = vmax.f32 %v2490, %v2491
      %v2493 = vrot.slane %v2492, 1
      %v2494 = vmax.f32 %v2492, %v2493
      %v2495 = vsel %vm2193, %v2129, -inf
      %v2496 = vrot.slane %v2495, 4
      %v2497 = vmax.f32 %v2495, %v2496
      %v2498 = vrot.slane %v2497, 2
      %v2499 = vmax.f32 %v2497, %v2498
      %v2500 = vrot.slane %v2499, 1
      %v2501 = vmax.f32 %v2499, %v2500
      %v2502 = vsel %vm2193, %v2068, -inf
      %v2503 = vrot.slane %v2502, 4
      %v2504 = vmax.f32 %v2502, %v2503
      %v2505 = vrot.slane %v2504, 2
      %v2506 = vmax.f32 %v2504, %v2505
      %v2507 = vrot.slane %v2506, 1
      %v2508 = vmax.f32 %v2506, %v2507
      %v2509 = vsel %vm2193, %v2130, -inf
      %v2510 = vrot.slane %v2509, 4
      %v2511 = vmax.f32 %v2509, %v2510
      %v2512 = vrot.slane %v2511, 2
      %v2513 = vmax.f32 %v2511, %v2512
      %v2514 = vrot.slane %v2513, 1
      %v2515 = vmax.f32 %v2513, %v2514
      %v2516 = vsel %vm2193, %v2131, -inf
      %v2517 = vrot.slane %v2516, 4
      %v2518 = vmax.f32 %v2516, %v2517
      %v2519 = vrot.slane %v2518, 2
      %v2520 = vmax.f32 %v2518, %v2519
      %v2521 = vrot.slane %v2520, 1
      %v2522 = vmax.f32 %v2520, %v2521
      %v2523 = vsel %vm2193, %v2132, -inf
      %v2524 = vrot.slane %v2523, 4
      %v2525 = vmax.f32 %v2523, %v2524
      %v2526 = vrot.slane %v2525, 2
      %v2527 = vmax.f32 %v2525, %v2526
      %v2528 = vrot.slane %v2527, 1
      %v2529 = vmax.f32 %v2527, %v2528
      %v2530 = vsel %vm2193, %v2071, -inf
      %v2531 = vrot.slane %v2530, 4
      %v2532 = vmax.f32 %v2530, %v2531
      %v2533 = vrot.slane %v2532, 2
      %v2534 = vmax.f32 %v2532, %v2533
      %v2535 = vrot.slane %v2534, 1
      %v2536 = vmax.f32 %v2534, %v2535
      %v2537 = vsel %vm2193, %v2133, -inf
      %v2538 = vrot.slane %v2537, 4
      %v2539 = vmax.f32 %v2537, %v2538
      %v2540 = vrot.slane %v2539, 2
      %v2541 = vmax.f32 %v2539, %v2540
      %v2542 = vrot.slane %v2541, 1
      %v2543 = vmax.f32 %v2541, %v2542
      %v2544 = vsel %vm2193, %v2134, -inf
      %v2545 = vrot.slane %v2544, 4
      %v2546 = vmax.f32 %v2544, %v2545
      %v2547 = vrot.slane %v2546, 2
      %v2548 = vmax.f32 %v2546, %v2547
      %v2549 = vrot.slane %v2548, 1
      %v2550 = vmax.f32 %v2548, %v2549
      %v2551 = vsel %vm2193, %v2135, -inf
      %v2552 = vrot.slane %v2551, 4
      %v2553 = vmax.f32 %v2551, %v2552
      %v2554 = vrot.slane %v2553, 2
      %v2555 = vmax.f32 %v2553, %v2554
      %v2556 = vrot.slane %v2555, 1
      %v2557 = vmax.f32 %v2555, %v2556
      %v2558 = vsel %vm2193, %v2074, -inf
      %v2559 = vrot.slane %v2558, 4
      %v2560 = vmax.f32 %v2558, %v2559
      %v2561 = vrot.slane %v2560, 2
      %v2562 = vmax.f32 %v2560, %v2561
      %v2563 = vrot.slane %v2562, 1
      %v2564 = vmax.f32 %v2562, %v2563
      %v2565 = vsel %vm2193, %v2136, -inf
      %v2566 = vrot.slane %v2565, 4
      %v2567 = vmax.f32 %v2565, %v2566
      %v2568 = vrot.slane %v2567, 2
      %v2569 = vmax.f32 %v2567, %v2568
      %v2570 = vrot.slane %v2569, 1
      %v2571 = vmax.f32 %v2569, %v2570
      %v2572 = vsel %vm2193, %v2137, -inf
      %v2573 = vrot.slane %v2572, 4
      %v2574 = vmax.f32 %v2572, %v2573
      %v2575 = vrot.slane %v2574, 2
      %v2576 = vmax.f32 %v2574, %v2575
      %v2577 = vrot.slane %v2576, 1
      %v2578 = vmax.f32 %v2576, %v2577
      %v2579 = vsel %vm2193, %v2138, -inf
      %v2580 = vrot.slane %v2579, 4
      %v2581 = vmax.f32 %v2579, %v2580
      %v2582 = vrot.slane %v2581, 2
      %v2583 = vmax.f32 %v2581, %v2582
      %v2584 = vrot.slane %v2583, 1
      %v2585 = vmax.f32 %v2583, %v2584
      %v2586 = vsel %vm2193, %v2077, -inf
      %v2587 = vrot.slane %v2586, 4
      %v2588 = vmax.f32 %v2586, %v2587
      %v2589 = vrot.slane %v2588, 2
      %v2590 = vmax.f32 %v2588, %v2589
      %v2591 = vrot.slane %v2590, 1
      %v2592 = vmax.f32 %v2590, %v2591
      %v2593 = vsel %vm2193, %v2139, -inf
      %v2594 = vrot.slane %v2593, 4
      %v2595 = vmax.f32 %v2593, %v2594
      %v2596 = vrot.slane %v2595, 2
      %v2597 = vmax.f32 %v2595, %v2596
      %v2598 = vrot.slane %v2597, 1
      %v2599 = vmax.f32 %v2597, %v2598
      %v2600 = vsel %vm2193, %v2140, -inf
      %v2601 = vrot.slane %v2600, 4
      %v2602 = vmax.f32 %v2600, %v2601
      %v2603 = vrot.slane %v2602, 2
      %v2604 = vmax.f32 %v2602, %v2603
      %v2605 = vrot.slane %v2604, 1
      %v2606 = vmax.f32 %v2604, %v2605
      %v2607 = vsel %vm2193, %v2141, -inf
      %v2608 = vrot.slane %v2607, 4
      %v2609 = vmax.f32 %v2607, %v2608
      %v2610 = vrot.slane %v2609, 2
      %v2611 = vmax.f32 %v2609, %v2610
      %v2612 = vrot.slane %v2611, 1
      %v2613 = vmax.f32 %v2611, %v2612
      %v2614 = vsel %vm2193, %v2080, -inf
      %v2615 = vrot.slane %v2614, 4
      %v2616 = vmax.f32 %v2614, %v2615
      %v2617 = vrot.slane %v2616, 2
      %v2618 = vmax.f32 %v2616, %v2617
      %v2619 = vrot.slane %v2618, 1
      %v2620 = vmax.f32 %v2618, %v2619
      %v2621 = vsel %vm2193, %v2142, -inf
      %v2622 = vrot.slane %v2621, 4
      %v2623 = vmax.f32 %v2621, %v2622
      %v2624 = vrot.slane %v2623, 2
      %v2625 = vmax.f32 %v2623, %v2624
      %v2626 = vrot.slane %v2625, 1
      %v2627 = vmax.f32 %v2625, %v2626
      %v2628 = vsel %vm2193, %v2143, -inf
      %v2629 = vrot.slane %v2628, 4
      %v2630 = vmax.f32 %v2628, %v2629
      %v2631 = vrot.slane %v2630, 2
      %v2632 = vmax.f32 %v2630, %v2631
      %v2633 = vrot.slane %v2632, 1
      %v2634 = vmax.f32 %v2632, %v2633
      %v2635 = vsel %vm2193, %v2144, -inf
      %v2636 = vrot.slane %v2635, 4
      %v2637 = vmax.f32 %v2635, %v2636
      %v2638 = vrot.slane %v2637, 2
      %v2639 = vmax.f32 %v2637, %v2638
      %v2640 = vrot.slane %v2639, 1
      %v2641 = vmax.f32 %v2639, %v2640
      %vm2706 = vcmask 1041409
      %v2707 = vsel %vm2706, %v2207, %v2200
      %vm2708 = vcmask 1042434
      %v2709 = vsel %vm2708, %v2214, %v2707
      %vm2710 = vcmask 1043459
      %v2711 = vsel %vm2710, %v2221, %v2709
      %vm2712 = vcmask 1044484
      %v2713 = vsel %vm2712, %v2228, %v2711
      %vm2714 = vcmask 1045509
      %v2715 = vsel %vm2714, %v2235, %v2713
      %vm2716 = vcmask 1046534
      %v2717 = vsel %vm2716, %v2242, %v2715
      %vm2718 = vcmask 1047559
      %v2719 = vsel %vm2718, %v2249, %v2717
      %v2720 = vsel %vm2706, %v2263, %v2256
      %v2721 = vsel %vm2708, %v2270, %v2720
      %v2722 = vsel %vm2710, %v2277, %v2721
      %v2723 = vsel %vm2712, %v2284, %v2722
      %v2724 = vsel %vm2714, %v2291, %v2723
      %v2725 = vsel %vm2716, %v2298, %v2724
      %v2726 = vsel %vm2718, %v2305, %v2725
      %v2727 = vsel %vm2706, %v2319, %v2312
      %v2728 = vsel %vm2708, %v2326, %v2727
      %v2729 = vsel %vm2710, %v2333, %v2728
      %v2730 = vsel %vm2712, %v2340, %v2729
      %v2731 = vsel %vm2714, %v2347, %v2730
      %v2732 = vsel %vm2716, %v2354, %v2731
      %v2733 = vsel %vm2718, %v2361, %v2732
      %v2734 = vsel %vm2706, %v2375, %v2368
      %v2735 = vsel %vm2708, %v2382, %v2734
      %v2736 = vsel %vm2710, %v2389, %v2735
      %v2737 = vsel %vm2712, %v2396, %v2736
      %v2738 = vsel %vm2714, %v2403, %v2737
      %v2739 = vsel %vm2716, %v2410, %v2738
      %v2740 = vsel %vm2718, %v2417, %v2739
      %v2741 = vsel %vm2706, %v2431, %v2424
      %v2742 = vsel %vm2708, %v2438, %v2741
      %v2743 = vsel %vm2710, %v2445, %v2742
      %v2744 = vsel %vm2712, %v2452, %v2743
      %v2745 = vsel %vm2714, %v2459, %v2744
      %v2746 = vsel %vm2716, %v2466, %v2745
      %v2747 = vsel %vm2718, %v2473, %v2746
      %v2748 = vsel %vm2706, %v2487, %v2480
      %v2749 = vsel %vm2708, %v2494, %v2748
      %v2750 = vsel %vm2710, %v2501, %v2749
      %v2751 = vsel %vm2712, %v2508, %v2750
      %v2752 = vsel %vm2714, %v2515, %v2751
      %v2753 = vsel %vm2716, %v2522, %v2752
      %v2754 = vsel %vm2718, %v2529, %v2753
      %v2755 = vsel %vm2706, %v2543, %v2536
      %v2756 = vsel %vm2708, %v2550, %v2755
      %v2757 = vsel %vm2710, %v2557, %v2756
      %v2758 = vsel %vm2712, %v2564, %v2757
      %v2759 = vsel %vm2714, %v2571, %v2758
      %v2760 = vsel %vm2716, %v2578, %v2759
      %v2761 = vsel %vm2718, %v2585, %v2760
      %v2762 = vsel %vm2706, %v2599, %v2592
      %v2763 = vsel %vm2708, %v2606, %v2762
      %v2764 = vsel %vm2710, %v2613, %v2763
      %v2765 = vsel %vm2712, %v2620, %v2764
      %v2766 = vsel %vm2714, %v2627, %v2765
      %v2767 = vsel %vm2716, %v2634, %v2766
      %v2768 = vsel %vm2718, %v2641, %v2767
      %2777 = vst.msk [vmem:[%s170] sm:$0xff] %vm2032, %v2719
      %2778 = vst.msk [vmem:[%s170 + $0x8] sm:$0xff] %vm2032, %v2726
      %2779 = vst.msk [vmem:[%s170 + $0x10] sm:$0xff] %vm2032, %v2733
      %2780 = vst.msk [vmem:[%s170 + $0x18] sm:$0xff] %vm2032, %v2740
      %2781 = vst.msk [vmem:[%s170 + $0x20] sm:$0xff] %vm2032, %v2747
      %2782 = vst.msk [vmem:[%s170 + $0x28] sm:$0xff] %vm2032, %v2754
      %2783 = vst.msk [vmem:[%s170 + $0x30] sm:$0xff] %vm2032, %v2761
      %2784 = vst.msk [vmem:[%s170 + $0x38] sm:$0xff] %vm2032, %v2768
      %p2785 = scmp.lt.s32.totalorder %s14, 1
      %s2786 = scalar_select %p2785, %s14, 1
      %s2787 = smul.addr %s2786, 8
      %s2788 = smul.addr %s2787, 8
      %s2789 = scalar_lea.vmem %s3, %s2788
      // Predicated region
      $region33: #{multimodal_forward.3} parent=31 // pred_check
        %p2790 = pneg %p100
      $region34: #{multimodal_forward.3} parent=31 // pred_check_branch
        %2792 = sbr.rel (%p2790) target = $region36
      $region35: #{multimodal_forward.3} parent=31 // pred_region
        _
      $region36: #{multimodal_forward.3} parent=31 // pred_fallthru
        _
    $region32: #{multimodal_forward.3} parent=5 // pred_fallthru
      _
    %p2793 = scmp.le.s32.totalorder 2, %s9
    // Predicated region
    $region37: #{multimodal_forward.3} parent=5 // pred_check
      %p2794 = pneg %p2793
    $region38: #{multimodal_forward.3} parent=5 // pred_check_branch
      %2796 = sbr.rel (%p2794) target = $region40
    $region39: #{multimodal_forward.3} parent=5 // pred_region
      %s2797 = ssub.s32 %s9, 2
      // Predicated region
      $region41: #{multimodal_forward.3} parent=39 // pred_check
        %p2798 = pneg %p106
      $region42: #{multimodal_forward.3} parent=39 // pred_check_branch
        %2800 = sbr.rel (%p2798) target = $region44
      $region43: #{multimodal_forward.3} parent=39 // pred_region
        %p2801 = scmp.lt.s32.totalorder %s15, 1
        %s2802 = scalar_select %p2801, %s15, 1
        %s2803 = smul.addr %s2802, 8
        %s2804 = smul.addr %s2803, 8
        %s2805 = scalar_lea.vmem %s3, %s2804
      $region44: #{multimodal_forward.3} parent=39 // pred_fallthru
        _
    $region40: #{multimodal_forward.3} parent=5 // pred_fallthru
      _
  $region6: #{multimodal_forward.3} parent=0 // loop_footer
    %s13 = sadd.s32 1, %s9
  $region7: #{multimodal_forward.3} parent=0 // loop_footer_branch
    %8 = sbr.rel target = $region3
  $region8: #{multimodal_forward.3} parent=0 // loop_exit
    _

</llo_original>
